<compile_context>
chip_gen: v5e
topology: v5e:2x2
jax: 0.10.0
libtpu: 0.0.40
codegen_flags: <defaults>
</compile_context>

<pallas_src>
import functools
import math

import jax
import jax.numpy as jnp
from jax import lax
from jax.experimental import pallas as pl
from jax.experimental.pallas import tpu as pltpu


def _wspec(shape):
    """Full-array block with a constant index_map (weight stays resident)."""
    nd = len(shape)
    return pl.BlockSpec(shape, lambda *_i, _nd=nd: (0,) * _nd)


def _mxdot(a, b):
    """MXU matmul with bf16 operands and f32 accumulation."""
    return jnp.dot(a.astype(jnp.bfloat16), b.astype(jnp.bfloat16),
                   preferred_element_type=jnp.float32)


# ---------------------------------------------------------------------------
# Fused bidirectional GRU kernel: both directions in one body, interleaved.
# ---------------------------------------------------------------------------

def _bigru_kernel(*refs, pool, has_qx):
    """PyTorch gate conventions (r|z|n), gate-major weights [2, 3, D, H].

    x_ref:   [Bt, T, D]      batch tile of the input sequence
    qx_ref:  [Bt, Q2]        (optional) per-batch-row constant input term
    wih_ref: [2, 3, D, H]    input weights (both directions)
    wq_ref:  [2, 3, Q2, H]   (optional) input weights for the qx rows
    whh_ref: [2, 3, H, H]    recurrent weights
    bih_ref / bhh_ref: [2, 3, 1, H]
    o_ref:   [2, Bt, H]      per-direction final hidden (pool=False) or
                             per-direction max over time (pool=True)
    """
    if has_qx:
        x_ref, qx_ref, wih_ref, wq_ref, whh_ref, bih_ref, bhh_ref, o_ref = refs
    else:
        x_ref, wih_ref, whh_ref, bih_ref, bhh_ref, o_ref = refs
        qx_ref = wq_ref = None

    Bt, T, D = x_ref.shape
    H = whh_ref.shape[-1]

    # Hoisted input projection: one [Bt*T, D] @ [D, H] GEMM per gate/direction.
    x_flat = x_ref[...].reshape(Bt * T, D)
    gi = []
    for d in range(2):
        gd = []
        for g in range(3):
            y = _mxdot(x_flat, wih_ref[d, g]) + bih_ref[d, g]          # [Bt*T, H]
            y = y.reshape(Bt, T, H)
            if has_qx:
                # Row-constant (per-batch) contribution, broadcast over time/objs.
                y = y + _mxdot(qx_ref[...], wq_ref[d, g])[:, None, :]
            gd.append(y)
        gi.append(gd)

    # Recurrent weights/biases loaded once, outside the time loop.
    whh = [[whh_ref[d, g].astype(jnp.bfloat16) for g in range(3)] for d in range(2)]
    bhh = [[bhh_ref[d, g] for g in range(3)] for d in range(2)]

    h = [jnp.zeros((Bt, H), jnp.float32), jnp.zeros((Bt, H), jnp.float32)]
    m = ([jnp.full((Bt, H), -jnp.inf, jnp.float32),
          jnp.full((Bt, H), -jnp.inf, jnp.float32)] if pool else None)

    # Fully unrolled recurrence (T static, small); the two direction chains are
    # independent and interleaved so their dots/EUP ops co-issue on one TC.
    for t in range(T):
        t_eff = (t, T - 1 - t)          # fwd reads t, bwd reads T-1-t (static)
        gh = [[None, None, None], [None, None, None]]
        for d in range(2):
            hb = h[d].astype(jnp.bfloat16)
            for g in range(3):
                gh[d][g] = (jnp.dot(hb, whh[d][g],
                                    preferred_element_type=jnp.float32)
                            + bhh[d][g])
        for d in range(2):
            te = t_eff[d]
            r = jax.nn.sigmoid(gi[d][0][:, te] + gh[d][0])
            z = jax.nn.sigmoid(gi[d][1][:, te] + gh[d][1])
            n = jnp.tanh(gi[d][2][:, te] + r * gh[d][2])
            h[d] = (1.0 - z) * n + z * h[d]
            if pool:
                m[d] = jnp.maximum(m[d], h[d])

    res = m if pool else h
    o_ref[0] = res[0]
    o_ref[1] = res[1]


def bigru(x_btd, gru_params, *, pool, qx=None, wq=None, block_b=None):
    """Bidirectional GRU.  Returns [2, B, H]: per-direction final hidden
    (pool=False) or per-direction max over time (pool=True).

    If (qx, wq) are given, the input projection additionally receives
    qx @ wq[d, g], constant over the time/object axis (split-weight trick)."""
    w_ih, w_hh, b_ih, b_hh = gru_params
    B, T, D = x_btd.shape
    H = w_hh.shape[-1]
    bt = B if block_b is None else min(block_b, B)
    grid = (pl.cdiv(B, bt),)

    arrays = [x_btd]
    in_specs = [pl.BlockSpec((bt, T, D), lambda i: (i, 0, 0))]
    if qx is not None:
        Q2 = qx.shape[-1]
        arrays += [qx, w_ih, wq, w_hh, b_ih, b_hh]
        in_specs += [pl.BlockSpec((bt, Q2), lambda i: (i, 0)),
                     _wspec(w_ih.shape), _wspec(wq.shape), _wspec(w_hh.shape),
                     _wspec(b_ih.shape), _wspec(b_hh.shape)]
    else:
        arrays += [w_ih, w_hh, b_ih, b_hh]
        in_specs += [_wspec(w_ih.shape), _wspec(w_hh.shape),
                     _wspec(b_ih.shape), _wspec(b_hh.shape)]

    return pl.pallas_call(
        functools.partial(_bigru_kernel, pool=pool, has_qx=qx is not None),
        out_shape=jax.ShapeDtypeStruct((2, B, H), jnp.float32),
        grid=grid,
        in_specs=in_specs,
        out_specs=pl.BlockSpec((2, bt, H), lambda i: (0, i, 0)),
        compiler_params=pltpu.CompilerParams(
            dimension_semantics=("parallel",)),
    )(*arrays)


# ---------------------------------------------------------------------------
# Fused MultiModalCore: split-weight first layer + Swish MLP + folded BN
# (y-half only; q-half folded into the aggregator GRU's input projection).
# ---------------------------------------------------------------------------

def _mmc_kernel(*refs, num_extra_layers):
    v_ref, b4_ref, q_ref, w0v_ref, w0b_ref, w0q_ref, b0_ref = refs[:7]
    idx = 7
    extra = []
    for _ in range(num_extra_layers):
        extra.append((refs[idx], refs[idx + 1]))
        idx += 2
    scale_ref, shift_ref, o_ref = refs[idx], refs[idx + 1], refs[idx + 2]

    Bt, N, V = v_ref.shape
    S0 = w0v_ref.shape[-1]

    v_flat = v_ref[...].reshape(Bt * N, V)
    b4_flat = b4_ref[...].astype(jnp.float32).reshape(Bt * N, 4)
    q = q_ref[...]                                              # [Bt, Q2]

    # concat([v, b4, q_rep]) @ W0 == v@W0v + b4@W0b + q@W0q (split weights);
    # the q term is computed once per batch row and broadcast over objects,
    # and the K=4 b4 contraction runs as 4 VPU rank-1 FMAs (MXU stays free).
    w0b = w0b_ref[...].astype(jnp.float32)                      # [4, S0]
    yb = b4_flat[:, 0:1] * w0b[0:1]
    for k in range(1, 4):
        yb = yb + b4_flat[:, k:k + 1] * w0b[k:k + 1]
    yq = _mxdot(q, w0q_ref[...])                                # [Bt, S0]
    y = (_mxdot(v_flat, w0v_ref[...]) + yb + b0_ref[...]).reshape(Bt, N, S0)
    y = (y + yq[:, None, :]).reshape(Bt * N, S0)
    y = y * jax.nn.sigmoid(y)                                   # Swish

    for w_ref, bb_ref in extra:
        y = _mxdot(y, w_ref[...]) + bb_ref[...]
        y = y * jax.nn.sigmoid(y)

    # Eval-mode BN folded to a per-channel affine (y-half of the late fusion).
    y = y * scale_ref[...] + shift_ref[...]
    o_ref[...] = y.reshape(Bt, N, y.shape[-1]).astype(o_ref.dtype)


def mmc_fused(v, b4, q_emb, w0v, w0b, w0q, b0, extra_layers,
              bn_scale_y, bn_shift_y, *, block_b=None, out_dtype=jnp.bfloat16):
    B, N, V = v.shape
    Q2 = q_emb.shape[-1]
    s_last = extra_layers[-1][0].shape[-1] if extra_layers else w0v.shape[-1]
    bt = B if block_b is None else min(block_b, B)
    grid = (pl.cdiv(B, bt),)

    flat = [a for pair in extra_layers for a in pair]
    args = [v, b4, q_emb, w0v, w0b, w0q, b0] + flat + [bn_scale_y, bn_shift_y]
    in_specs = ([pl.BlockSpec((bt, N, V), lambda i: (i, 0, 0)),
                 pl.BlockSpec((bt, N, 4), lambda i: (i, 0, 0)),
                 pl.BlockSpec((bt, Q2), lambda i: (i, 0))]
                + [_wspec(a.shape) for a in args[3:]])

    return pl.pallas_call(
        functools.partial(_mmc_kernel, num_extra_layers=len(extra_layers)),
        out_shape=jax.ShapeDtypeStruct((B, N, s_last), out_dtype),
        grid=grid,
        in_specs=in_specs,
        out_specs=pl.BlockSpec((bt, N, s_last), lambda i: (i, 0, 0)),
        compiler_params=pltpu.CompilerParams(
            dimension_semantics=("parallel",)),
    )(*args)


# ---------------------------------------------------------------------------
# Fused classifier (pre-classification Swish layers + output layer)
# ---------------------------------------------------------------------------

def _clf_kernel(*refs, n_extra):
    agg_ref, wa_ref, wb_ref, b0_ref = refs[:4]
    idx = 4
    extra = []
    for _ in range(n_extra):
        extra.append((refs[idx], refs[idx + 1]))
        idx += 2
    o_ref = refs[idx]

    n_layers = n_extra + 1
    # First layer consumes the two GRU-direction halves via split weight rows
    # (== Linear on concat(agg_fwd, agg_bwd) without materializing the concat).
    y = (_mxdot(agg_ref[0], wa_ref[...]) + _mxdot(agg_ref[1], wb_ref[...])
         + b0_ref[...])
    if n_layers > 1:
        y = y * jax.nn.sigmoid(y)                               # Swish
    for li, (w_ref, bb_ref) in enumerate(extra, start=1):
        y = _mxdot(y, w_ref[...]) + bb_ref[...]
        if li < n_layers - 1:
            y = y * jax.nn.sigmoid(y)
    o_ref[...] = y


def classifier_fused(agg, wa, wb, b0, extra_layers):
    B = agg.shape[1]
    out_dim = extra_layers[-1][0].shape[-1] if extra_layers else wa.shape[-1]
    flat = [a for pair in extra_layers for a in pair]
    args = [agg, wa, wb, b0] + flat
    return pl.pallas_call(
        functools.partial(_clf_kernel, n_extra=len(extra_layers)),
        out_shape=jax.ShapeDtypeStruct((B, out_dim), jnp.float32),
        grid=(1,),
        in_specs=[_wspec(a.shape) for a in args],
        out_specs=_wspec((B, out_dim)),
    )(*args)


# ---------------------------------------------------------------------------
# Full Ramen forward (glue in plain JAX, hot paths in Pallas)
# ---------------------------------------------------------------------------

def ramen_forward(params, v, b, q_tokens):
    """v: [B, N, v_dim], b: [B, N, b_dim], q_tokens: [B, T] int32."""
    # Word embedding lookup (gather) — kept in JAX glue.
    q_words = jnp.take(params["w_emb"], q_tokens, axis=0)           # [B, T, 300]

    # Question embedding: bidirectional GRU, final hidden of each direction.
    q_out = bigru(q_words, params["q_gru"], pool=False)              # [2, B, HQ]
    q_emb = jnp.concatenate([q_out[0], q_out[1]], axis=-1)           # [B, 2*HQ]
    q_emb = q_emb.astype(jnp.float32)

    # MultiModalCore + Swish MLP + BN(y-half) fused; emits only [B, N, S_last].
    b4 = b[:, :, :4]
    x = mmc_fused(v, b4, q_emb,
                  params["mmc_w0_v"], params["mmc_w0_b"], params["mmc_w0_q"],
                  params["mmc_b0"], params["mmc_extra"],
                  params["bn_scale_y"], params["bn_shift_y"])        # [B, N, S_last] bf16

    # Aggregator: bi-GRU over objects with the object-max folded into the
    # recurrence epilogue.  The q_rep half of the late fusion (+ its BN affine)
    # is folded here via the split-weight input projection: the BN-affined
    # q_emb contributes once per batch row and is broadcast over objects.
    q_bn = q_emb * params["bn_scale_q"] + params["bn_shift_q"]       # [B, 2*HQ]
    agg = bigru(x, params["agg_gru_y"], pool=True,
                qx=q_bn, wq=params["agg_wih_q"])                     # [2, B, HA]

    # pre_classification_dropout / layer dropouts: identity at inference.
    logits = classifier_fused(agg, params["clf_wa"], params["clf_wb"],
                              params["clf_b0"], params["clf_extra"])
    return {"logits": logits, "q_emb": q_emb}


# ---------------------------------------------------------------------------
# Deterministic parameter construction (weights bf16, biases/affines f32)
# ---------------------------------------------------------------------------

def _uniform(key, shape, lim):
    return jax.random.uniform(key, shape, jnp.float32, -lim, lim)


def init_linear(key, din, dout):
    k1, k2 = jax.random.split(key)
    lim = 1.0 / math.sqrt(din)
    return (_uniform(k1, (din, dout), lim).astype(jnp.bfloat16),
            _uniform(k2, (1, dout), lim))


def init_bigru(key, din, h):
    """Gate-major, direction-stacked GRU weights: [2, 3, din, h] etc."""
    ks = jax.random.split(key, 4)
    lim = 1.0 / math.sqrt(h)
    return (_uniform(ks[0], (2, 3, din, h), lim).astype(jnp.bfloat16),
            _uniform(ks[1], (2, 3, h, h), lim).astype(jnp.bfloat16),
            _uniform(ks[2], (2, 3, 1, h), lim),
            _uniform(ks[3], (2, 3, 1, h), lim))


if __name__ == "__main__":
    # Small config consistent with the module's constructor.
    B, N, V_DIM, B_DIM, T = 2, 8, 32, 6, 8
    VOCAB, WDIM = 100, 300
    HQ = 32                 # config.q_emb_dim (bidirectional -> 2*HQ)
    MMC_SIZES = (64, 64)    # config.mmc_sizes
    AGG_H = 32              # config.mmc_aggregator_dim (bidir -> 64 = clf_in)
    CLF_SIZES = (32,)       # config.classifier_sizes
    NUM_ANS = 16            # config.num_ans_candidates

    root = jax.random.PRNGKey(0)
    keys = jax.random.split(root, 16)
    params = {}

    # WordEmbedding (synthetic, deterministic — no GloVe file).
    params["w_emb"] = (jax.random.normal(keys[0], (VOCAB, WDIM), jnp.float32)
                       * 0.1).astype(jnp.bfloat16)

    # Question bidirectional GRU.
    params["q_gru"] = init_bigru(keys[1], WDIM, HQ)

    # MultiModalCore MLP; first-layer weight rows split [v | b4 | q_rep].
    mmc_in = V_DIM + 4 + 2 * HQ
    kiter = 2
    w0, b0 = init_linear(keys[kiter], mmc_in, MMC_SIZES[0]); kiter += 1
    params["mmc_w0_v"] = w0[:V_DIM]
    params["mmc_w0_b"] = w0[V_DIM:V_DIM + 4]
    params["mmc_w0_q"] = w0[V_DIM + 4:]
    params["mmc_b0"] = b0
    mmc_extra = []
    prev = MMC_SIZES[0]
    for s in MMC_SIZES[1:]:
        mmc_extra.append(init_linear(keys[kiter], prev, s)); prev = s; kiter += 1
    params["mmc_extra"] = mmc_extra

    # Batch norm (eval mode) over the late-fusion features, folded to an affine
    # and split into the y-half (applied in the MMC kernel) and the q-half
    # (folded into the aggregator GRU's input projection).
    s_last = MMC_SIZES[-1]
    fused_dim = s_last + 2 * HQ
    gamma = jnp.ones((1, fused_dim), jnp.float32)
    beta = jnp.zeros((1, fused_dim), jnp.float32)
    mean = jnp.zeros((1, fused_dim), jnp.float32)
    var = jnp.ones((1, fused_dim), jnp.float32)
    bn_scale = gamma * lax.rsqrt(var + 1e-5)
    bn_shift = beta - mean * bn_scale
    params["bn_scale_y"] = bn_scale[:, :s_last]
    params["bn_shift_y"] = bn_shift[:, :s_last]
    params["bn_scale_q"] = bn_scale[:, s_last:]
    params["bn_shift_q"] = bn_shift[:, s_last:]

    # Aggregator bidirectional GRU over objects; input-weight rows split into
    # the y rows (per-object features) and the q rows (per-batch constant).
    agg_wih, agg_whh, agg_bih, agg_bhh = init_bigru(keys[kiter], fused_dim, AGG_H)
    kiter += 1
    params["agg_gru_y"] = (agg_wih[:, :, :s_last], agg_whh, agg_bih, agg_bhh)
    params["agg_wih_q"] = agg_wih[:, :, s_last:]

    # Pre-classification layers + classifier; first-layer weight split by GRU direction.
    clf_in = 2 * AGG_H
    first_dims = CLF_SIZES[0] if CLF_SIZES else NUM_ANS
    wc0, bc0 = init_linear(keys[kiter], clf_in, first_dims); kiter += 1
    params["clf_wa"] = wc0[:AGG_H]
    params["clf_wb"] = wc0[AGG_H:]
    params["clf_b0"] = bc0
    clf_extra = []
    prev = first_dims
    for s in CLF_SIZES[1:]:
        clf_extra.append(init_linear(keys[kiter], prev, s)); prev = s; kiter += 1
    if CLF_SIZES:   # final classifier layer (no activation)
        clf_extra.append(init_linear(keys[kiter], prev, NUM_ANS)); kiter += 1
    params["clf_extra"] = clf_extra

    # Example inputs.
    v = jax.random.normal(keys[kiter], (B, N, V_DIM), jnp.float32); kiter += 1
    b = jax.random.normal(keys[kiter], (B, N, B_DIM), jnp.float32); kiter += 1
    q = jax.random.randint(keys[kiter], (B, T), 0, VOCAB, jnp.int32)

    out = ramen_forward(params, v, b, q)
    jax.block_until_ready(out["logits"])
    assert out["logits"].shape == (B, NUM_ANS)
    assert out["q_emb"].shape == (B, 2 * HQ)
    print("KERNEL_OK")
</pallas_src>

<mosaic_0001>
module attributes {stable_mosaic.version = 11 : i64} {
  func.func @_bigru_kernel(%arg0: i32, %arg1: memref<2x8x300xbf16, #tpu.memory_space<vmem>>, %arg2: memref<2x3x300x32xbf16, #tpu.memory_space<vmem>>, %arg3: memref<2x3x32x32xbf16, #tpu.memory_space<vmem>>, %arg4: memref<2x3x1x32xf32, #tpu.memory_space<vmem>>, %arg5: memref<2x3x1x32xf32, #tpu.memory_space<vmem>>, %arg6: memref<2x2x32xf32, #tpu.memory_space<vmem>>) attributes {dimension_semantics = [#tpu.dimension_semantics<parallel>], iteration_bounds = array<i64: 1>, scalar_prefetch = 0 : i64, scratch_operands = 0 : i64, tpu.core_type = #tpu.core_type<tc>, window_params = [{transform_indices = @transform_0, window_bounds = array<i64: 2, 8, 300>}, {pipeline_mode = #tpu.pipeline_mode<synchronous>, transform_indices = @transform_1, window_bounds = array<i64: 2, 3, 300, 32>}, {pipeline_mode = #tpu.pipeline_mode<synchronous>, transform_indices = @transform_2, window_bounds = array<i64: 2, 3, 32, 32>}, {pipeline_mode = #tpu.pipeline_mode<synchronous>, transform_indices = @transform_3, window_bounds = array<i64: 2, 3, 1, 32>}, {pipeline_mode = #tpu.pipeline_mode<synchronous>, transform_indices = @transform_4, window_bounds = array<i64: 2, 3, 1, 32>}, {transform_indices = @transform_5, window_bounds = array<i64: 2, 2, 32>}]} {
    %c0 = arith.constant 0 : index
    %c0_0 = arith.constant 0 : index
    %c0_1 = arith.constant 0 : index
    %0 = vector.load %arg1[%c0, %c0_0, %c0_1] : memref<2x8x300xbf16, #tpu.memory_space<vmem>>, vector<2x8x300xbf16>
    %1 = vector.shape_cast %0 : vector<2x8x300xbf16> to vector<16x300xbf16>
    %c0_2 = arith.constant 0 : index
    %c0_3 = arith.constant 0 : index
    %c0_4 = arith.constant 0 : index
    %c0_5 = arith.constant 0 : index
    %2 = vector.load %arg2[%c0_2, %c0_3, %c0_4, %c0_5] : memref<2x3x300x32xbf16, #tpu.memory_space<vmem>>, vector<1x1x300x32xbf16>
    %3 = vector.shape_cast %2 : vector<1x1x300x32xbf16> to vector<300x32xbf16>
    %cst = arith.constant dense<0.000000e+00> : vector<16x32xf32>
    %4 = tpu.matmul %1, %3, %cst {dimension_numbers = #tpu.dot_dimension_numbers<[1], [0], [0], [1], [0, 0, 1, 1], [], []>} : vector<16x300xbf16>, vector<300x32xbf16>, vector<16x32xf32> -> vector<16x32xf32>
    %c0_6 = arith.constant 0 : index
    %c0_7 = arith.constant 0 : index
    %c0_8 = arith.constant 0 : index
    %c0_9 = arith.constant 0 : index
    %5 = vector.load %arg4[%c0_6, %c0_7, %c0_8, %c0_9] : memref<2x3x1x32xf32, #tpu.memory_space<vmem>>, vector<1x1x1x32xf32>
    %6 = vector.shape_cast %5 : vector<1x1x1x32xf32> to vector<1x32xf32>
    %7 = vector.broadcast %6 : vector<1x32xf32> to vector<16x32xf32>
    %8 = arith.addf %4, %7 : vector<16x32xf32>
    %9 = vector.shape_cast %8 : vector<16x32xf32> to vector<2x8x32xf32>
    %c0_10 = arith.constant 0 : index
    %c1 = arith.constant 1 : index
    %c0_11 = arith.constant 0 : index
    %c0_12 = arith.constant 0 : index
    %10 = vector.load %arg2[%c0_10, %c1, %c0_11, %c0_12] : memref<2x3x300x32xbf16, #tpu.memory_space<vmem>>, vector<1x1x300x32xbf16>
    %11 = vector.shape_cast %10 : vector<1x1x300x32xbf16> to vector<300x32xbf16>
    %cst_13 = arith.constant dense<0.000000e+00> : vector<16x32xf32>
    %12 = tpu.matmul %1, %11, %cst_13 {dimension_numbers = #tpu.dot_dimension_numbers<[1], [0], [0], [1], [0, 0, 1, 1], [], []>} : vector<16x300xbf16>, vector<300x32xbf16>, vector<16x32xf32> -> vector<16x32xf32>
    %c0_14 = arith.constant 0 : index
    %c1_15 = arith.constant 1 : index
    %c0_16 = arith.constant 0 : index
    %c0_17 = arith.constant 0 : index
    %13 = vector.load %arg4[%c0_14, %c1_15, %c0_16, %c0_17] : memref<2x3x1x32xf32, #tpu.memory_space<vmem>>, vector<1x1x1x32xf32>
    %14 = vector.shape_cast %13 : vector<1x1x1x32xf32> to vector<1x32xf32>
    %15 = vector.broadcast %14 : vector<1x32xf32> to vector<16x32xf32>
    %16 = arith.addf %12, %15 : vector<16x32xf32>
    %17 = vector.shape_cast %16 : vector<16x32xf32> to vector<2x8x32xf32>
    %c0_18 = arith.constant 0 : index
    %c2 = arith.constant 2 : index
    %c0_19 = arith.constant 0 : index
    %c0_20 = arith.constant 0 : index
    %18 = vector.load %arg2[%c0_18, %c2, %c0_19, %c0_20] : memref<2x3x300x32xbf16, #tpu.memory_space<vmem>>, vector<1x1x300x32xbf16>
    %19 = vector.shape_cast %18 : vector<1x1x300x32xbf16> to vector<300x32xbf16>
    %cst_21 = arith.constant dense<0.000000e+00> : vector<16x32xf32>
    %20 = tpu.matmul %1, %19, %cst_21 {dimension_numbers = #tpu.dot_dimension_numbers<[1], [0], [0], [1], [0, 0, 1, 1], [], []>} : vector<16x300xbf16>, vector<300x32xbf16>, vector<16x32xf32> -> vector<16x32xf32>
    %c0_22 = arith.constant 0 : index
    %c2_23 = arith.constant 2 : index
    %c0_24 = arith.constant 0 : index
    %c0_25 = arith.constant 0 : index
    %21 = vector.load %arg4[%c0_22, %c2_23, %c0_24, %c0_25] : memref<2x3x1x32xf32, #tpu.memory_space<vmem>>, vector<1x1x1x32xf32>
    %22 = vector.shape_cast %21 : vector<1x1x1x32xf32> to vector<1x32xf32>
    %23 = vector.broadcast %22 : vector<1x32xf32> to vector<16x32xf32>
    %24 = arith.addf %20, %23 : vector<16x32xf32>
    %25 = vector.shape_cast %24 : vector<16x32xf32> to vector<2x8x32xf32>
    %c1_26 = arith.constant 1 : index
    %c0_27 = arith.constant 0 : index
    %c0_28 = arith.constant 0 : index
    %c0_29 = arith.constant 0 : index
    %26 = vector.load %arg2[%c1_26, %c0_27, %c0_28, %c0_29] : memref<2x3x300x32xbf16, #tpu.memory_space<vmem>>, vector<1x1x300x32xbf16>
    %27 = vector.shape_cast %26 : vector<1x1x300x32xbf16> to vector<300x32xbf16>
    %cst_30 = arith.constant dense<0.000000e+00> : vector<16x32xf32>
    %28 = tpu.matmul %1, %27, %cst_30 {dimension_numbers = #tpu.dot_dimension_numbers<[1], [0], [0], [1], [0, 0, 1, 1], [], []>} : vector<16x300xbf16>, vector<300x32xbf16>, vector<16x32xf32> -> vector<16x32xf32>
    %c1_31 = arith.constant 1 : index
    %c0_32 = arith.constant 0 : index
    %c0_33 = arith.constant 0 : index
    %c0_34 = arith.constant 0 : index
    %29 = vector.load %arg4[%c1_31, %c0_32, %c0_33, %c0_34] : memref<2x3x1x32xf32, #tpu.memory_space<vmem>>, vector<1x1x1x32xf32>
    %30 = vector.shape_cast %29 : vector<1x1x1x32xf32> to vector<1x32xf32>
    %31 = vector.broadcast %30 : vector<1x32xf32> to vector<16x32xf32>
    %32 = arith.addf %28, %31 : vector<16x32xf32>
    %33 = vector.shape_cast %32 : vector<16x32xf32> to vector<2x8x32xf32>
    %c1_35 = arith.constant 1 : index
    %c1_36 = arith.constant 1 : index
    %c0_37 = arith.constant 0 : index
    %c0_38 = arith.constant 0 : index
    %34 = vector.load %arg2[%c1_35, %c1_36, %c0_37, %c0_38] : memref<2x3x300x32xbf16, #tpu.memory_space<vmem>>, vector<1x1x300x32xbf16>
    %35 = vector.shape_cast %34 : vector<1x1x300x32xbf16> to vector<300x32xbf16>
    %cst_39 = arith.constant dense<0.000000e+00> : vector<16x32xf32>
    %36 = tpu.matmul %1, %35, %cst_39 {dimension_numbers = #tpu.dot_dimension_numbers<[1], [0], [0], [1], [0, 0, 1, 1], [], []>} : vector<16x300xbf16>, vector<300x32xbf16>, vector<16x32xf32> -> vector<16x32xf32>
    %c1_40 = arith.constant 1 : index
    %c1_41 = arith.constant 1 : index
    %c0_42 = arith.constant 0 : index
    %c0_43 = arith.constant 0 : index
    %37 = vector.load %arg4[%c1_40, %c1_41, %c0_42, %c0_43] : memref<2x3x1x32xf32, #tpu.memory_space<vmem>>, vector<1x1x1x32xf32>
    %38 = vector.shape_cast %37 : vector<1x1x1x32xf32> to vector<1x32xf32>
    %39 = vector.broadcast %38 : vector<1x32xf32> to vector<16x32xf32>
    %40 = arith.addf %36, %39 : vector<16x32xf32>
    %41 = vector.shape_cast %40 : vector<16x32xf32> to vector<2x8x32xf32>
    %c1_44 = arith.constant 1 : index
    %c2_45 = arith.constant 2 : index
    %c0_46 = arith.constant 0 : index
    %c0_47 = arith.constant 0 : index
    %42 = vector.load %arg2[%c1_44, %c2_45, %c0_46, %c0_47] : memref<2x3x300x32xbf16, #tpu.memory_space<vmem>>, vector<1x1x300x32xbf16>
    %43 = vector.shape_cast %42 : vector<1x1x300x32xbf16> to vector<300x32xbf16>
    %cst_48 = arith.constant dense<0.000000e+00> : vector<16x32xf32>
    %44 = tpu.matmul %1, %43, %cst_48 {dimension_numbers = #tpu.dot_dimension_numbers<[1], [0], [0], [1], [0, 0, 1, 1], [], []>} : vector<16x300xbf16>, vector<300x32xbf16>, vector<16x32xf32> -> vector<16x32xf32>
    %c1_49 = arith.constant 1 : index
    %c2_50 = arith.constant 2 : index
    %c0_51 = arith.constant 0 : index
    %c0_52 = arith.constant 0 : index
    %45 = vector.load %arg4[%c1_49, %c2_50, %c0_51, %c0_52] : memref<2x3x1x32xf32, #tpu.memory_space<vmem>>, vector<1x1x1x32xf32>
    %46 = vector.shape_cast %45 : vector<1x1x1x32xf32> to vector<1x32xf32>
    %47 = vector.broadcast %46 : vector<1x32xf32> to vector<16x32xf32>
    %48 = arith.addf %44, %47 : vector<16x32xf32>
    %49 = vector.shape_cast %48 : vector<16x32xf32> to vector<2x8x32xf32>
    %c0_53 = arith.constant 0 : index
    %c0_54 = arith.constant 0 : index
    %c0_55 = arith.constant 0 : index
    %c0_56 = arith.constant 0 : index
    %50 = vector.load %arg3[%c0_53, %c0_54, %c0_55, %c0_56] : memref<2x3x32x32xbf16, #tpu.memory_space<vmem>>, vector<1x1x32x32xbf16>
    %51 = vector.shape_cast %50 : vector<1x1x32x32xbf16> to vector<32x32xbf16>
    %c0_57 = arith.constant 0 : index
    %c1_58 = arith.constant 1 : index
    %c0_59 = arith.constant 0 : index
    %c0_60 = arith.constant 0 : index
    %52 = vector.load %arg3[%c0_57, %c1_58, %c0_59, %c0_60] : memref<2x3x32x32xbf16, #tpu.memory_space<vmem>>, vector<1x1x32x32xbf16>
    %53 = vector.shape_cast %52 : vector<1x1x32x32xbf16> to vector<32x32xbf16>
    %c0_61 = arith.constant 0 : index
    %c2_62 = arith.constant 2 : index
    %c0_63 = arith.constant 0 : index
    %c0_64 = arith.constant 0 : index
    %54 = vector.load %arg3[%c0_61, %c2_62, %c0_63, %c0_64] : memref<2x3x32x32xbf16, #tpu.memory_space<vmem>>, vector<1x1x32x32xbf16>
    %55 = vector.shape_cast %54 : vector<1x1x32x32xbf16> to vector<32x32xbf16>
    %c1_65 = arith.constant 1 : index
    %c0_66 = arith.constant 0 : index
    %c0_67 = arith.constant 0 : index
    %c0_68 = arith.constant 0 : index
    %56 = vector.load %arg3[%c1_65, %c0_66, %c0_67, %c0_68] : memref<2x3x32x32xbf16, #tpu.memory_space<vmem>>, vector<1x1x32x32xbf16>
    %57 = vector.shape_cast %56 : vector<1x1x32x32xbf16> to vector<32x32xbf16>
    %c1_69 = arith.constant 1 : index
    %c1_70 = arith.constant 1 : index
    %c0_71 = arith.constant 0 : index
    %c0_72 = arith.constant 0 : index
    %58 = vector.load %arg3[%c1_69, %c1_70, %c0_71, %c0_72] : memref<2x3x32x32xbf16, #tpu.memory_space<vmem>>, vector<1x1x32x32xbf16>
    %59 = vector.shape_cast %58 : vector<1x1x32x32xbf16> to vector<32x32xbf16>
    %c1_73 = arith.constant 1 : index
    %c2_74 = arith.constant 2 : index
    %c0_75 = arith.constant 0 : index
    %c0_76 = arith.constant 0 : index
    %60 = vector.load %arg3[%c1_73, %c2_74, %c0_75, %c0_76] : memref<2x3x32x32xbf16, #tpu.memory_space<vmem>>, vector<1x1x32x32xbf16>
    %61 = vector.shape_cast %60 : vector<1x1x32x32xbf16> to vector<32x32xbf16>
    %c0_77 = arith.constant 0 : index
    %c0_78 = arith.constant 0 : index
    %c0_79 = arith.constant 0 : index
    %c0_80 = arith.constant 0 : index
    %62 = vector.load %arg5[%c0_77, %c0_78, %c0_79, %c0_80] : memref<2x3x1x32xf32, #tpu.memory_space<vmem>>, vector<1x1x1x32xf32>
    %63 = vector.shape_cast %62 : vector<1x1x1x32xf32> to vector<1x32xf32>
    %c0_81 = arith.constant 0 : index
    %c1_82 = arith.constant 1 : index
    %c0_83 = arith.constant 0 : index
    %c0_84 = arith.constant 0 : index
    %64 = vector.load %arg5[%c0_81, %c1_82, %c0_83, %c0_84] : memref<2x3x1x32xf32, #tpu.memory_space<vmem>>, vector<1x1x1x32xf32>
    %65 = vector.shape_cast %64 : vector<1x1x1x32xf32> to vector<1x32xf32>
    %c0_85 = arith.constant 0 : index
    %c2_86 = arith.constant 2 : index
    %c0_87 = arith.constant 0 : index
    %c0_88 = arith.constant 0 : index
    %66 = vector.load %arg5[%c0_85, %c2_86, %c0_87, %c0_88] : memref<2x3x1x32xf32, #tpu.memory_space<vmem>>, vector<1x1x1x32xf32>
    %67 = vector.shape_cast %66 : vector<1x1x1x32xf32> to vector<1x32xf32>
    %c1_89 = arith.constant 1 : index
    %c0_90 = arith.constant 0 : index
    %c0_91 = arith.constant 0 : index
    %c0_92 = arith.constant 0 : index
    %68 = vector.load %arg5[%c1_89, %c0_90, %c0_91, %c0_92] : memref<2x3x1x32xf32, #tpu.memory_space<vmem>>, vector<1x1x1x32xf32>
    %69 = vector.shape_cast %68 : vector<1x1x1x32xf32> to vector<1x32xf32>
    %c1_93 = arith.constant 1 : index
    %c1_94 = arith.constant 1 : index
    %c0_95 = arith.constant 0 : index
    %c0_96 = arith.constant 0 : index
    %70 = vector.load %arg5[%c1_93, %c1_94, %c0_95, %c0_96] : memref<2x3x1x32xf32, #tpu.memory_space<vmem>>, vector<1x1x1x32xf32>
    %71 = vector.shape_cast %70 : vector<1x1x1x32xf32> to vector<1x32xf32>
    %c1_97 = arith.constant 1 : index
    %c2_98 = arith.constant 2 : index
    %c0_99 = arith.constant 0 : index
    %c0_100 = arith.constant 0 : index
    %72 = vector.load %arg5[%c1_97, %c2_98, %c0_99, %c0_100] : memref<2x3x1x32xf32, #tpu.memory_space<vmem>>, vector<1x1x1x32xf32>
    %73 = vector.shape_cast %72 : vector<1x1x1x32xf32> to vector<1x32xf32>
    %cst_101 = arith.constant 0.000000e+00 : f32
    %74 = vector.broadcast %cst_101 : f32 to vector<2x32xf32>
    %cst_102 = arith.constant 0.000000e+00 : f32
    %75 = vector.broadcast %cst_102 : f32 to vector<2x32xf32>
    %76 = arith.truncf %74 : vector<2x32xf32> to vector<2x32xbf16>
    %cst_103 = arith.constant dense<0.000000e+00> : vector<2x32xf32>
    %77 = tpu.matmul %76, %51, %cst_103 {dimension_numbers = #tpu.dot_dimension_numbers<[1], [0], [0], [1], [0, 0, 1, 1], [], []>} : vector<2x32xbf16>, vector<32x32xbf16>, vector<2x32xf32> -> vector<2x32xf32>
    %78 = vector.broadcast %63 : vector<1x32xf32> to vector<2x32xf32>
    %79 = arith.addf %77, %78 : vector<2x32xf32>
    %cst_104 = arith.constant dense<0.000000e+00> : vector<2x32xf32>
    %80 = tpu.matmul %76, %53, %cst_104 {dimension_numbers = #tpu.dot_dimension_numbers<[1], [0], [0], [1], [0, 0, 1, 1], [], []>} : vector<2x32xbf16>, vector<32x32xbf16>, vector<2x32xf32> -> vector<2x32xf32>
    %81 = vector.broadcast %65 : vector<1x32xf32> to vector<2x32xf32>
    %82 = arith.addf %80, %81 : vector<2x32xf32>
    %cst_105 = arith.constant dense<0.000000e+00> : vector<2x32xf32>
    %83 = tpu.matmul %76, %55, %cst_105 {dimension_numbers = #tpu.dot_dimension_numbers<[1], [0], [0], [1], [0, 0, 1, 1], [], []>} : vector<2x32xbf16>, vector<32x32xbf16>, vector<2x32xf32> -> vector<2x32xf32>
    %84 = vector.broadcast %67 : vector<1x32xf32> to vector<2x32xf32>
    %85 = arith.addf %83, %84 : vector<2x32xf32>
    %86 = arith.truncf %75 : vector<2x32xf32> to vector<2x32xbf16>
    %cst_106 = arith.constant dense<0.000000e+00> : vector<2x32xf32>
    %87 = tpu.matmul %86, %57, %cst_106 {dimension_numbers = #tpu.dot_dimension_numbers<[1], [0], [0], [1], [0, 0, 1, 1], [], []>} : vector<2x32xbf16>, vector<32x32xbf16>, vector<2x32xf32> -> vector<2x32xf32>
    %88 = vector.broadcast %69 : vector<1x32xf32> to vector<2x32xf32>
    %89 = arith.addf %87, %88 : vector<2x32xf32>
    %cst_107 = arith.constant dense<0.000000e+00> : vector<2x32xf32>
    %90 = tpu.matmul %86, %59, %cst_107 {dimension_numbers = #tpu.dot_dimension_numbers<[1], [0], [0], [1], [0, 0, 1, 1], [], []>} : vector<2x32xbf16>, vector<32x32xbf16>, vector<2x32xf32> -> vector<2x32xf32>
    %91 = vector.broadcast %71 : vector<1x32xf32> to vector<2x32xf32>
    %92 = arith.addf %90, %91 : vector<2x32xf32>
    %cst_108 = arith.constant dense<0.000000e+00> : vector<2x32xf32>
    %93 = tpu.matmul %86, %61, %cst_108 {dimension_numbers = #tpu.dot_dimension_numbers<[1], [0], [0], [1], [0, 0, 1, 1], [], []>} : vector<2x32xbf16>, vector<32x32xbf16>, vector<2x32xf32> -> vector<2x32xf32>
    %94 = vector.broadcast %73 : vector<1x32xf32> to vector<2x32xf32>
    %95 = arith.addf %93, %94 : vector<2x32xf32>
    %96 = vector.extract_strided_slice %9 {offsets = [0, 0, 0], sizes = [2, 1, 32], strides = [1, 1, 1]} : vector<2x8x32xf32> to vector<2x1x32xf32>
    %97 = vector.shape_cast %96 : vector<2x1x32xf32> to vector<2x32xf32>
    %98 = arith.addf %97, %79 : vector<2x32xf32>
    %99 = arith.negf %98 : vector<2x32xf32>
    %100 = math.exp %99 : vector<2x32xf32>
    %cst_109 = arith.constant 1.000000e+00 : f32
    %101 = vector.broadcast %cst_109 : f32 to vector<2x32xf32>
    %102 = arith.addf %101, %100 : vector<2x32xf32>
    %103 = arith.divf %101, %102 : vector<2x32xf32>
    %104 = vector.extract_strided_slice %17 {offsets = [0, 0, 0], sizes = [2, 1, 32], strides = [1, 1, 1]} : vector<2x8x32xf32> to vector<2x1x32xf32>
    %105 = vector.shape_cast %104 : vector<2x1x32xf32> to vector<2x32xf32>
    %106 = arith.addf %105, %82 : vector<2x32xf32>
    %107 = arith.negf %106 : vector<2x32xf32>
    %108 = math.exp %107 : vector<2x32xf32>
    %cst_110 = arith.constant 1.000000e+00 : f32
    %109 = vector.broadcast %cst_110 : f32 to vector<2x32xf32>
    %110 = arith.addf %109, %108 : vector<2x32xf32>
    %111 = arith.divf %109, %110 : vector<2x32xf32>
    %112 = vector.extract_strided_slice %25 {offsets = [0, 0, 0], sizes = [2, 1, 32], strides = [1, 1, 1]} : vector<2x8x32xf32> to vector<2x1x32xf32>
    %113 = vector.shape_cast %112 : vector<2x1x32xf32> to vector<2x32xf32>
    %114 = arith.mulf %103, %85 : vector<2x32xf32>
    %115 = arith.addf %113, %114 : vector<2x32xf32>
    %116 = math.tanh %115 : vector<2x32xf32>
    %cst_111 = arith.constant 1.000000e+00 : f32
    %117 = vector.broadcast %cst_111 : f32 to vector<2x32xf32>
    %118 = arith.subf %117, %111 : vector<2x32xf32>
    %119 = arith.mulf %118, %116 : vector<2x32xf32>
    %120 = arith.mulf %111, %74 : vector<2x32xf32>
    %121 = arith.addf %119, %120 : vector<2x32xf32>
    %122 = vector.extract_strided_slice %33 {offsets = [0, 7, 0], sizes = [2, 1, 32], strides = [1, 1, 1]} : vector<2x8x32xf32> to vector<2x1x32xf32>
    %123 = vector.shape_cast %122 : vector<2x1x32xf32> to vector<2x32xf32>
    %124 = arith.addf %123, %89 : vector<2x32xf32>
    %125 = arith.negf %124 : vector<2x32xf32>
    %126 = math.exp %125 : vector<2x32xf32>
    %cst_112 = arith.constant 1.000000e+00 : f32
    %127 = vector.broadcast %cst_112 : f32 to vector<2x32xf32>
    %128 = arith.addf %127, %126 : vector<2x32xf32>
    %129 = arith.divf %127, %128 : vector<2x32xf32>
    %130 = vector.extract_strided_slice %41 {offsets = [0, 7, 0], sizes = [2, 1, 32], strides = [1, 1, 1]} : vector<2x8x32xf32> to vector<2x1x32xf32>
    %131 = vector.shape_cast %130 : vector<2x1x32xf32> to vector<2x32xf32>
    %132 = arith.addf %131, %92 : vector<2x32xf32>
    %133 = arith.negf %132 : vector<2x32xf32>
    %134 = math.exp %133 : vector<2x32xf32>
    %cst_113 = arith.constant 1.000000e+00 : f32
    %135 = vector.broadcast %cst_113 : f32 to vector<2x32xf32>
    %136 = arith.addf %135, %134 : vector<2x32xf32>
    %137 = arith.divf %135, %136 : vector<2x32xf32>
    %138 = vector.extract_strided_slice %49 {offsets = [0, 7, 0], sizes = [2, 1, 32], strides = [1, 1, 1]} : vector<2x8x32xf32> to vector<2x1x32xf32>
    %139 = vector.shape_cast %138 : vector<2x1x32xf32> to vector<2x32xf32>
    %140 = arith.mulf %129, %95 : vector<2x32xf32>
    %141 = arith.addf %139, %140 : vector<2x32xf32>
    %142 = math.tanh %141 : vector<2x32xf32>
    %cst_114 = arith.constant 1.000000e+00 : f32
    %143 = vector.broadcast %cst_114 : f32 to vector<2x32xf32>
    %144 = arith.subf %143, %137 : vector<2x32xf32>
    %145 = arith.mulf %144, %142 : vector<2x32xf32>
    %146 = arith.mulf %137, %75 : vector<2x32xf32>
    %147 = arith.addf %145, %146 : vector<2x32xf32>
    %148 = arith.truncf %121 : vector<2x32xf32> to vector<2x32xbf16>
    %cst_115 = arith.constant dense<0.000000e+00> : vector<2x32xf32>
    %149 = tpu.matmul %148, %51, %cst_115 {dimension_numbers = #tpu.dot_dimension_numbers<[1], [0], [0], [1], [0, 0, 1, 1], [], []>} : vector<2x32xbf16>, vector<32x32xbf16>, vector<2x32xf32> -> vector<2x32xf32>
    %150 = vector.broadcast %63 : vector<1x32xf32> to vector<2x32xf32>
    %151 = arith.addf %149, %150 : vector<2x32xf32>
    %cst_116 = arith.constant dense<0.000000e+00> : vector<2x32xf32>
    %152 = tpu.matmul %148, %53, %cst_116 {dimension_numbers = #tpu.dot_dimension_numbers<[1], [0], [0], [1], [0, 0, 1, 1], [], []>} : vector<2x32xbf16>, vector<32x32xbf16>, vector<2x32xf32> -> vector<2x32xf32>
    %153 = vector.broadcast %65 : vector<1x32xf32> to vector<2x32xf32>
    %154 = arith.addf %152, %153 : vector<2x32xf32>
    %cst_117 = arith.constant dense<0.000000e+00> : vector<2x32xf32>
    %155 = tpu.matmul %148, %55, %cst_117 {dimension_numbers = #tpu.dot_dimension_numbers<[1], [0], [0], [1], [0, 0, 1, 1], [], []>} : vector<2x32xbf16>, vector<32x32xbf16>, vector<2x32xf32> -> vector<2x32xf32>
    %156 = vector.broadcast %67 : vector<1x32xf32> to vector<2x32xf32>
    %157 = arith.addf %155, %156 : vector<2x32xf32>
    %158 = arith.truncf %147 : vector<2x32xf32> to vector<2x32xbf16>
    %cst_118 = arith.constant dense<0.000000e+00> : vector<2x32xf32>
    %159 = tpu.matmul %158, %57, %cst_118 {dimension_numbers = #tpu.dot_dimension_numbers<[1], [0], [0], [1], [0, 0, 1, 1], [], []>} : vector<2x32xbf16>, vector<32x32xbf16>, vector<2x32xf32> -> vector<2x32xf32>
    %160 = vector.broadcast %69 : vector<1x32xf32> to vector<2x32xf32>
    %161 = arith.addf %159, %160 : vector<2x32xf32>
    %cst_119 = arith.constant dense<0.000000e+00> : vector<2x32xf32>
    %162 = tpu.matmul %158, %59, %cst_119 {dimension_numbers = #tpu.dot_dimension_numbers<[1], [0], [0], [1], [0, 0, 1, 1], [], []>} : vector<2x32xbf16>, vector<32x32xbf16>, vector<2x32xf32> -> vector<2x32xf32>
    %163 = vector.broadcast %71 : vector<1x32xf32> to vector<2x32xf32>
    %164 = arith.addf %162, %163 : vector<2x32xf32>
    %cst_120 = arith.constant dense<0.000000e+00> : vector<2x32xf32>
    %165 = tpu.matmul %158, %61, %cst_120 {dimension_numbers = #tpu.dot_dimension_numbers<[1], [0], [0], [1], [0, 0, 1, 1], [], []>} : vector<2x32xbf16>, vector<32x32xbf16>, vector<2x32xf32> -> vector<2x32xf32>
    %166 = vector.broadcast %73 : vector<1x32xf32> to vector<2x32xf32>
    %167 = arith.addf %165, %166 : vector<2x32xf32>
    %168 = vector.extract_strided_slice %9 {offsets = [0, 1, 0], sizes = [2, 1, 32], strides = [1, 1, 1]} : vector<2x8x32xf32> to vector<2x1x32xf32>
    %169 = vector.shape_cast %168 : vector<2x1x32xf32> to vector<2x32xf32>
    %170 = arith.addf %169, %151 : vector<2x32xf32>
    %171 = arith.negf %170 : vector<2x32xf32>
    %172 = math.exp %171 : vector<2x32xf32>
    %cst_121 = arith.constant 1.000000e+00 : f32
    %173 = vector.broadcast %cst_121 : f32 to vector<2x32xf32>
    %174 = arith.addf %173, %172 : vector<2x32xf32>
    %175 = arith.divf %173, %174 : vector<2x32xf32>
    %176 = vector.extract_strided_slice %17 {offsets = [0, 1, 0], sizes = [2, 1, 32], strides = [1, 1, 1]} : vector<2x8x32xf32> to vector<2x1x32xf32>
    %177 = vector.shape_cast %176 : vector<2x1x32xf32> to vector<2x32xf32>
    %178 = arith.addf %177, %154 : vector<2x32xf32>
    %179 = arith.negf %178 : vector<2x32xf32>
    %180 = math.exp %179 : vector<2x32xf32>
    %cst_122 = arith.constant 1.000000e+00 : f32
    %181 = vector.broadcast %cst_122 : f32 to vector<2x32xf32>
    %182 = arith.addf %181, %180 : vector<2x32xf32>
    %183 = arith.divf %181, %182 : vector<2x32xf32>
    %184 = vector.extract_strided_slice %25 {offsets = [0, 1, 0], sizes = [2, 1, 32], strides = [1, 1, 1]} : vector<2x8x32xf32> to vector<2x1x32xf32>
    %185 = vector.shape_cast %184 : vector<2x1x32xf32> to vector<2x32xf32>
    %186 = arith.mulf %175, %157 : vector<2x32xf32>
    %187 = arith.addf %185, %186 : vector<2x32xf32>
    %188 = math.tanh %187 : vector<2x32xf32>
    %cst_123 = arith.constant 1.000000e+00 : f32
    %189 = vector.broadcast %cst_123 : f32 to vector<2x32xf32>
    %190 = arith.subf %189, %183 : vector<2x32xf32>
    %191 = arith.mulf %190, %188 : vector<2x32xf32>
    %192 = arith.mulf %183, %121 : vector<2x32xf32>
    %193 = arith.addf %191, %192 : vector<2x32xf32>
    %194 = vector.extract_strided_slice %33 {offsets = [0, 6, 0], sizes = [2, 1, 32], strides = [1, 1, 1]} : vector<2x8x32xf32> to vector<2x1x32xf32>
    %195 = vector.shape_cast %194 : vector<2x1x32xf32> to vector<2x32xf32>
    %196 = arith.addf %195, %161 : vector<2x32xf32>
    %197 = arith.negf %196 : vector<2x32xf32>
    %198 = math.exp %197 : vector<2x32xf32>
    %cst_124 = arith.constant 1.000000e+00 : f32
    %199 = vector.broadcast %cst_124 : f32 to vector<2x32xf32>
    %200 = arith.addf %199, %198 : vector<2x32xf32>
    %201 = arith.divf %199, %200 : vector<2x32xf32>
    %202 = vector.extract_strided_slice %41 {offsets = [0, 6, 0], sizes = [2, 1, 32], strides = [1, 1, 1]} : vector<2x8x32xf32> to vector<2x1x32xf32>
    %203 = vector.shape_cast %202 : vector<2x1x32xf32> to vector<2x32xf32>
    %204 = arith.addf %203, %164 : vector<2x32xf32>
    %205 = arith.negf %204 : vector<2x32xf32>
    %206 = math.exp %205 : vector<2x32xf32>
    %cst_125 = arith.constant 1.000000e+00 : f32
    %207 = vector.broadcast %cst_125 : f32 to vector<2x32xf32>
    %208 = arith.addf %207, %206 : vector<2x32xf32>
    %209 = arith.divf %207, %208 : vector<2x32xf32>
    %210 = vector.extract_strided_slice %49 {offsets = [0, 6, 0], sizes = [2, 1, 32], strides = [1, 1, 1]} : vector<2x8x32xf32> to vector<2x1x32xf32>
    %211 = vector.shape_cast %210 : vector<2x1x32xf32> to vector<2x32xf32>
    %212 = arith.mulf %201, %167 : vector<2x32xf32>
    %213 = arith.addf %211, %212 : vector<2x32xf32>
    %214 = math.tanh %213 : vector<2x32xf32>
    %cst_126 = arith.constant 1.000000e+00 : f32
    %215 = vector.broadcast %cst_126 : f32 to vector<2x32xf32>
    %216 = arith.subf %215, %209 : vector<2x32xf32>
    %217 = arith.mulf %216, %214 : vector<2x32xf32>
    %218 = arith.mulf %209, %147 : vector<2x32xf32>
    %219 = arith.addf %217, %218 : vector<2x32xf32>
    %220 = arith.truncf %193 : vector<2x32xf32> to vector<2x32xbf16>
    %cst_127 = arith.constant dense<0.000000e+00> : vector<2x32xf32>
    %221 = tpu.matmul %220, %51, %cst_127 {dimension_numbers = #tpu.dot_dimension_numbers<[1], [0], [0], [1], [0, 0, 1, 1], [], []>} : vector<2x32xbf16>, vector<32x32xbf16>, vector<2x32xf32> -> vector<2x32xf32>
    %222 = vector.broadcast %63 : vector<1x32xf32> to vector<2x32xf32>
    %223 = arith.addf %221, %222 : vector<2x32xf32>
    %cst_128 = arith.constant dense<0.000000e+00> : vector<2x32xf32>
    %224 = tpu.matmul %220, %53, %cst_128 {dimension_numbers = #tpu.dot_dimension_numbers<[1], [0], [0], [1], [0, 0, 1, 1], [], []>} : vector<2x32xbf16>, vector<32x32xbf16>, vector<2x32xf32> -> vector<2x32xf32>
    %225 = vector.broadcast %65 : vector<1x32xf32> to vector<2x32xf32>
    %226 = arith.addf %224, %225 : vector<2x32xf32>
    %cst_129 = arith.constant dense<0.000000e+00> : vector<2x32xf32>
    %227 = tpu.matmul %220, %55, %cst_129 {dimension_numbers = #tpu.dot_dimension_numbers<[1], [0], [0], [1], [0, 0, 1, 1], [], []>} : vector<2x32xbf16>, vector<32x32xbf16>, vector<2x32xf32> -> vector<2x32xf32>
    %228 = vector.broadcast %67 : vector<1x32xf32> to vector<2x32xf32>
    %229 = arith.addf %227, %228 : vector<2x32xf32>
    %230 = arith.truncf %219 : vector<2x32xf32> to vector<2x32xbf16>
    %cst_130 = arith.constant dense<0.000000e+00> : vector<2x32xf32>
    %231 = tpu.matmul %230, %57, %cst_130 {dimension_numbers = #tpu.dot_dimension_numbers<[1], [0], [0], [1], [0, 0, 1, 1], [], []>} : vector<2x32xbf16>, vector<32x32xbf16>, vector<2x32xf32> -> vector<2x32xf32>
    %232 = vector.broadcast %69 : vector<1x32xf32> to vector<2x32xf32>
    %233 = arith.addf %231, %232 : vector<2x32xf32>
    %cst_131 = arith.constant dense<0.000000e+00> : vector<2x32xf32>
    %234 = tpu.matmul %230, %59, %cst_131 {dimension_numbers = #tpu.dot_dimension_numbers<[1], [0], [0], [1], [0, 0, 1, 1], [], []>} : vector<2x32xbf16>, vector<32x32xbf16>, vector<2x32xf32> -> vector<2x32xf32>
    %235 = vector.broadcast %71 : vector<1x32xf32> to vector<2x32xf32>
    %236 = arith.addf %234, %235 : vector<2x32xf32>
    %cst_132 = arith.constant dense<0.000000e+00> : vector<2x32xf32>
    %237 = tpu.matmul %230, %61, %cst_132 {dimension_numbers = #tpu.dot_dimension_numbers<[1], [0], [0], [1], [0, 0, 1, 1], [], []>} : vector<2x32xbf16>, vector<32x32xbf16>, vector<2x32xf32> -> vector<2x32xf32>
    %238 = vector.broadcast %73 : vector<1x32xf32> to vector<2x32xf32>
    %239 = arith.addf %237, %238 : vector<2x32xf32>
    %240 = vector.extract_strided_slice %9 {offsets = [0, 2, 0], sizes = [2, 1, 32], strides = [1, 1, 1]} : vector<2x8x32xf32> to vector<2x1x32xf32>
    %241 = vector.shape_cast %240 : vector<2x1x32xf32> to vector<2x32xf32>
    %242 = arith.addf %241, %223 : vector<2x32xf32>
    %243 = arith.negf %242 : vector<2x32xf32>
    %244 = math.exp %243 : vector<2x32xf32>
    %cst_133 = arith.constant 1.000000e+00 : f32
    %245 = vector.broadcast %cst_133 : f32 to vector<2x32xf32>
    %246 = arith.addf %245, %244 : vector<2x32xf32>
    %247 = arith.divf %245, %246 : vector<2x32xf32>
    %248 = vector.extract_strided_slice %17 {offsets = [0, 2, 0], sizes = [2, 1, 32], strides = [1, 1, 1]} : vector<2x8x32xf32> to vector<2x1x32xf32>
    %249 = vector.shape_cast %248 : vector<2x1x32xf32> to vector<2x32xf32>
    %250 = arith.addf %249, %226 : vector<2x32xf32>
    %251 = arith.negf %250 : vector<2x32xf32>
    %252 = math.exp %251 : vector<2x32xf32>
    %cst_134 = arith.constant 1.000000e+00 : f32
    %253 = vector.broadcast %cst_134 : f32 to vector<2x32xf32>
    %254 = arith.addf %253, %252 : vector<2x32xf32>
    %255 = arith.divf %253, %254 : vector<2x32xf32>
    %256 = vector.extract_strided_slice %25 {offsets = [0, 2, 0], sizes = [2, 1, 32], strides = [1, 1, 1]} : vector<2x8x32xf32> to vector<2x1x32xf32>
    %257 = vector.shape_cast %256 : vector<2x1x32xf32> to vector<2x32xf32>
    %258 = arith.mulf %247, %229 : vector<2x32xf32>
    %259 = arith.addf %257, %258 : vector<2x32xf32>
    %260 = math.tanh %259 : vector<2x32xf32>
    %cst_135 = arith.constant 1.000000e+00 : f32
    %261 = vector.broadcast %cst_135 : f32 to vector<2x32xf32>
    %262 = arith.subf %261, %255 : vector<2x32xf32>
    %263 = arith.mulf %262, %260 : vector<2x32xf32>
    %264 = arith.mulf %255, %193 : vector<2x32xf32>
    %265 = arith.addf %263, %264 : vector<2x32xf32>
    %266 = vector.extract_strided_slice %33 {offsets = [0, 5, 0], sizes = [2, 1, 32], strides = [1, 1, 1]} : vector<2x8x32xf32> to vector<2x1x32xf32>
    %267 = vector.shape_cast %266 : vector<2x1x32xf32> to vector<2x32xf32>
    %268 = arith.addf %267, %233 : vector<2x32xf32>
    %269 = arith.negf %268 : vector<2x32xf32>
    %270 = math.exp %269 : vector<2x32xf32>
    %cst_136 = arith.constant 1.000000e+00 : f32
    %271 = vector.broadcast %cst_136 : f32 to vector<2x32xf32>
    %272 = arith.addf %271, %270 : vector<2x32xf32>
    %273 = arith.divf %271, %272 : vector<2x32xf32>
    %274 = vector.extract_strided_slice %41 {offsets = [0, 5, 0], sizes = [2, 1, 32], strides = [1, 1, 1]} : vector<2x8x32xf32> to vector<2x1x32xf32>
    %275 = vector.shape_cast %274 : vector<2x1x32xf32> to vector<2x32xf32>
    %276 = arith.addf %275, %236 : vector<2x32xf32>
    %277 = arith.negf %276 : vector<2x32xf32>
    %278 = math.exp %277 : vector<2x32xf32>
    %cst_137 = arith.constant 1.000000e+00 : f32
    %279 = vector.broadcast %cst_137 : f32 to vector<2x32xf32>
    %280 = arith.addf %279, %278 : vector<2x32xf32>
    %281 = arith.divf %279, %280 : vector<2x32xf32>
    %282 = vector.extract_strided_slice %49 {offsets = [0, 5, 0], sizes = [2, 1, 32], strides = [1, 1, 1]} : vector<2x8x32xf32> to vector<2x1x32xf32>
    %283 = vector.shape_cast %282 : vector<2x1x32xf32> to vector<2x32xf32>
    %284 = arith.mulf %273, %239 : vector<2x32xf32>
    %285 = arith.addf %283, %284 : vector<2x32xf32>
    %286 = math.tanh %285 : vector<2x32xf32>
    %cst_138 = arith.constant 1.000000e+00 : f32
    %287 = vector.broadcast %cst_138 : f32 to vector<2x32xf32>
    %288 = arith.subf %287, %281 : vector<2x32xf32>
    %289 = arith.mulf %288, %286 : vector<2x32xf32>
    %290 = arith.mulf %281, %219 : vector<2x32xf32>
    %291 = arith.addf %289, %290 : vector<2x32xf32>
    %292 = arith.truncf %265 : vector<2x32xf32> to vector<2x32xbf16>
    %cst_139 = arith.constant dense<0.000000e+00> : vector<2x32xf32>
    %293 = tpu.matmul %292, %51, %cst_139 {dimension_numbers = #tpu.dot_dimension_numbers<[1], [0], [0], [1], [0, 0, 1, 1], [], []>} : vector<2x32xbf16>, vector<32x32xbf16>, vector<2x32xf32> -> vector<2x32xf32>
    %294 = vector.broadcast %63 : vector<1x32xf32> to vector<2x32xf32>
    %295 = arith.addf %293, %294 : vector<2x32xf32>
    %cst_140 = arith.constant dense<0.000000e+00> : vector<2x32xf32>
    %296 = tpu.matmul %292, %53, %cst_140 {dimension_numbers = #tpu.dot_dimension_numbers<[1], [0], [0], [1], [0, 0, 1, 1], [], []>} : vector<2x32xbf16>, vector<32x32xbf16>, vector<2x32xf32> -> vector<2x32xf32>
    %297 = vector.broadcast %65 : vector<1x32xf32> to vector<2x32xf32>
    %298 = arith.addf %296, %297 : vector<2x32xf32>
    %cst_141 = arith.constant dense<0.000000e+00> : vector<2x32xf32>
    %299 = tpu.matmul %292, %55, %cst_141 {dimension_numbers = #tpu.dot_dimension_numbers<[1], [0], [0], [1], [0, 0, 1, 1], [], []>} : vector<2x32xbf16>, vector<32x32xbf16>, vector<2x32xf32> -> vector<2x32xf32>
    %300 = vector.broadcast %67 : vector<1x32xf32> to vector<2x32xf32>
    %301 = arith.addf %299, %300 : vector<2x32xf32>
    %302 = arith.truncf %291 : vector<2x32xf32> to vector<2x32xbf16>
    %cst_142 = arith.constant dense<0.000000e+00> : vector<2x32xf32>
    %303 = tpu.matmul %302, %57, %cst_142 {dimension_numbers = #tpu.dot_dimension_numbers<[1], [0], [0], [1], [0, 0, 1, 1], [], []>} : vector<2x32xbf16>, vector<32x32xbf16>, vector<2x32xf32> -> vector<2x32xf32>
    %304 = vector.broadcast %69 : vector<1x32xf32> to vector<2x32xf32>
    %305 = arith.addf %303, %304 : vector<2x32xf32>
    %cst_143 = arith.constant dense<0.000000e+00> : vector<2x32xf32>
    %306 = tpu.matmul %302, %59, %cst_143 {dimension_numbers = #tpu.dot_dimension_numbers<[1], [0], [0], [1], [0, 0, 1, 1], [], []>} : vector<2x32xbf16>, vector<32x32xbf16>, vector<2x32xf32> -> vector<2x32xf32>
    %307 = vector.broadcast %71 : vector<1x32xf32> to vector<2x32xf32>
    %308 = arith.addf %306, %307 : vector<2x32xf32>
    %cst_144 = arith.constant dense<0.000000e+00> : vector<2x32xf32>
    %309 = tpu.matmul %302, %61, %cst_144 {dimension_numbers = #tpu.dot_dimension_numbers<[1], [0], [0], [1], [0, 0, 1, 1], [], []>} : vector<2x32xbf16>, vector<32x32xbf16>, vector<2x32xf32> -> vector<2x32xf32>
    %310 = vector.broadcast %73 : vector<1x32xf32> to vector<2x32xf32>
    %311 = arith.addf %309, %310 : vector<2x32xf32>
    %312 = vector.extract_strided_slice %9 {offsets = [0, 3, 0], sizes = [2, 1, 32], strides = [1, 1, 1]} : vector<2x8x32xf32> to vector<2x1x32xf32>
    %313 = vector.shape_cast %312 : vector<2x1x32xf32> to vector<2x32xf32>
    %314 = arith.addf %313, %295 : vector<2x32xf32>
    %315 = arith.negf %314 : vector<2x32xf32>
    %316 = math.exp %315 : vector<2x32xf32>
    %cst_145 = arith.constant 1.000000e+00 : f32
    %317 = vector.broadcast %cst_145 : f32 to vector<2x32xf32>
    %318 = arith.addf %317, %316 : vector<2x32xf32>
    %319 = arith.divf %317, %318 : vector<2x32xf32>
    %320 = vector.extract_strided_slice %17 {offsets = [0, 3, 0], sizes = [2, 1, 32], strides = [1, 1, 1]} : vector<2x8x32xf32> to vector<2x1x32xf32>
    %321 = vector.shape_cast %320 : vector<2x1x32xf32> to vector<2x32xf32>
    %322 = arith.addf %321, %298 : vector<2x32xf32>
    %323 = arith.negf %322 : vector<2x32xf32>
    %324 = math.exp %323 : vector<2x32xf32>
    %cst_146 = arith.constant 1.000000e+00 : f32
    %325 = vector.broadcast %cst_146 : f32 to vector<2x32xf32>
    %326 = arith.addf %325, %324 : vector<2x32xf32>
    %327 = arith.divf %325, %326 : vector<2x32xf32>
    %328 = vector.extract_strided_slice %25 {offsets = [0, 3, 0], sizes = [2, 1, 32], strides = [1, 1, 1]} : vector<2x8x32xf32> to vector<2x1x32xf32>
    %329 = vector.shape_cast %328 : vector<2x1x32xf32> to vector<2x32xf32>
    %330 = arith.mulf %319, %301 : vector<2x32xf32>
    %331 = arith.addf %329, %330 : vector<2x32xf32>
    %332 = math.tanh %331 : vector<2x32xf32>
    %cst_147 = arith.constant 1.000000e+00 : f32
    %333 = vector.broadcast %cst_147 : f32 to vector<2x32xf32>
    %334 = arith.subf %333, %327 : vector<2x32xf32>
    %335 = arith.mulf %334, %332 : vector<2x32xf32>
    %336 = arith.mulf %327, %265 : vector<2x32xf32>
    %337 = arith.addf %335, %336 : vector<2x32xf32>
    %338 = vector.extract_strided_slice %33 {offsets = [0, 4, 0], sizes = [2, 1, 32], strides = [1, 1, 1]} : vector<2x8x32xf32> to vector<2x1x32xf32>
    %339 = vector.shape_cast %338 : vector<2x1x32xf32> to vector<2x32xf32>
    %340 = arith.addf %339, %305 : vector<2x32xf32>
    %341 = arith.negf %340 : vector<2x32xf32>
    %342 = math.exp %341 : vector<2x32xf32>
    %cst_148 = arith.constant 1.000000e+00 : f32
    %343 = vector.broadcast %cst_148 : f32 to vector<2x32xf32>
    %344 = arith.addf %343, %342 : vector<2x32xf32>
    %345 = arith.divf %343, %344 : vector<2x32xf32>
    %346 = vector.extract_strided_slice %41 {offsets = [0, 4, 0], sizes = [2, 1, 32], strides = [1, 1, 1]} : vector<2x8x32xf32> to vector<2x1x32xf32>
    %347 = vector.shape_cast %346 : vector<2x1x32xf32> to vector<2x32xf32>
    %348 = arith.addf %347, %308 : vector<2x32xf32>
    %349 = arith.negf %348 : vector<2x32xf32>
    %350 = math.exp %349 : vector<2x32xf32>
    %cst_149 = arith.constant 1.000000e+00 : f32
    %351 = vector.broadcast %cst_149 : f32 to vector<2x32xf32>
    %352 = arith.addf %351, %350 : vector<2x32xf32>
    %353 = arith.divf %351, %352 : vector<2x32xf32>
    %354 = vector.extract_strided_slice %49 {offsets = [0, 4, 0], sizes = [2, 1, 32], strides = [1, 1, 1]} : vector<2x8x32xf32> to vector<2x1x32xf32>
    %355 = vector.shape_cast %354 : vector<2x1x32xf32> to vector<2x32xf32>
    %356 = arith.mulf %345, %311 : vector<2x32xf32>
    %357 = arith.addf %355, %356 : vector<2x32xf32>
    %358 = math.tanh %357 : vector<2x32xf32>
    %cst_150 = arith.constant 1.000000e+00 : f32
    %359 = vector.broadcast %cst_150 : f32 to vector<2x32xf32>
    %360 = arith.subf %359, %353 : vector<2x32xf32>
    %361 = arith.mulf %360, %358 : vector<2x32xf32>
    %362 = arith.mulf %353, %291 : vector<2x32xf32>
    %363 = arith.addf %361, %362 : vector<2x32xf32>
    %364 = arith.truncf %337 : vector<2x32xf32> to vector<2x32xbf16>
    %cst_151 = arith.constant dense<0.000000e+00> : vector<2x32xf32>
    %365 = tpu.matmul %364, %51, %cst_151 {dimension_numbers = #tpu.dot_dimension_numbers<[1], [0], [0], [1], [0, 0, 1, 1], [], []>} : vector<2x32xbf16>, vector<32x32xbf16>, vector<2x32xf32> -> vector<2x32xf32>
    %366 = vector.broadcast %63 : vector<1x32xf32> to vector<2x32xf32>
    %367 = arith.addf %365, %366 : vector<2x32xf32>
    %cst_152 = arith.constant dense<0.000000e+00> : vector<2x32xf32>
    %368 = tpu.matmul %364, %53, %cst_152 {dimension_numbers = #tpu.dot_dimension_numbers<[1], [0], [0], [1], [0, 0, 1, 1], [], []>} : vector<2x32xbf16>, vector<32x32xbf16>, vector<2x32xf32> -> vector<2x32xf32>
    %369 = vector.broadcast %65 : vector<1x32xf32> to vector<2x32xf32>
    %370 = arith.addf %368, %369 : vector<2x32xf32>
    %cst_153 = arith.constant dense<0.000000e+00> : vector<2x32xf32>
    %371 = tpu.matmul %364, %55, %cst_153 {dimension_numbers = #tpu.dot_dimension_numbers<[1], [0], [0], [1], [0, 0, 1, 1], [], []>} : vector<2x32xbf16>, vector<32x32xbf16>, vector<2x32xf32> -> vector<2x32xf32>
    %372 = vector.broadcast %67 : vector<1x32xf32> to vector<2x32xf32>
    %373 = arith.addf %371, %372 : vector<2x32xf32>
    %374 = arith.truncf %363 : vector<2x32xf32> to vector<2x32xbf16>
    %cst_154 = arith.constant dense<0.000000e+00> : vector<2x32xf32>
    %375 = tpu.matmul %374, %57, %cst_154 {dimension_numbers = #tpu.dot_dimension_numbers<[1], [0], [0], [1], [0, 0, 1, 1], [], []>} : vector<2x32xbf16>, vector<32x32xbf16>, vector<2x32xf32> -> vector<2x32xf32>
    %376 = vector.broadcast %69 : vector<1x32xf32> to vector<2x32xf32>
    %377 = arith.addf %375, %376 : vector<2x32xf32>
    %cst_155 = arith.constant dense<0.000000e+00> : vector<2x32xf32>
    %378 = tpu.matmul %374, %59, %cst_155 {dimension_numbers = #tpu.dot_dimension_numbers<[1], [0], [0], [1], [0, 0, 1, 1], [], []>} : vector<2x32xbf16>, vector<32x32xbf16>, vector<2x32xf32> -> vector<2x32xf32>
    %379 = vector.broadcast %71 : vector<1x32xf32> to vector<2x32xf32>
    %380 = arith.addf %378, %379 : vector<2x32xf32>
    %cst_156 = arith.constant dense<0.000000e+00> : vector<2x32xf32>
    %381 = tpu.matmul %374, %61, %cst_156 {dimension_numbers = #tpu.dot_dimension_numbers<[1], [0], [0], [1], [0, 0, 1, 1], [], []>} : vector<2x32xbf16>, vector<32x32xbf16>, vector<2x32xf32> -> vector<2x32xf32>
    %382 = vector.broadcast %73 : vector<1x32xf32> to vector<2x32xf32>
    %383 = arith.addf %381, %382 : vector<2x32xf32>
    %384 = vector.extract_strided_slice %9 {offsets = [0, 4, 0], sizes = [2, 1, 32], strides = [1, 1, 1]} : vector<2x8x32xf32> to vector<2x1x32xf32>
    %385 = vector.shape_cast %384 : vector<2x1x32xf32> to vector<2x32xf32>
    %386 = arith.addf %385, %367 : vector<2x32xf32>
    %387 = arith.negf %386 : vector<2x32xf32>
    %388 = math.exp %387 : vector<2x32xf32>
    %cst_157 = arith.constant 1.000000e+00 : f32
    %389 = vector.broadcast %cst_157 : f32 to vector<2x32xf32>
    %390 = arith.addf %389, %388 : vector<2x32xf32>
    %391 = arith.divf %389, %390 : vector<2x32xf32>
    %392 = vector.extract_strided_slice %17 {offsets = [0, 4, 0], sizes = [2, 1, 32], strides = [1, 1, 1]} : vector<2x8x32xf32> to vector<2x1x32xf32>
    %393 = vector.shape_cast %392 : vector<2x1x32xf32> to vector<2x32xf32>
    %394 = arith.addf %393, %370 : vector<2x32xf32>
    %395 = arith.negf %394 : vector<2x32xf32>
    %396 = math.exp %395 : vector<2x32xf32>
    %cst_158 = arith.constant 1.000000e+00 : f32
    %397 = vector.broadcast %cst_158 : f32 to vector<2x32xf32>
    %398 = arith.addf %397, %396 : vector<2x32xf32>
    %399 = arith.divf %397, %398 : vector<2x32xf32>
    %400 = vector.extract_strided_slice %25 {offsets = [0, 4, 0], sizes = [2, 1, 32], strides = [1, 1, 1]} : vector<2x8x32xf32> to vector<2x1x32xf32>
    %401 = vector.shape_cast %400 : vector<2x1x32xf32> to vector<2x32xf32>
    %402 = arith.mulf %391, %373 : vector<2x32xf32>
    %403 = arith.addf %401, %402 : vector<2x32xf32>
    %404 = math.tanh %403 : vector<2x32xf32>
    %cst_159 = arith.constant 1.000000e+00 : f32
    %405 = vector.broadcast %cst_159 : f32 to vector<2x32xf32>
    %406 = arith.subf %405, %399 : vector<2x32xf32>
    %407 = arith.mulf %406, %404 : vector<2x32xf32>
    %408 = arith.mulf %399, %337 : vector<2x32xf32>
    %409 = arith.addf %407, %408 : vector<2x32xf32>
    %410 = vector.extract_strided_slice %33 {offsets = [0, 3, 0], sizes = [2, 1, 32], strides = [1, 1, 1]} : vector<2x8x32xf32> to vector<2x1x32xf32>
    %411 = vector.shape_cast %410 : vector<2x1x32xf32> to vector<2x32xf32>
    %412 = arith.addf %411, %377 : vector<2x32xf32>
    %413 = arith.negf %412 : vector<2x32xf32>
    %414 = math.exp %413 : vector<2x32xf32>
    %cst_160 = arith.constant 1.000000e+00 : f32
    %415 = vector.broadcast %cst_160 : f32 to vector<2x32xf32>
    %416 = arith.addf %415, %414 : vector<2x32xf32>
    %417 = arith.divf %415, %416 : vector<2x32xf32>
    %418 = vector.extract_strided_slice %41 {offsets = [0, 3, 0], sizes = [2, 1, 32], strides = [1, 1, 1]} : vector<2x8x32xf32> to vector<2x1x32xf32>
    %419 = vector.shape_cast %418 : vector<2x1x32xf32> to vector<2x32xf32>
    %420 = arith.addf %419, %380 : vector<2x32xf32>
    %421 = arith.negf %420 : vector<2x32xf32>
    %422 = math.exp %421 : vector<2x32xf32>
    %cst_161 = arith.constant 1.000000e+00 : f32
    %423 = vector.broadcast %cst_161 : f32 to vector<2x32xf32>
    %424 = arith.addf %423, %422 : vector<2x32xf32>
    %425 = arith.divf %423, %424 : vector<2x32xf32>
    %426 = vector.extract_strided_slice %49 {offsets = [0, 3, 0], sizes = [2, 1, 32], strides = [1, 1, 1]} : vector<2x8x32xf32> to vector<2x1x32xf32>
    %427 = vector.shape_cast %426 : vector<2x1x32xf32> to vector<2x32xf32>
    %428 = arith.mulf %417, %383 : vector<2x32xf32>
    %429 = arith.addf %427, %428 : vector<2x32xf32>
    %430 = math.tanh %429 : vector<2x32xf32>
    %cst_162 = arith.constant 1.000000e+00 : f32
    %431 = vector.broadcast %cst_162 : f32 to vector<2x32xf32>
    %432 = arith.subf %431, %425 : vector<2x32xf32>
    %433 = arith.mulf %432, %430 : vector<2x32xf32>
    %434 = arith.mulf %425, %363 : vector<2x32xf32>
    %435 = arith.addf %433, %434 : vector<2x32xf32>
    %436 = arith.truncf %409 : vector<2x32xf32> to vector<2x32xbf16>
    %cst_163 = arith.constant dense<0.000000e+00> : vector<2x32xf32>
    %437 = tpu.matmul %436, %51, %cst_163 {dimension_numbers = #tpu.dot_dimension_numbers<[1], [0], [0], [1], [0, 0, 1, 1], [], []>} : vector<2x32xbf16>, vector<32x32xbf16>, vector<2x32xf32> -> vector<2x32xf32>
    %438 = vector.broadcast %63 : vector<1x32xf32> to vector<2x32xf32>
    %439 = arith.addf %437, %438 : vector<2x32xf32>
    %cst_164 = arith.constant dense<0.000000e+00> : vector<2x32xf32>
    %440 = tpu.matmul %436, %53, %cst_164 {dimension_numbers = #tpu.dot_dimension_numbers<[1], [0], [0], [1], [0, 0, 1, 1], [], []>} : vector<2x32xbf16>, vector<32x32xbf16>, vector<2x32xf32> -> vector<2x32xf32>
    %441 = vector.broadcast %65 : vector<1x32xf32> to vector<2x32xf32>
    %442 = arith.addf %440, %441 : vector<2x32xf32>
    %cst_165 = arith.constant dense<0.000000e+00> : vector<2x32xf32>
    %443 = tpu.matmul %436, %55, %cst_165 {dimension_numbers = #tpu.dot_dimension_numbers<[1], [0], [0], [1], [0, 0, 1, 1], [], []>} : vector<2x32xbf16>, vector<32x32xbf16>, vector<2x32xf32> -> vector<2x32xf32>
    %444 = vector.broadcast %67 : vector<1x32xf32> to vector<2x32xf32>
    %445 = arith.addf %443, %444 : vector<2x32xf32>
    %446 = arith.truncf %435 : vector<2x32xf32> to vector<2x32xbf16>
    %cst_166 = arith.constant dense<0.000000e+00> : vector<2x32xf32>
    %447 = tpu.matmul %446, %57, %cst_166 {dimension_numbers = #tpu.dot_dimension_numbers<[1], [0], [0], [1], [0, 0, 1, 1], [], []>} : vector<2x32xbf16>, vector<32x32xbf16>, vector<2x32xf32> -> vector<2x32xf32>
    %448 = vector.broadcast %69 : vector<1x32xf32> to vector<2x32xf32>
    %449 = arith.addf %447, %448 : vector<2x32xf32>
    %cst_167 = arith.constant dense<0.000000e+00> : vector<2x32xf32>
    %450 = tpu.matmul %446, %59, %cst_167 {dimension_numbers = #tpu.dot_dimension_numbers<[1], [0], [0], [1], [0, 0, 1, 1], [], []>} : vector<2x32xbf16>, vector<32x32xbf16>, vector<2x32xf32> -> vector<2x32xf32>
    %451 = vector.broadcast %71 : vector<1x32xf32> to vector<2x32xf32>
    %452 = arith.addf %450, %451 : vector<2x32xf32>
    %cst_168 = arith.constant dense<0.000000e+00> : vector<2x32xf32>
    %453 = tpu.matmul %446, %61, %cst_168 {dimension_numbers = #tpu.dot_dimension_numbers<[1], [0], [0], [1], [0, 0, 1, 1], [], []>} : vector<2x32xbf16>, vector<32x32xbf16>, vector<2x32xf32> -> vector<2x32xf32>
    %454 = vector.broadcast %73 : vector<1x32xf32> to vector<2x32xf32>
    %455 = arith.addf %453, %454 : vector<2x32xf32>
    %456 = vector.extract_strided_slice %9 {offsets = [0, 5, 0], sizes = [2, 1, 32], strides = [1, 1, 1]} : vector<2x8x32xf32> to vector<2x1x32xf32>
    %457 = vector.shape_cast %456 : vector<2x1x32xf32> to vector<2x32xf32>
    %458 = arith.addf %457, %439 : vector<2x32xf32>
    %459 = arith.negf %458 : vector<2x32xf32>
    %460 = math.exp %459 : vector<2x32xf32>
    %cst_169 = arith.constant 1.000000e+00 : f32
    %461 = vector.broadcast %cst_169 : f32 to vector<2x32xf32>
    %462 = arith.addf %461, %460 : vector<2x32xf32>
    %463 = arith.divf %461, %462 : vector<2x32xf32>
    %464 = vector.extract_strided_slice %17 {offsets = [0, 5, 0], sizes = [2, 1, 32], strides = [1, 1, 1]} : vector<2x8x32xf32> to vector<2x1x32xf32>
    %465 = vector.shape_cast %464 : vector<2x1x32xf32> to vector<2x32xf32>
    %466 = arith.addf %465, %442 : vector<2x32xf32>
    %467 = arith.negf %466 : vector<2x32xf32>
    %468 = math.exp %467 : vector<2x32xf32>
    %cst_170 = arith.constant 1.000000e+00 : f32
    %469 = vector.broadcast %cst_170 : f32 to vector<2x32xf32>
    %470 = arith.addf %469, %468 : vector<2x32xf32>
    %471 = arith.divf %469, %470 : vector<2x32xf32>
    %472 = vector.extract_strided_slice %25 {offsets = [0, 5, 0], sizes = [2, 1, 32], strides = [1, 1, 1]} : vector<2x8x32xf32> to vector<2x1x32xf32>
    %473 = vector.shape_cast %472 : vector<2x1x32xf32> to vector<2x32xf32>
    %474 = arith.mulf %463, %445 : vector<2x32xf32>
    %475 = arith.addf %473, %474 : vector<2x32xf32>
    %476 = math.tanh %475 : vector<2x32xf32>
    %cst_171 = arith.constant 1.000000e+00 : f32
    %477 = vector.broadcast %cst_171 : f32 to vector<2x32xf32>
    %478 = arith.subf %477, %471 : vector<2x32xf32>
    %479 = arith.mulf %478, %476 : vector<2x32xf32>
    %480 = arith.mulf %471, %409 : vector<2x32xf32>
    %481 = arith.addf %479, %480 : vector<2x32xf32>
    %482 = vector.extract_strided_slice %33 {offsets = [0, 2, 0], sizes = [2, 1, 32], strides = [1, 1, 1]} : vector<2x8x32xf32> to vector<2x1x32xf32>
    %483 = vector.shape_cast %482 : vector<2x1x32xf32> to vector<2x32xf32>
    %484 = arith.addf %483, %449 : vector<2x32xf32>
    %485 = arith.negf %484 : vector<2x32xf32>
    %486 = math.exp %485 : vector<2x32xf32>
    %cst_172 = arith.constant 1.000000e+00 : f32
    %487 = vector.broadcast %cst_172 : f32 to vector<2x32xf32>
    %488 = arith.addf %487, %486 : vector<2x32xf32>
    %489 = arith.divf %487, %488 : vector<2x32xf32>
    %490 = vector.extract_strided_slice %41 {offsets = [0, 2, 0], sizes = [2, 1, 32], strides = [1, 1, 1]} : vector<2x8x32xf32> to vector<2x1x32xf32>
    %491 = vector.shape_cast %490 : vector<2x1x32xf32> to vector<2x32xf32>
    %492 = arith.addf %491, %452 : vector<2x32xf32>
    %493 = arith.negf %492 : vector<2x32xf32>
    %494 = math.exp %493 : vector<2x32xf32>
    %cst_173 = arith.constant 1.000000e+00 : f32
    %495 = vector.broadcast %cst_173 : f32 to vector<2x32xf32>
    %496 = arith.addf %495, %494 : vector<2x32xf32>
    %497 = arith.divf %495, %496 : vector<2x32xf32>
    %498 = vector.extract_strided_slice %49 {offsets = [0, 2, 0], sizes = [2, 1, 32], strides = [1, 1, 1]} : vector<2x8x32xf32> to vector<2x1x32xf32>
    %499 = vector.shape_cast %498 : vector<2x1x32xf32> to vector<2x32xf32>
    %500 = arith.mulf %489, %455 : vector<2x32xf32>
    %501 = arith.addf %499, %500 : vector<2x32xf32>
    %502 = math.tanh %501 : vector<2x32xf32>
    %cst_174 = arith.constant 1.000000e+00 : f32
    %503 = vector.broadcast %cst_174 : f32 to vector<2x32xf32>
    %504 = arith.subf %503, %497 : vector<2x32xf32>
    %505 = arith.mulf %504, %502 : vector<2x32xf32>
    %506 = arith.mulf %497, %435 : vector<2x32xf32>
    %507 = arith.addf %505, %506 : vector<2x32xf32>
    %508 = arith.truncf %481 : vector<2x32xf32> to vector<2x32xbf16>
    %cst_175 = arith.constant dense<0.000000e+00> : vector<2x32xf32>
    %509 = tpu.matmul %508, %51, %cst_175 {dimension_numbers = #tpu.dot_dimension_numbers<[1], [0], [0], [1], [0, 0, 1, 1], [], []>} : vector<2x32xbf16>, vector<32x32xbf16>, vector<2x32xf32> -> vector<2x32xf32>
    %510 = vector.broadcast %63 : vector<1x32xf32> to vector<2x32xf32>
    %511 = arith.addf %509, %510 : vector<2x32xf32>
    %cst_176 = arith.constant dense<0.000000e+00> : vector<2x32xf32>
    %512 = tpu.matmul %508, %53, %cst_176 {dimension_numbers = #tpu.dot_dimension_numbers<[1], [0], [0], [1], [0, 0, 1, 1], [], []>} : vector<2x32xbf16>, vector<32x32xbf16>, vector<2x32xf32> -> vector<2x32xf32>
    %513 = vector.broadcast %65 : vector<1x32xf32> to vector<2x32xf32>
    %514 = arith.addf %512, %513 : vector<2x32xf32>
    %cst_177 = arith.constant dense<0.000000e+00> : vector<2x32xf32>
    %515 = tpu.matmul %508, %55, %cst_177 {dimension_numbers = #tpu.dot_dimension_numbers<[1], [0], [0], [1], [0, 0, 1, 1], [], []>} : vector<2x32xbf16>, vector<32x32xbf16>, vector<2x32xf32> -> vector<2x32xf32>
    %516 = vector.broadcast %67 : vector<1x32xf32> to vector<2x32xf32>
    %517 = arith.addf %515, %516 : vector<2x32xf32>
    %518 = arith.truncf %507 : vector<2x32xf32> to vector<2x32xbf16>
    %cst_178 = arith.constant dense<0.000000e+00> : vector<2x32xf32>
    %519 = tpu.matmul %518, %57, %cst_178 {dimension_numbers = #tpu.dot_dimension_numbers<[1], [0], [0], [1], [0, 0, 1, 1], [], []>} : vector<2x32xbf16>, vector<32x32xbf16>, vector<2x32xf32> -> vector<2x32xf32>
    %520 = vector.broadcast %69 : vector<1x32xf32> to vector<2x32xf32>
    %521 = arith.addf %519, %520 : vector<2x32xf32>
    %cst_179 = arith.constant dense<0.000000e+00> : vector<2x32xf32>
    %522 = tpu.matmul %518, %59, %cst_179 {dimension_numbers = #tpu.dot_dimension_numbers<[1], [0], [0], [1], [0, 0, 1, 1], [], []>} : vector<2x32xbf16>, vector<32x32xbf16>, vector<2x32xf32> -> vector<2x32xf32>
    %523 = vector.broadcast %71 : vector<1x32xf32> to vector<2x32xf32>
    %524 = arith.addf %522, %523 : vector<2x32xf32>
    %cst_180 = arith.constant dense<0.000000e+00> : vector<2x32xf32>
    %525 = tpu.matmul %518, %61, %cst_180 {dimension_numbers = #tpu.dot_dimension_numbers<[1], [0], [0], [1], [0, 0, 1, 1], [], []>} : vector<2x32xbf16>, vector<32x32xbf16>, vector<2x32xf32> -> vector<2x32xf32>
    %526 = vector.broadcast %73 : vector<1x32xf32> to vector<2x32xf32>
    %527 = arith.addf %525, %526 : vector<2x32xf32>
    %528 = vector.extract_strided_slice %9 {offsets = [0, 6, 0], sizes = [2, 1, 32], strides = [1, 1, 1]} : vector<2x8x32xf32> to vector<2x1x32xf32>
    %529 = vector.shape_cast %528 : vector<2x1x32xf32> to vector<2x32xf32>
    %530 = arith.addf %529, %511 : vector<2x32xf32>
    %531 = arith.negf %530 : vector<2x32xf32>
    %532 = math.exp %531 : vector<2x32xf32>
    %cst_181 = arith.constant 1.000000e+00 : f32
    %533 = vector.broadcast %cst_181 : f32 to vector<2x32xf32>
    %534 = arith.addf %533, %532 : vector<2x32xf32>
    %535 = arith.divf %533, %534 : vector<2x32xf32>
    %536 = vector.extract_strided_slice %17 {offsets = [0, 6, 0], sizes = [2, 1, 32], strides = [1, 1, 1]} : vector<2x8x32xf32> to vector<2x1x32xf32>
    %537 = vector.shape_cast %536 : vector<2x1x32xf32> to vector<2x32xf32>
    %538 = arith.addf %537, %514 : vector<2x32xf32>
    %539 = arith.negf %538 : vector<2x32xf32>
    %540 = math.exp %539 : vector<2x32xf32>
    %cst_182 = arith.constant 1.000000e+00 : f32
    %541 = vector.broadcast %cst_182 : f32 to vector<2x32xf32>
    %542 = arith.addf %541, %540 : vector<2x32xf32>
    %543 = arith.divf %541, %542 : vector<2x32xf32>
    %544 = vector.extract_strided_slice %25 {offsets = [0, 6, 0], sizes = [2, 1, 32], strides = [1, 1, 1]} : vector<2x8x32xf32> to vector<2x1x32xf32>
    %545 = vector.shape_cast %544 : vector<2x1x32xf32> to vector<2x32xf32>
    %546 = arith.mulf %535, %517 : vector<2x32xf32>
    %547 = arith.addf %545, %546 : vector<2x32xf32>
    %548 = math.tanh %547 : vector<2x32xf32>
    %cst_183 = arith.constant 1.000000e+00 : f32
    %549 = vector.broadcast %cst_183 : f32 to vector<2x32xf32>
    %550 = arith.subf %549, %543 : vector<2x32xf32>
    %551 = arith.mulf %550, %548 : vector<2x32xf32>
    %552 = arith.mulf %543, %481 : vector<2x32xf32>
    %553 = arith.addf %551, %552 : vector<2x32xf32>
    %554 = vector.extract_strided_slice %33 {offsets = [0, 1, 0], sizes = [2, 1, 32], strides = [1, 1, 1]} : vector<2x8x32xf32> to vector<2x1x32xf32>
    %555 = vector.shape_cast %554 : vector<2x1x32xf32> to vector<2x32xf32>
    %556 = arith.addf %555, %521 : vector<2x32xf32>
    %557 = arith.negf %556 : vector<2x32xf32>
    %558 = math.exp %557 : vector<2x32xf32>
    %cst_184 = arith.constant 1.000000e+00 : f32
    %559 = vector.broadcast %cst_184 : f32 to vector<2x32xf32>
    %560 = arith.addf %559, %558 : vector<2x32xf32>
    %561 = arith.divf %559, %560 : vector<2x32xf32>
    %562 = vector.extract_strided_slice %41 {offsets = [0, 1, 0], sizes = [2, 1, 32], strides = [1, 1, 1]} : vector<2x8x32xf32> to vector<2x1x32xf32>
    %563 = vector.shape_cast %562 : vector<2x1x32xf32> to vector<2x32xf32>
    %564 = arith.addf %563, %524 : vector<2x32xf32>
    %565 = arith.negf %564 : vector<2x32xf32>
    %566 = math.exp %565 : vector<2x32xf32>
    %cst_185 = arith.constant 1.000000e+00 : f32
    %567 = vector.broadcast %cst_185 : f32 to vector<2x32xf32>
    %568 = arith.addf %567, %566 : vector<2x32xf32>
    %569 = arith.divf %567, %568 : vector<2x32xf32>
    %570 = vector.extract_strided_slice %49 {offsets = [0, 1, 0], sizes = [2, 1, 32], strides = [1, 1, 1]} : vector<2x8x32xf32> to vector<2x1x32xf32>
    %571 = vector.shape_cast %570 : vector<2x1x32xf32> to vector<2x32xf32>
    %572 = arith.mulf %561, %527 : vector<2x32xf32>
    %573 = arith.addf %571, %572 : vector<2x32xf32>
    %574 = math.tanh %573 : vector<2x32xf32>
    %cst_186 = arith.constant 1.000000e+00 : f32
    %575 = vector.broadcast %cst_186 : f32 to vector<2x32xf32>
    %576 = arith.subf %575, %569 : vector<2x32xf32>
    %577 = arith.mulf %576, %574 : vector<2x32xf32>
    %578 = arith.mulf %569, %507 : vector<2x32xf32>
    %579 = arith.addf %577, %578 : vector<2x32xf32>
    %580 = arith.truncf %553 : vector<2x32xf32> to vector<2x32xbf16>
    %cst_187 = arith.constant dense<0.000000e+00> : vector<2x32xf32>
    %581 = tpu.matmul %580, %51, %cst_187 {dimension_numbers = #tpu.dot_dimension_numbers<[1], [0], [0], [1], [0, 0, 1, 1], [], []>} : vector<2x32xbf16>, vector<32x32xbf16>, vector<2x32xf32> -> vector<2x32xf32>
    %582 = vector.broadcast %63 : vector<1x32xf32> to vector<2x32xf32>
    %583 = arith.addf %581, %582 : vector<2x32xf32>
    %cst_188 = arith.constant dense<0.000000e+00> : vector<2x32xf32>
    %584 = tpu.matmul %580, %53, %cst_188 {dimension_numbers = #tpu.dot_dimension_numbers<[1], [0], [0], [1], [0, 0, 1, 1], [], []>} : vector<2x32xbf16>, vector<32x32xbf16>, vector<2x32xf32> -> vector<2x32xf32>
    %585 = vector.broadcast %65 : vector<1x32xf32> to vector<2x32xf32>
    %586 = arith.addf %584, %585 : vector<2x32xf32>
    %cst_189 = arith.constant dense<0.000000e+00> : vector<2x32xf32>
    %587 = tpu.matmul %580, %55, %cst_189 {dimension_numbers = #tpu.dot_dimension_numbers<[1], [0], [0], [1], [0, 0, 1, 1], [], []>} : vector<2x32xbf16>, vector<32x32xbf16>, vector<2x32xf32> -> vector<2x32xf32>
    %588 = vector.broadcast %67 : vector<1x32xf32> to vector<2x32xf32>
    %589 = arith.addf %587, %588 : vector<2x32xf32>
    %590 = arith.truncf %579 : vector<2x32xf32> to vector<2x32xbf16>
    %cst_190 = arith.constant dense<0.000000e+00> : vector<2x32xf32>
    %591 = tpu.matmul %590, %57, %cst_190 {dimension_numbers = #tpu.dot_dimension_numbers<[1], [0], [0], [1], [0, 0, 1, 1], [], []>} : vector<2x32xbf16>, vector<32x32xbf16>, vector<2x32xf32> -> vector<2x32xf32>
    %592 = vector.broadcast %69 : vector<1x32xf32> to vector<2x32xf32>
    %593 = arith.addf %591, %592 : vector<2x32xf32>
    %cst_191 = arith.constant dense<0.000000e+00> : vector<2x32xf32>
    %594 = tpu.matmul %590, %59, %cst_191 {dimension_numbers = #tpu.dot_dimension_numbers<[1], [0], [0], [1], [0, 0, 1, 1], [], []>} : vector<2x32xbf16>, vector<32x32xbf16>, vector<2x32xf32> -> vector<2x32xf32>
    %595 = vector.broadcast %71 : vector<1x32xf32> to vector<2x32xf32>
    %596 = arith.addf %594, %595 : vector<2x32xf32>
    %cst_192 = arith.constant dense<0.000000e+00> : vector<2x32xf32>
    %597 = tpu.matmul %590, %61, %cst_192 {dimension_numbers = #tpu.dot_dimension_numbers<[1], [0], [0], [1], [0, 0, 1, 1], [], []>} : vector<2x32xbf16>, vector<32x32xbf16>, vector<2x32xf32> -> vector<2x32xf32>
    %598 = vector.broadcast %73 : vector<1x32xf32> to vector<2x32xf32>
    %599 = arith.addf %597, %598 : vector<2x32xf32>
    %600 = vector.extract_strided_slice %9 {offsets = [0, 7, 0], sizes = [2, 1, 32], strides = [1, 1, 1]} : vector<2x8x32xf32> to vector<2x1x32xf32>
    %601 = vector.shape_cast %600 : vector<2x1x32xf32> to vector<2x32xf32>
    %602 = arith.addf %601, %583 : vector<2x32xf32>
    %603 = arith.negf %602 : vector<2x32xf32>
    %604 = math.exp %603 : vector<2x32xf32>
    %cst_193 = arith.constant 1.000000e+00 : f32
    %605 = vector.broadcast %cst_193 : f32 to vector<2x32xf32>
    %606 = arith.addf %605, %604 : vector<2x32xf32>
    %607 = arith.divf %605, %606 : vector<2x32xf32>
    %608 = vector.extract_strided_slice %17 {offsets = [0, 7, 0], sizes = [2, 1, 32], strides = [1, 1, 1]} : vector<2x8x32xf32> to vector<2x1x32xf32>
    %609 = vector.shape_cast %608 : vector<2x1x32xf32> to vector<2x32xf32>
    %610 = arith.addf %609, %586 : vector<2x32xf32>
    %611 = arith.negf %610 : vector<2x32xf32>
    %612 = math.exp %611 : vector<2x32xf32>
    %cst_194 = arith.constant 1.000000e+00 : f32
    %613 = vector.broadcast %cst_194 : f32 to vector<2x32xf32>
    %614 = arith.addf %613, %612 : vector<2x32xf32>
    %615 = arith.divf %613, %614 : vector<2x32xf32>
    %616 = vector.extract_strided_slice %25 {offsets = [0, 7, 0], sizes = [2, 1, 32], strides = [1, 1, 1]} : vector<2x8x32xf32> to vector<2x1x32xf32>
    %617 = vector.shape_cast %616 : vector<2x1x32xf32> to vector<2x32xf32>
    %618 = arith.mulf %607, %589 : vector<2x32xf32>
    %619 = arith.addf %617, %618 : vector<2x32xf32>
    %620 = math.tanh %619 : vector<2x32xf32>
    %cst_195 = arith.constant 1.000000e+00 : f32
    %621 = vector.broadcast %cst_195 : f32 to vector<2x32xf32>
    %622 = arith.subf %621, %615 : vector<2x32xf32>
    %623 = arith.mulf %622, %620 : vector<2x32xf32>
    %624 = arith.mulf %615, %553 : vector<2x32xf32>
    %625 = arith.addf %623, %624 : vector<2x32xf32>
    %626 = vector.extract_strided_slice %33 {offsets = [0, 0, 0], sizes = [2, 1, 32], strides = [1, 1, 1]} : vector<2x8x32xf32> to vector<2x1x32xf32>
    %627 = vector.shape_cast %626 : vector<2x1x32xf32> to vector<2x32xf32>
    %628 = arith.addf %627, %593 : vector<2x32xf32>
    %629 = arith.negf %628 : vector<2x32xf32>
    %630 = math.exp %629 : vector<2x32xf32>
    %cst_196 = arith.constant 1.000000e+00 : f32
    %631 = vector.broadcast %cst_196 : f32 to vector<2x32xf32>
    %632 = arith.addf %631, %630 : vector<2x32xf32>
    %633 = arith.divf %631, %632 : vector<2x32xf32>
    %634 = vector.extract_strided_slice %41 {offsets = [0, 0, 0], sizes = [2, 1, 32], strides = [1, 1, 1]} : vector<2x8x32xf32> to vector<2x1x32xf32>
    %635 = vector.shape_cast %634 : vector<2x1x32xf32> to vector<2x32xf32>
    %636 = arith.addf %635, %596 : vector<2x32xf32>
    %637 = arith.negf %636 : vector<2x32xf32>
    %638 = math.exp %637 : vector<2x32xf32>
    %cst_197 = arith.constant 1.000000e+00 : f32
    %639 = vector.broadcast %cst_197 : f32 to vector<2x32xf32>
    %640 = arith.addf %639, %638 : vector<2x32xf32>
    %641 = arith.divf %639, %640 : vector<2x32xf32>
    %642 = vector.extract_strided_slice %49 {offsets = [0, 0, 0], sizes = [2, 1, 32], strides = [1, 1, 1]} : vector<2x8x32xf32> to vector<2x1x32xf32>
    %643 = vector.shape_cast %642 : vector<2x1x32xf32> to vector<2x32xf32>
    %644 = arith.mulf %633, %599 : vector<2x32xf32>
    %645 = arith.addf %643, %644 : vector<2x32xf32>
    %646 = math.tanh %645 : vector<2x32xf32>
    %cst_198 = arith.constant 1.000000e+00 : f32
    %647 = vector.broadcast %cst_198 : f32 to vector<2x32xf32>
    %648 = arith.subf %647, %641 : vector<2x32xf32>
    %649 = arith.mulf %648, %646 : vector<2x32xf32>
    %650 = arith.mulf %641, %579 : vector<2x32xf32>
    %651 = arith.addf %649, %650 : vector<2x32xf32>
    %c0_199 = arith.constant 0 : index
    %c0_200 = arith.constant 0 : index
    %c0_201 = arith.constant 0 : index
    %652 = vector.load %arg6[%c0_199, %c0_200, %c0_201] : memref<2x2x32xf32, #tpu.memory_space<vmem>>, vector<1x2x32xf32>
    %653 = vector.shape_cast %652 : vector<1x2x32xf32> to vector<2x32xf32>
    %654 = vector.shape_cast %625 : vector<2x32xf32> to vector<1x2x32xf32>
    tpu.vector_store %arg6[%c0_199, %c0_200, %c0_201], %654 {strides = array<i32>} : memref<2x2x32xf32, #tpu.memory_space<vmem>>, vector<1x2x32xf32>,
    %c1_202 = arith.constant 1 : index
    %c0_203 = arith.constant 0 : index
    %c0_204 = arith.constant 0 : index
    %655 = vector.load %arg6[%c1_202, %c0_203, %c0_204] : memref<2x2x32xf32, #tpu.memory_space<vmem>>, vector<1x2x32xf32>
    %656 = vector.shape_cast %655 : vector<1x2x32xf32> to vector<2x32xf32>
    %657 = vector.shape_cast %651 : vector<2x32xf32> to vector<1x2x32xf32>
    tpu.vector_store %arg6[%c1_202, %c0_203, %c0_204], %657 {strides = array<i32>} : memref<2x2x32xf32, #tpu.memory_space<vmem>>, vector<1x2x32xf32>,
    return
  }
  func.func @transform_0(%arg0: i32) -> (i32, i32, i32) {
    %c0_i32 = arith.constant 0 : i32
    %c0_i32_0 = arith.constant 0 : i32
    %c0_i32_1 = arith.constant 0 : i32
    return %arg0, %c0_i32, %c0_i32_0 : i32, i32, i32
  }
  func.func @transform_1(%arg0: i32) -> (i32, i32, i32, i32) {
    %c0_i32 = arith.constant 0 : i32
    %c0_i32_0 = arith.constant 0 : i32
    %c0_i32_1 = arith.constant 0 : i32
    %c0_i32_2 = arith.constant 0 : i32
    %c0_i32_3 = arith.constant 0 : i32
    return %c0_i32, %c0_i32_0, %c0_i32_1, %c0_i32_2 : i32, i32, i32, i32
  }
  func.func @transform_2(%arg0: i32) -> (i32, i32, i32, i32) {
    %c0_i32 = arith.constant 0 : i32
    %c0_i32_0 = arith.constant 0 : i32
    %c0_i32_1 = arith.constant 0 : i32
    %c0_i32_2 = arith.constant 0 : i32
    %c0_i32_3 = arith.constant 0 : i32
    return %c0_i32, %c0_i32_0, %c0_i32_1, %c0_i32_2 : i32, i32, i32, i32
  }
  func.func @transform_3(%arg0: i32) -> (i32, i32, i32, i32) {
    %c0_i32 = arith.constant 0 : i32
    %c0_i32_0 = arith.constant 0 : i32
    %c0_i32_1 = arith.constant 0 : i32
    %c0_i32_2 = arith.constant 0 : i32
    %c0_i32_3 = arith.constant 0 : i32
    return %c0_i32, %c0_i32_0, %c0_i32_1, %c0_i32_2 : i32, i32, i32, i32
  }
  func.func @transform_4(%arg0: i32) -> (i32, i32, i32, i32) {
    %c0_i32 = arith.constant 0 : i32
    %c0_i32_0 = arith.constant 0 : i32
    %c0_i32_1 = arith.constant 0 : i32
    %c0_i32_2 = arith.constant 0 : i32
    %c0_i32_3 = arith.constant 0 : i32
    return %c0_i32, %c0_i32_0, %c0_i32_1, %c0_i32_2 : i32, i32, i32, i32
  }
  func.func @transform_5(%arg0: i32) -> (i32, i32, i32) {
    %c0_i32 = arith.constant 0 : i32
    %c0_i32_0 = arith.constant 0 : i32
    %c0_i32_1 = arith.constant 0 : i32
    return %c0_i32, %arg0, %c0_i32_0 : i32, i32, i32
  }
}

</mosaic_0001>

<llo_original>
// kernel: tpu_custom_call.1
$region0: #{tpu_custom_call.1}
  #allocation0 [shape = 'u32[]', space=smem, size = 0x4, offset = 0x4, fixed_abs, tag = 'smem constant byte address 0x4 - core index']
  #allocation1 [shape = 'u32[72,128]{1,0:T(1,128)}', space=vmem, size = 0x9000, scoped, tag = 'internal scratch']
  %s0 = inlined_call_operand.vmem [shape: bf16[2,8,300], index: 0, kind: input, shape index: {}]
  %s1 = inlined_call_operand.vmem [shape: bf16[2,3,300,32], index: 1, kind: input, shape index: {}]
  %s2 = inlined_call_operand.vmem [shape: bf16[2,3,32,32], index: 2, kind: input, shape index: {}]
  %s3 = inlined_call_operand.vmem [shape: f32[2,3,1,32], index: 3, kind: input, shape index: {}]
  %s4 = inlined_call_operand.vmem [shape: f32[2,3,1,32], index: 4, kind: input, shape index: {}]
  %s5 = inlined_call_operand.hbm [shape: f32[2,2,32], index: 5, kind: output, shape index: {}]
  %s6 = sld [smem:[#allocation0]]
  $region30: #{tpu_custom_call.1} parent=0
    _
  %s8 = ssub.s32 1, %s6
  %s9 = scalar_select 0, %s8, %s6
  $region1: #{tpu_custom_call.1} parent=0
    #allocation2 [shape = 'u8[2048]{0}', space=vmem, size = 0x800, scoped, tag = 'output window, operand 0, single buffered']
    #allocation3 [shape = 's32[1]{0}', space=sflag, size = 0x4, scoped, tag = 'scoped memory for tpu_custom_call.1']
    %10 = vsyncpa [#allocation3], 0
    // Predicated region
    $region2: #{tpu_custom_call.1} parent=1 // pred_check
      _
    $region3: #{tpu_custom_call.1} parent=1 // pred_check_branch
      %12 = sbr.rel (0) target = $region5
    $region4: #{tpu_custom_call.1} parent=1 // pred_region
      _
    $region5: #{tpu_custom_call.1} parent=1 // pred_fallthru
      _
    // Predicated region
    $region6: #{tpu_custom_call.1} parent=1 // pred_check
      _
    $region7: #{tpu_custom_call.1} parent=1 // pred_check_branch
      %14 = sbr.rel (0) target = $region9
    $region8: #{tpu_custom_call.1} parent=1 // pred_region
      _
    $region9: #{tpu_custom_call.1} parent=1 // pred_fallthru
      _
    // Predicated region
    $region10: #{tpu_custom_call.1} parent=1 // pred_check
      _
    $region11: #{tpu_custom_call.1} parent=1 // pred_check_branch
      %16 = sbr.rel (0) target = $region13
    $region12: #{tpu_custom_call.1} parent=1 // pred_region
      _
    $region13: #{tpu_custom_call.1} parent=1 // pred_fallthru
      _
    // Predicated region
    $region14: #{tpu_custom_call.1} parent=1 // pred_check
      _
    $region15: #{tpu_custom_call.1} parent=1 // pred_check_branch
      %18 = sbr.rel (0) target = $region17
    $region16: #{tpu_custom_call.1} parent=1 // pred_region
      _
    $region17: #{tpu_custom_call.1} parent=1 // pred_fallthru
      _
    // Predicated region
    $region18: #{tpu_custom_call.1} parent=1 // pred_check
      _
    $region19: #{tpu_custom_call.1} parent=1 // pred_check_branch
      %20 = sbr.rel (0) target = $region21
    $region20: #{tpu_custom_call.1} parent=1 // pred_region
      _
    $region21: #{tpu_custom_call.1} parent=1 // pred_fallthru
      _
    %v22 = vld [vmem:[%s0] sm:$0xff]
    %v23 = vld [vmem:[%s0 + $0x8] sm:$0xf]
    %v24 = vld [vmem:[%s0 + $0xc] sm:$0xff]
    %v25 = vld [vmem:[%s0 + $0x14] sm:$0xf]
    %v26 = vld [vmem:[%s1] sm:$0xf]
    %v27 = vld [vmem:[%s1 + $0x4] sm:$0xf]
    %v28 = vld [vmem:[%s1 + $0x8] sm:$0xf]
    %v29 = vld [vmem:[%s1 + $0xc] sm:$0xf]
    %v30 = vld [vmem:[%s1 + $0x10] sm:$0xf]
    %v31 = vld [vmem:[%s1 + $0x14] sm:$0xf]
    %v32 = vld [vmem:[%s1 + $0x18] sm:$0xf]
    %v33 = vld [vmem:[%s1 + $0x1c] sm:$0xf]
    %v34 = vld [vmem:[%s1 + $0x20] sm:$0xf]
    %v35 = vld [vmem:[%s1 + $0x24] sm:$0xf]
    %v36 = vld [vmem:[%s1 + $0x28] sm:$0xf]
    %v37 = vld [vmem:[%s1 + $0x2c] sm:$0xf]
    %v38 = vld [vmem:[%s1 + $0x30] sm:$0xf]
    %v39 = vld [vmem:[%s1 + $0x34] sm:$0xf]
    %v40 = vld [vmem:[%s1 + $0x38] sm:$0xf]
    %v41 = vld [vmem:[%s1 + $0x3c] sm:$0xf]
    %v42 = vld [vmem:[%s1 + $0x40] sm:$0xf]
    %v43 = vld [vmem:[%s1 + $0x44] sm:$0xf]
    %v44 = vld [vmem:[%s1 + $0x48] sm:$0xf]
    %v45 = vld [vmem:[%s1 + $0x4c] sm:$0xf]
    %v46 = vld [vmem:[%s1 + $0x50] sm:$0xf]
    %v47 = vld [vmem:[%s1 + $0x54] sm:$0xf]
    %v48 = vld [vmem:[%s1 + $0x58] sm:$0xf]
    %v49 = vld [vmem:[%s1 + $0x5c] sm:$0xf]
    %v50 = vld [vmem:[%s1 + $0x60] sm:$0xf]
    %v51 = vld [vmem:[%s1 + $0x64] sm:$0xf]
    %v52 = vld [vmem:[%s1 + $0x68] sm:$0xf]
    %v53 = vld [vmem:[%s1 + $0x6c] sm:$0xf]
    %v54 = vld [vmem:[%s1 + $0x70] sm:$0xf]
    %v55 = vld [vmem:[%s1 + $0x74] sm:$0xf]
    %v56 = vld [vmem:[%s1 + $0x78] sm:$0xf]
    %v57 = vld [vmem:[%s1 + $0x7c] sm:$0xf]
    %v58 = vld [vmem:[%s1 + $0x80] sm:$0xf]
    %v59 = vld [vmem:[%s1 + $0x84] sm:$0xf]
    %v60 = vld [vmem:[%s1 + $0x88] sm:$0xf]
    %v61 = vld [vmem:[%s1 + $0x8c] sm:$0xf]
    %v62 = vld [vmem:[%s1 + $0x90] sm:$0xf]
    %v63 = vld [vmem:[%s1 + $0x94] sm:$0x3]
    %v64 = vld [vmem:[%s3] sm:$0x1]
    %v66 = vperm.slane %v64, 0
    %v72 = vunpack.c.l.b16 %v22
    %v73 = vunpack.c.h.b16 %v22
    %v74 = vunpack.c.l.b16 %v23
    %v75 = vunpack.c.l.b16 %v24
    %v76 = vunpack.c.h.b16 %v24
    %v77 = vunpack.c.l.b16 %v25
    %v78 = vpack.c.b16 %v75, %v72
    %v79 = vpack.c.b16 %v76, %v73
    %v80 = vpack.c.b16 %v77, %v74
    %v121 = vunpack.c.l.b16 %v26
    %v122 = vunpack.c.l.b16 %v27
    %v123 = vunpack.c.l.b16 %v28
    %v124 = vunpack.c.l.b16 %v29
    %v125 = vunpack.c.l.b16 %v30
    %v126 = vunpack.c.l.b16 %v31
    %v127 = vunpack.c.l.b16 %v32
    %v128 = vunpack.c.l.b16 %v33
    %v129 = vunpack.c.l.b16 %v34
    %v130 = vunpack.c.l.b16 %v35
    %v131 = vunpack.c.l.b16 %v36
    %v132 = vunpack.c.l.b16 %v37
    %v133 = vunpack.c.l.b16 %v38
    %v134 = vunpack.c.l.b16 %v39
    %v135 = vunpack.c.l.b16 %v40
    %v136 = vunpack.c.l.b16 %v41
    %v137 = vunpack.c.l.b16 %v42
    %v138 = vunpack.c.l.b16 %v43
    %v139 = vunpack.c.l.b16 %v44
    %v140 = vunpack.c.l.b16 %v45
    %v141 = vunpack.c.l.b16 %v46
    %v142 = vunpack.c.l.b16 %v47
    %v143 = vunpack.c.l.b16 %v48
    %v144 = vunpack.c.l.b16 %v49
    %v145 = vunpack.c.l.b16 %v50
    %v146 = vunpack.c.l.b16 %v51
    %v147 = vunpack.c.l.b16 %v52
    %v148 = vunpack.c.l.b16 %v53
    %v149 = vunpack.c.l.b16 %v54
    %v150 = vunpack.c.l.b16 %v55
    %v151 = vunpack.c.l.b16 %v56
    %v152 = vunpack.c.l.b16 %v57
    %v153 = vunpack.c.l.b16 %v58
    %v154 = vunpack.c.l.b16 %v59
    %v155 = vunpack.c.l.b16 %v60
    %v156 = vunpack.c.l.b16 %v61
    %v157 = vunpack.c.l.b16 %v62
    %v158 = vunpack.c.l.b16 %v63
    %v159 = vpack.c.b16 %v122, %v121
    %v160 = vpack.c.b16 %v124, %v123
    %v161 = vpack.c.b16 %v126, %v125
    %v162 = vpack.c.b16 %v128, %v127
    %v163 = vpack.c.b16 %v130, %v129
    %v164 = vpack.c.b16 %v132, %v131
    %v165 = vpack.c.b16 %v134, %v133
    %v166 = vpack.c.b16 %v136, %v135
    %v167 = vpack.c.b16 %v138, %v137
    %v168 = vpack.c.b16 %v140, %v139
    %v169 = vpack.c.b16 %v142, %v141
    %v170 = vpack.c.b16 %v144, %v143
    %v171 = vpack.c.b16 %v146, %v145
    %v172 = vpack.c.b16 %v148, %v147
    %v173 = vpack.c.b16 %v150, %v149
    %v174 = vpack.c.b16 %v152, %v151
    %v175 = vpack.c.b16 %v154, %v153
    %v176 = vpack.c.b16 %v156, %v155
    %v177 = vpack.c.b16 %v158, %v157
    %vm196 = vcmask 359424
    %v198 = vsel %vm196, %v80, 0
    %vm200 = vcmask 1045504
    %v202 = vsel %vm200, %v177, 0
    %204 = vmatpush.bf16.msra.mxu0 %v166
    %205 = vmatpush.bf16.msra.mxu0 %v165
    %206 = vmatpush.bf16.msra.mxu0 %v164
    %207 = vmatpush.bf16.msra.mxu0 %v163
    %208 = vmatpush.bf16.msra.mxu0 %v162
    %209 = vmatpush.bf16.msra.mxu0 %v161
    %210 = vmatpush.bf16.msra.mxu0 %v160
    %211 = vmatpush.bf16.msra.mxu0 %v159
    %212 = vmatmul.bf16.gmra.mxu0 %v78
    %v213 = vpop.f32.mrf.mxu0
    %v214 = vadd.f32 %v66, %v213
    %v215 = vpop.f32.mrf.mxu0
    %v216 = vadd.f32 %v66, %v215
    %217 = vdwg.mxu0
    %218 = vmatpush.bf16.msra.mxu0 %v174
    %219 = vmatpush.bf16.msra.mxu0 %v173
    %220 = vmatpush.bf16.msra.mxu0 %v172
    %221 = vmatpush.bf16.msra.mxu0 %v171
    %222 = vmatpush.bf16.msra.mxu0 %v170
    %223 = vmatpush.bf16.msra.mxu0 %v169
    %224 = vmatpush.bf16.msra.mxu0 %v168
    %225 = vmatpush.bf16.msra.mxu0 %v167
    %226 = vmatmul.bf16.gmra.mxu0 %v79
    %v227 = vpop.f32.mrf.mxu0
    %v228 = vadd.f32 %v214, %v227
    %v229 = vpop.f32.mrf.mxu0
    %v230 = vadd.f32 %v216, %v229
    %231 = vdwg.mxu0
    %232 = vmatpush.bf16.msra.mxu0 0
    %233 = vmatpush.bf16.msra.mxu0 0
    %234 = vmatpush.bf16.msra.mxu0 0
    %235 = vmatpush.bf16.msra.mxu0 0
    %236 = vmatpush.bf16.msra.mxu0 0
    %237 = vmatpush.bf16.msra.mxu0 %v202
    %238 = vmatpush.bf16.msra.mxu0 %v176
    %239 = vmatpush.bf16.msra.mxu0 %v175
    %240 = vmatmul.bf16.gmra.mxu0 %v198
    %v241 = vpop.f32.mrf.mxu0
    %v242 = vadd.f32 %v228, %v241
    %v243 = vpop.f32.mrf.mxu0
    %v244 = vadd.f32 %v230, %v243
    %245 = vdwg.mxu0
    %s246 = scalar_lea.vmem %s1, 152
    %v247 = vld [vmem:[%s246] sm:$0xf]
    %v248 = vld [vmem:[%s246 + $0x4] sm:$0xf]
    %v249 = vld [vmem:[%s246 + $0x8] sm:$0xf]
    %v250 = vld [vmem:[%s246 + $0xc] sm:$0xf]
    %v251 = vld [vmem:[%s246 + $0x10] sm:$0xf]
    %v252 = vld [vmem:[%s246 + $0x14] sm:$0xf]
    %v253 = vld [vmem:[%s246 + $0x18] sm:$0xf]
    %v254 = vld [vmem:[%s246 + $0x1c] sm:$0xf]
    %v255 = vld [vmem:[%s246 + $0x20] sm:$0xf]
    %v256 = vld [vmem:[%s246 + $0x24] sm:$0xf]
    %v257 = vld [vmem:[%s246 + $0x28] sm:$0xf]
    %v258 = vld [vmem:[%s246 + $0x2c] sm:$0xf]
    %v259 = vld [vmem:[%s246 + $0x30] sm:$0xf]
    %v260 = vld [vmem:[%s246 + $0x34] sm:$0xf]
    %v261 = vld [vmem:[%s246 + $0x38] sm:$0xf]
    %v262 = vld [vmem:[%s246 + $0x3c] sm:$0xf]
    %v263 = vld [vmem:[%s246 + $0x40] sm:$0xf]
    %v264 = vld [vmem:[%s246 + $0x44] sm:$0xf]
    %v265 = vld [vmem:[%s246 + $0x48] sm:$0xf]
    %v266 = vld [vmem:[%s246 + $0x4c] sm:$0xf]
    %v267 = vld [vmem:[%s246 + $0x50] sm:$0xf]
    %v268 = vld [vmem:[%s246 + $0x54] sm:$0xf]
    %v269 = vld [vmem:[%s246 + $0x58] sm:$0xf]
    %v270 = vld [vmem:[%s246 + $0x5c] sm:$0xf]
    %v271 = vld [vmem:[%s246 + $0x60] sm:$0xf]
    %v272 = vld [vmem:[%s246 + $0x64] sm:$0xf]
    %v273 = vld [vmem:[%s246 + $0x68] sm:$0xf]
    %v274 = vld [vmem:[%s246 + $0x6c] sm:$0xf]
    %v275 = vld [vmem:[%s246 + $0x70] sm:$0xf]
    %v276 = vld [vmem:[%s246 + $0x74] sm:$0xf]
    %v277 = vld [vmem:[%s246 + $0x78] sm:$0xf]
    %v278 = vld [vmem:[%s246 + $0x7c] sm:$0xf]
    %v279 = vld [vmem:[%s246 + $0x80] sm:$0xf]
    %v280 = vld [vmem:[%s246 + $0x84] sm:$0xf]
    %v281 = vld [vmem:[%s246 + $0x88] sm:$0xf]
    %v282 = vld [vmem:[%s246 + $0x8c] sm:$0xf]
    %v283 = vld [vmem:[%s246 + $0x90] sm:$0xf]
    %v284 = vld [vmem:[%s246 + $0x94] sm:$0x3]
    %s285 = scalar_lea.vmem %s3, 1
    %v286 = vld [vmem:[%s285] sm:$0x1]
    %v288 = vperm.slane %v286, 0
    %v328 = vunpack.c.l.b16 %v247
    %v329 = vunpack.c.l.b16 %v248
    %v330 = vunpack.c.l.b16 %v249
    %v331 = vunpack.c.l.b16 %v250
    %v332 = vunpack.c.l.b16 %v251
    %v333 = vunpack.c.l.b16 %v252
    %v334 = vunpack.c.l.b16 %v253
    %v335 = vunpack.c.l.b16 %v254
    %v336 = vunpack.c.l.b16 %v255
    %v337 = vunpack.c.l.b16 %v256
    %v338 = vunpack.c.l.b16 %v257
    %v339 = vunpack.c.l.b16 %v258
    %v340 = vunpack.c.l.b16 %v259
    %v341 = vunpack.c.l.b16 %v260
    %v342 = vunpack.c.l.b16 %v261
    %v343 = vunpack.c.l.b16 %v262
    %v344 = vunpack.c.l.b16 %v263
    %v345 = vunpack.c.l.b16 %v264
    %v346 = vunpack.c.l.b16 %v265
    %v347 = vunpack.c.l.b16 %v266
    %v348 = vunpack.c.l.b16 %v267
    %v349 = vunpack.c.l.b16 %v268
    %v350 = vunpack.c.l.b16 %v269
    %v351 = vunpack.c.l.b16 %v270
    %v352 = vunpack.c.l.b16 %v271
    %v353 = vunpack.c.l.b16 %v272
    %v354 = vunpack.c.l.b16 %v273
    %v355 = vunpack.c.l.b16 %v274
    %v356 = vunpack.c.l.b16 %v275
    %v357 = vunpack.c.l.b16 %v276
    %v358 = vunpack.c.l.b16 %v277
    %v359 = vunpack.c.l.b16 %v278
    %v360 = vunpack.c.l.b16 %v279
    %v361 = vunpack.c.l.b16 %v280
    %v362 = vunpack.c.l.b16 %v281
    %v363 = vunpack.c.l.b16 %v282
    %v364 = vunpack.c.l.b16 %v283
    %v365 = vunpack.c.l.b16 %v284
    %v366 = vpack.c.b16 %v329, %v328
    %v367 = vpack.c.b16 %v331, %v330
    %v368 = vpack.c.b16 %v333, %v332
    %v369 = vpack.c.b16 %v335, %v334
    %v370 = vpack.c.b16 %v337, %v336
    %v371 = vpack.c.b16 %v339, %v338
    %v372 = vpack.c.b16 %v341, %v340
    %v373 = vpack.c.b16 %v343, %v342
    %v374 = vpack.c.b16 %v345, %v344
    %v375 = vpack.c.b16 %v347, %v346
    %v376 = vpack.c.b16 %v349, %v348
    %v377 = vpack.c.b16 %v351, %v350
    %v378 = vpack.c.b16 %v353, %v352
    %v379 = vpack.c.b16 %v355, %v354
    %v380 = vpack.c.b16 %v357, %v356
    %v381 = vpack.c.b16 %v359, %v358
    %v382 = vpack.c.b16 %v361, %v360
    %v383 = vpack.c.b16 %v363, %v362
    %v384 = vpack.c.b16 %v365, %v364
    %v404 = vsel %vm200, %v384, 0
    %406 = vmatpush.bf16.msra.mxu0 %v373
    %407 = vmatpush.bf16.msra.mxu0 %v372
    %408 = vmatpush.bf16.msra.mxu0 %v371
    %409 = vmatpush.bf16.msra.mxu0 %v370
    %410 = vmatpush.bf16.msra.mxu0 %v369
    %411 = vmatpush.bf16.msra.mxu0 %v368
    %412 = vmatpush.bf16.msra.mxu0 %v367
    %413 = vmatpush.bf16.msra.mxu0 %v366
    %414 = vmatmul.bf16.gmra.mxu0 %v78
    %v415 = vpop.f32.mrf.mxu0
    %v416 = vadd.f32 %v288, %v415
    %v417 = vpop.f32.mrf.mxu0
    %v418 = vadd.f32 %v288, %v417
    %419 = vdwg.mxu0
    %420 = vmatpush.bf16.msra.mxu0 %v381
    %421 = vmatpush.bf16.msra.mxu0 %v380
    %422 = vmatpush.bf16.msra.mxu0 %v379
    %423 = vmatpush.bf16.msra.mxu0 %v378
    %424 = vmatpush.bf16.msra.mxu0 %v377
    %425 = vmatpush.bf16.msra.mxu0 %v376
    %426 = vmatpush.bf16.msra.mxu0 %v375
    %427 = vmatpush.bf16.msra.mxu0 %v374
    %428 = vmatmul.bf16.gmra.mxu0 %v79
    %v429 = vpop.f32.mrf.mxu0
    %v430 = vadd.f32 %v416, %v429
    %v431 = vpop.f32.mrf.mxu0
    %v432 = vadd.f32 %v418, %v431
    %433 = vdwg.mxu0
    %434 = vmatpush.bf16.msra.mxu0 0
    %435 = vmatpush.bf16.msra.mxu0 0
    %436 = vmatpush.bf16.msra.mxu0 0
    %437 = vmatpush.bf16.msra.mxu0 0
    %438 = vmatpush.bf16.msra.mxu0 0
    %439 = vmatpush.bf16.msra.mxu0 %v404
    %440 = vmatpush.bf16.msra.mxu0 %v383
    %441 = vmatpush.bf16.msra.mxu0 %v382
    %442 = vmatmul.bf16.gmra.mxu0 %v198
    %v443 = vpop.f32.mrf.mxu0
    %v444 = vadd.f32 %v430, %v443
    %v445 = vpop.f32.mrf.mxu0
    %v446 = vadd.f32 %v432, %v445
    %447 = vdwg.mxu0
    %s448 = scalar_lea.vmem %s1, 304
    %v449 = vld [vmem:[%s448] sm:$0xf]
    %v450 = vld [vmem:[%s448 + $0x4] sm:$0xf]
    %v451 = vld [vmem:[%s448 + $0x8] sm:$0xf]
    %v452 = vld [vmem:[%s448 + $0xc] sm:$0xf]
    %v453 = vld [vmem:[%s448 + $0x10] sm:$0xf]
    %v454 = vld [vmem:[%s448 + $0x14] sm:$0xf]
    %v455 = vld [vmem:[%s448 + $0x18] sm:$0xf]
    %v456 = vld [vmem:[%s448 + $0x1c] sm:$0xf]
    %v457 = vld [vmem:[%s448 + $0x20] sm:$0xf]
    %v458 = vld [vmem:[%s448 + $0x24] sm:$0xf]
    %v459 = vld [vmem:[%s448 + $0x28] sm:$0xf]
    %v460 = vld [vmem:[%s448 + $0x2c] sm:$0xf]
    %v461 = vld [vmem:[%s448 + $0x30] sm:$0xf]
    %v462 = vld [vmem:[%s448 + $0x34] sm:$0xf]
    %v463 = vld [vmem:[%s448 + $0x38] sm:$0xf]
    %v464 = vld [vmem:[%s448 + $0x3c] sm:$0xf]
    %v465 = vld [vmem:[%s448 + $0x40] sm:$0xf]
    %v466 = vld [vmem:[%s448 + $0x44] sm:$0xf]
    %v467 = vld [vmem:[%s448 + $0x48] sm:$0xf]
    %v468 = vld [vmem:[%s448 + $0x4c] sm:$0xf]
    %v469 = vld [vmem:[%s448 + $0x50] sm:$0xf]
    %v470 = vld [vmem:[%s448 + $0x54] sm:$0xf]
    %v471 = vld [vmem:[%s448 + $0x58] sm:$0xf]
    %v472 = vld [vmem:[%s448 + $0x5c] sm:$0xf]
    %v473 = vld [vmem:[%s448 + $0x60] sm:$0xf]
    %v474 = vld [vmem:[%s448 + $0x64] sm:$0xf]
    %v475 = vld [vmem:[%s448 + $0x68] sm:$0xf]
    %v476 = vld [vmem:[%s448 + $0x6c] sm:$0xf]
    %v477 = vld [vmem:[%s448 + $0x70] sm:$0xf]
    %v478 = vld [vmem:[%s448 + $0x74] sm:$0xf]
    %v479 = vld [vmem:[%s448 + $0x78] sm:$0xf]
    %v480 = vld [vmem:[%s448 + $0x7c] sm:$0xf]
    %v481 = vld [vmem:[%s448 + $0x80] sm:$0xf]
    %v482 = vld [vmem:[%s448 + $0x84] sm:$0xf]
    %v483 = vld [vmem:[%s448 + $0x88] sm:$0xf]
    %v484 = vld [vmem:[%s448 + $0x8c] sm:$0xf]
    %v485 = vld [vmem:[%s448 + $0x90] sm:$0xf]
    %v486 = vld [vmem:[%s448 + $0x94] sm:$0x3]
    %s487 = scalar_lea.vmem %s3, 2
    %v488 = vld [vmem:[%s487] sm:$0x1]
    %v490 = vperm.slane %v488, 0
    %v530 = vunpack.c.l.b16 %v449
    %v531 = vunpack.c.l.b16 %v450
    %v532 = vunpack.c.l.b16 %v451
    %v533 = vunpack.c.l.b16 %v452
    %v534 = vunpack.c.l.b16 %v453
    %v535 = vunpack.c.l.b16 %v454
    %v536 = vunpack.c.l.b16 %v455
    %v537 = vunpack.c.l.b16 %v456
    %v538 = vunpack.c.l.b16 %v457
    %v539 = vunpack.c.l.b16 %v458
    %v540 = vunpack.c.l.b16 %v459
    %v541 = vunpack.c.l.b16 %v460
    %v542 = vunpack.c.l.b16 %v461
    %v543 = vunpack.c.l.b16 %v462
    %v544 = vunpack.c.l.b16 %v463
    %v545 = vunpack.c.l.b16 %v464
    %v546 = vunpack.c.l.b16 %v465
    %v547 = vunpack.c.l.b16 %v466
    %v548 = vunpack.c.l.b16 %v467
    %v549 = vunpack.c.l.b16 %v468
    %v550 = vunpack.c.l.b16 %v469
    %v551 = vunpack.c.l.b16 %v470
    %v552 = vunpack.c.l.b16 %v471
    %v553 = vunpack.c.l.b16 %v472
    %v554 = vunpack.c.l.b16 %v473
    %v555 = vunpack.c.l.b16 %v474
    %v556 = vunpack.c.l.b16 %v475
    %v557 = vunpack.c.l.b16 %v476
    %v558 = vunpack.c.l.b16 %v477
    %v559 = vunpack.c.l.b16 %v478
    %v560 = vunpack.c.l.b16 %v479
    %v561 = vunpack.c.l.b16 %v480
    %v562 = vunpack.c.l.b16 %v481
    %v563 = vunpack.c.l.b16 %v482
    %v564 = vunpack.c.l.b16 %v483
    %v565 = vunpack.c.l.b16 %v484
    %v566 = vunpack.c.l.b16 %v485
    %v567 = vunpack.c.l.b16 %v486
    %v568 = vpack.c.b16 %v531, %v530
    %v569 = vpack.c.b16 %v533, %v532
    %v570 = vpack.c.b16 %v535, %v534
    %v571 = vpack.c.b16 %v537, %v536
    %v572 = vpack.c.b16 %v539, %v538
    %v573 = vpack.c.b16 %v541, %v540
    %v574 = vpack.c.b16 %v543, %v542
    %v575 = vpack.c.b16 %v545, %v544
    %v576 = vpack.c.b16 %v547, %v546
    %v577 = vpack.c.b16 %v549, %v548
    %v578 = vpack.c.b16 %v551, %v550
    %v579 = vpack.c.b16 %v553, %v552
    %v580 = vpack.c.b16 %v555, %v554
    %v581 = vpack.c.b16 %v557, %v556
    %v582 = vpack.c.b16 %v559, %v558
    %v583 = vpack.c.b16 %v561, %v560
    %v584 = vpack.c.b16 %v563, %v562
    %v585 = vpack.c.b16 %v565, %v564
    %v586 = vpack.c.b16 %v567, %v566
    %v606 = vsel %vm200, %v586, 0
    %608 = vmatpush.bf16.msra.mxu0 %v575
    %609 = vmatpush.bf16.msra.mxu0 %v574
    %610 = vmatpush.bf16.msra.mxu0 %v573
    %611 = vmatpush.bf16.msra.mxu0 %v572
    %612 = vmatpush.bf16.msra.mxu0 %v571
    %613 = vmatpush.bf16.msra.mxu0 %v570
    %614 = vmatpush.bf16.msra.mxu0 %v569
    %615 = vmatpush.bf16.msra.mxu0 %v568
    %616 = vmatmul.bf16.gmra.mxu0 %v78
    %v617 = vpop.f32.mrf.mxu0
    %v618 = vadd.f32 %v490, %v617
    %v619 = vpop.f32.mrf.mxu0
    %v620 = vadd.f32 %v490, %v619
    %621 = vdwg.mxu0
    %622 = vmatpush.bf16.msra.mxu0 %v583
    %623 = vmatpush.bf16.msra.mxu0 %v582
    %624 = vmatpush.bf16.msra.mxu0 %v581
    %625 = vmatpush.bf16.msra.mxu0 %v580
    %626 = vmatpush.bf16.msra.mxu0 %v579
    %627 = vmatpush.bf16.msra.mxu0 %v578
    %628 = vmatpush.bf16.msra.mxu0 %v577
    %629 = vmatpush.bf16.msra.mxu0 %v576
    %630 = vmatmul.bf16.gmra.mxu0 %v79
    %v631 = vpop.f32.mrf.mxu0
    %v632 = vadd.f32 %v618, %v631
    %v633 = vpop.f32.mrf.mxu0
    %v634 = vadd.f32 %v620, %v633
    %635 = vdwg.mxu0
    %636 = vmatpush.bf16.msra.mxu0 0
    %637 = vmatpush.bf16.msra.mxu0 0
    %638 = vmatpush.bf16.msra.mxu0 0
    %639 = vmatpush.bf16.msra.mxu0 0
    %640 = vmatpush.bf16.msra.mxu0 0
    %641 = vmatpush.bf16.msra.mxu0 %v606
    %642 = vmatpush.bf16.msra.mxu0 %v585
    %643 = vmatpush.bf16.msra.mxu0 %v584
    %644 = vmatmul.bf16.gmra.mxu0 %v198
    %v645 = vpop.f32.mrf.mxu0
    %v646 = vadd.f32 %v632, %v645
    %v647 = vpop.f32.mrf.mxu0
    %v648 = vadd.f32 %v634, %v647
    %649 = vdwg.mxu0
    %s650 = scalar_lea.vmem %s1, 456
    %v651 = vld [vmem:[%s650] sm:$0xf]
    %v652 = vld [vmem:[%s650 + $0x4] sm:$0xf]
    %v653 = vld [vmem:[%s650 + $0x8] sm:$0xf]
    %v654 = vld [vmem:[%s650 + $0xc] sm:$0xf]
    %v655 = vld [vmem:[%s650 + $0x10] sm:$0xf]
    %v656 = vld [vmem:[%s650 + $0x14] sm:$0xf]
    %v657 = vld [vmem:[%s650 + $0x18] sm:$0xf]
    %v658 = vld [vmem:[%s650 + $0x1c] sm:$0xf]
    %v659 = vld [vmem:[%s650 + $0x20] sm:$0xf]
    %v660 = vld [vmem:[%s650 + $0x24] sm:$0xf]
    %v661 = vld [vmem:[%s650 + $0x28] sm:$0xf]
    %v662 = vld [vmem:[%s650 + $0x2c] sm:$0xf]
    %v663 = vld [vmem:[%s650 + $0x30] sm:$0xf]
    %v664 = vld [vmem:[%s650 + $0x34] sm:$0xf]
    %v665 = vld [vmem:[%s650 + $0x38] sm:$0xf]
    %v666 = vld [vmem:[%s650 + $0x3c] sm:$0xf]
    %v667 = vld [vmem:[%s650 + $0x40] sm:$0xf]
    %v668 = vld [vmem:[%s650 + $0x44] sm:$0xf]
    %v669 = vld [vmem:[%s650 + $0x48] sm:$0xf]
    %v670 = vld [vmem:[%s650 + $0x4c] sm:$0xf]
    %v671 = vld [vmem:[%s650 + $0x50] sm:$0xf]
    %v672 = vld [vmem:[%s650 + $0x54] sm:$0xf]
    %v673 = vld [vmem:[%s650 + $0x58] sm:$0xf]
    %v674 = vld [vmem:[%s650 + $0x5c] sm:$0xf]
    %v675 = vld [vmem:[%s650 + $0x60] sm:$0xf]
    %v676 = vld [vmem:[%s650 + $0x64] sm:$0xf]
    %v677 = vld [vmem:[%s650 + $0x68] sm:$0xf]
    %v678 = vld [vmem:[%s650 + $0x6c] sm:$0xf]
    %v679 = vld [vmem:[%s650 + $0x70] sm:$0xf]
    %v680 = vld [vmem:[%s650 + $0x74] sm:$0xf]
    %v681 = vld [vmem:[%s650 + $0x78] sm:$0xf]
    %v682 = vld [vmem:[%s650 + $0x7c] sm:$0xf]
    %v683 = vld [vmem:[%s650 + $0x80] sm:$0xf]
    %v684 = vld [vmem:[%s650 + $0x84] sm:$0xf]
    %v685 = vld [vmem:[%s650 + $0x88] sm:$0xf]
    %v686 = vld [vmem:[%s650 + $0x8c] sm:$0xf]
    %v687 = vld [vmem:[%s650 + $0x90] sm:$0xf]
    %v688 = vld [vmem:[%s650 + $0x94] sm:$0x3]
    %s689 = scalar_lea.vmem %s3, 3
    %v690 = vld [vmem:[%s689] sm:$0x1]
    %v692 = vperm.slane %v690, 0
    %v732 = vunpack.c.l.b16 %v651
    %v733 = vunpack.c.l.b16 %v652
    %v734 = vunpack.c.l.b16 %v653
    %v735 = vunpack.c.l.b16 %v654
    %v736 = vunpack.c.l.b16 %v655
    %v737 = vunpack.c.l.b16 %v656
    %v738 = vunpack.c.l.b16 %v657
    %v739 = vunpack.c.l.b16 %v658
    %v740 = vunpack.c.l.b16 %v659
    %v741 = vunpack.c.l.b16 %v660
    %v742 = vunpack.c.l.b16 %v661
    %v743 = vunpack.c.l.b16 %v662
    %v744 = vunpack.c.l.b16 %v663
    %v745 = vunpack.c.l.b16 %v664
    %v746 = vunpack.c.l.b16 %v665
    %v747 = vunpack.c.l.b16 %v666
    %v748 = vunpack.c.l.b16 %v667
    %v749 = vunpack.c.l.b16 %v668
    %v750 = vunpack.c.l.b16 %v669
    %v751 = vunpack.c.l.b16 %v670
    %v752 = vunpack.c.l.b16 %v671
    %v753 = vunpack.c.l.b16 %v672
    %v754 = vunpack.c.l.b16 %v673
    %v755 = vunpack.c.l.b16 %v674
    %v756 = vunpack.c.l.b16 %v675
    %v757 = vunpack.c.l.b16 %v676
    %v758 = vunpack.c.l.b16 %v677
    %v759 = vunpack.c.l.b16 %v678
    %v760 = vunpack.c.l.b16 %v679
    %v761 = vunpack.c.l.b16 %v680
    %v762 = vunpack.c.l.b16 %v681
    %v763 = vunpack.c.l.b16 %v682
    %v764 = vunpack.c.l.b16 %v683
    %v765 = vunpack.c.l.b16 %v684
    %v766 = vunpack.c.l.b16 %v685
    %v767 = vunpack.c.l.b16 %v686
    %v768 = vunpack.c.l.b16 %v687
    %v769 = vunpack.c.l.b16 %v688
    %v770 = vpack.c.b16 %v733, %v732
    %v771 = vpack.c.b16 %v735, %v734
    %v772 = vpack.c.b16 %v737, %v736
    %v773 = vpack.c.b16 %v739, %v738
    %v774 = vpack.c.b16 %v741, %v740
    %v775 = vpack.c.b16 %v743, %v742
    %v776 = vpack.c.b16 %v745, %v744
    %v777 = vpack.c.b16 %v747, %v746
    %v778 = vpack.c.b16 %v749, %v748
    %v779 = vpack.c.b16 %v751, %v750
    %v780 = vpack.c.b16 %v753, %v752
    %v781 = vpack.c.b16 %v755, %v754
    %v782 = vpack.c.b16 %v757, %v756
    %v783 = vpack.c.b16 %v759, %v758
    %v784 = vpack.c.b16 %v761, %v760
    %v785 = vpack.c.b16 %v763, %v762
    %v786 = vpack.c.b16 %v765, %v764
    %v787 = vpack.c.b16 %v767, %v766
    %v788 = vpack.c.b16 %v769, %v768
    %v808 = vsel %vm200, %v788, 0
    %810 = vmatpush.bf16.msra.mxu0 %v777
    %811 = vmatpush.bf16.msra.mxu0 %v776
    %812 = vmatpush.bf16.msra.mxu0 %v775
    %813 = vmatpush.bf16.msra.mxu0 %v774
    %814 = vmatpush.bf16.msra.mxu0 %v773
    %815 = vmatpush.bf16.msra.mxu0 %v772
    %816 = vmatpush.bf16.msra.mxu0 %v771
    %817 = vmatpush.bf16.msra.mxu0 %v770
    %818 = vmatmul.bf16.gmra.mxu0 %v78
    %v819 = vpop.f32.mrf.mxu0
    %v820 = vadd.f32 %v692, %v819
    %v821 = vpop.f32.mrf.mxu0
    %v822 = vadd.f32 %v692, %v821
    %823 = vdwg.mxu0
    %824 = vmatpush.bf16.msra.mxu0 %v785
    %825 = vmatpush.bf16.msra.mxu0 %v784
    %826 = vmatpush.bf16.msra.mxu0 %v783
    %827 = vmatpush.bf16.msra.mxu0 %v782
    %828 = vmatpush.bf16.msra.mxu0 %v781
    %829 = vmatpush.bf16.msra.mxu0 %v780
    %830 = vmatpush.bf16.msra.mxu0 %v779
    %831 = vmatpush.bf16.msra.mxu0 %v778
    %832 = vmatmul.bf16.gmra.mxu0 %v79
    %v833 = vpop.f32.mrf.mxu0
    %v834 = vadd.f32 %v820, %v833
    %v835 = vpop.f32.mrf.mxu0
    %v836 = vadd.f32 %v822, %v835
    %837 = vdwg.mxu0
    %838 = vmatpush.bf16.msra.mxu0 0
    %839 = vmatpush.bf16.msra.mxu0 0
    %840 = vmatpush.bf16.msra.mxu0 0
    %841 = vmatpush.bf16.msra.mxu0 0
    %842 = vmatpush.bf16.msra.mxu0 0
    %843 = vmatpush.bf16.msra.mxu0 %v808
    %844 = vmatpush.bf16.msra.mxu0 %v787
    %845 = vmatpush.bf16.msra.mxu0 %v786
    %846 = vmatmul.bf16.gmra.mxu0 %v198
    %v847 = vpop.f32.mrf.mxu0
    %v848 = vadd.f32 %v834, %v847
    %v849 = vpop.f32.mrf.mxu0
    %v850 = vadd.f32 %v836, %v849
    %851 = vdwg.mxu0
    %s852 = scalar_lea.vmem %s1, 608
    %v853 = vld [vmem:[%s852] sm:$0xf]
    %v854 = vld [vmem:[%s852 + $0x4] sm:$0xf]
    %v855 = vld [vmem:[%s852 + $0x8] sm:$0xf]
    %v856 = vld [vmem:[%s852 + $0xc] sm:$0xf]
    %v857 = vld [vmem:[%s852 + $0x10] sm:$0xf]
    %v858 = vld [vmem:[%s852 + $0x14] sm:$0xf]
    %v859 = vld [vmem:[%s852 + $0x18] sm:$0xf]
    %v860 = vld [vmem:[%s852 + $0x1c] sm:$0xf]
    %v861 = vld [vmem:[%s852 + $0x20] sm:$0xf]
    %v862 = vld [vmem:[%s852 + $0x24] sm:$0xf]
    %v863 = vld [vmem:[%s852 + $0x28] sm:$0xf]
    %v864 = vld [vmem:[%s852 + $0x2c] sm:$0xf]
    %v865 = vld [vmem:[%s852 + $0x30] sm:$0xf]
    %v866 = vld [vmem:[%s852 + $0x34] sm:$0xf]
    %v867 = vld [vmem:[%s852 + $0x38] sm:$0xf]
    %v868 = vld [vmem:[%s852 + $0x3c] sm:$0xf]
    %v869 = vld [vmem:[%s852 + $0x40] sm:$0xf]
    %v870 = vld [vmem:[%s852 + $0x44] sm:$0xf]
    %v871 = vld [vmem:[%s852 + $0x48] sm:$0xf]
    %v872 = vld [vmem:[%s852 + $0x4c] sm:$0xf]
    %v873 = vld [vmem:[%s852 + $0x50] sm:$0xf]
    %v874 = vld [vmem:[%s852 + $0x54] sm:$0xf]
    %v875 = vld [vmem:[%s852 + $0x58] sm:$0xf]
    %v876 = vld [vmem:[%s852 + $0x5c] sm:$0xf]
    %v877 = vld [vmem:[%s852 + $0x60] sm:$0xf]
    %v878 = vld [vmem:[%s852 + $0x64] sm:$0xf]
    %v879 = vld [vmem:[%s852 + $0x68] sm:$0xf]
    %v880 = vld [vmem:[%s852 + $0x6c] sm:$0xf]
    %v881 = vld [vmem:[%s852 + $0x70] sm:$0xf]
    %v882 = vld [vmem:[%s852 + $0x74] sm:$0xf]
    %v883 = vld [vmem:[%s852 + $0x78] sm:$0xf]
    %v884 = vld [vmem:[%s852 + $0x7c] sm:$0xf]
    %v885 = vld [vmem:[%s852 + $0x80] sm:$0xf]
    %v886 = vld [vmem:[%s852 + $0x84] sm:$0xf]
    %v887 = vld [vmem:[%s852 + $0x88] sm:$0xf]
    %v888 = vld [vmem:[%s852 + $0x8c] sm:$0xf]
    %v889 = vld [vmem:[%s852 + $0x90] sm:$0xf]
    %v890 = vld [vmem:[%s852 + $0x94] sm:$0x3]
    %s891 = scalar_lea.vmem %s3, 4
    %v892 = vld [vmem:[%s891] sm:$0x1]
    %v894 = vperm.slane %v892, 0
    %v934 = vunpack.c.l.b16 %v853
    %v935 = vunpack.c.l.b16 %v854
    %v936 = vunpack.c.l.b16 %v855
    %v937 = vunpack.c.l.b16 %v856
    %v938 = vunpack.c.l.b16 %v857
    %v939 = vunpack.c.l.b16 %v858
    %v940 = vunpack.c.l.b16 %v859
    %v941 = vunpack.c.l.b16 %v860
    %v942 = vunpack.c.l.b16 %v861
    %v943 = vunpack.c.l.b16 %v862
    %v944 = vunpack.c.l.b16 %v863
    %v945 = vunpack.c.l.b16 %v864
    %v946 = vunpack.c.l.b16 %v865
    %v947 = vunpack.c.l.b16 %v866
    %v948 = vunpack.c.l.b16 %v867
    %v949 = vunpack.c.l.b16 %v868
    %v950 = vunpack.c.l.b16 %v869
    %v951 = vunpack.c.l.b16 %v870
    %v952 = vunpack.c.l.b16 %v871
    %v953 = vunpack.c.l.b16 %v872
    %v954 = vunpack.c.l.b16 %v873
    %v955 = vunpack.c.l.b16 %v874
    %v956 = vunpack.c.l.b16 %v875
    %v957 = vunpack.c.l.b16 %v876
    %v958 = vunpack.c.l.b16 %v877
    %v959 = vunpack.c.l.b16 %v878
    %v960 = vunpack.c.l.b16 %v879
    %v961 = vunpack.c.l.b16 %v880
    %v962 = vunpack.c.l.b16 %v881
    %v963 = vunpack.c.l.b16 %v882
    %v964 = vunpack.c.l.b16 %v883
    %v965 = vunpack.c.l.b16 %v884
    %v966 = vunpack.c.l.b16 %v885
    %v967 = vunpack.c.l.b16 %v886
    %v968 = vunpack.c.l.b16 %v887
    %v969 = vunpack.c.l.b16 %v888
    %v970 = vunpack.c.l.b16 %v889
    %v971 = vunpack.c.l.b16 %v890
    %v972 = vpack.c.b16 %v935, %v934
    %v973 = vpack.c.b16 %v937, %v936
    %v974 = vpack.c.b16 %v939, %v938
    %v975 = vpack.c.b16 %v941, %v940
    %v976 = vpack.c.b16 %v943, %v942
    %v977 = vpack.c.b16 %v945, %v944
    %v978 = vpack.c.b16 %v947, %v946
    %v979 = vpack.c.b16 %v949, %v948
    %v980 = vpack.c.b16 %v951, %v950
    %v981 = vpack.c.b16 %v953, %v952
    %v982 = vpack.c.b16 %v955, %v954
    %v983 = vpack.c.b16 %v957, %v956
    %v984 = vpack.c.b16 %v959, %v958
    %v985 = vpack.c.b16 %v961, %v960
    %v986 = vpack.c.b16 %v963, %v962
    %v987 = vpack.c.b16 %v965, %v964
    %v988 = vpack.c.b16 %v967, %v966
    %v989 = vpack.c.b16 %v969, %v968
    %v990 = vpack.c.b16 %v971, %v970
    %v1010 = vsel %vm200, %v990, 0
    %1012 = vmatpush.bf16.msra.mxu0 %v979
    %1013 = vmatpush.bf16.msra.mxu0 %v978
    %1014 = vmatpush.bf16.msra.mxu0 %v977
    %1015 = vmatpush.bf16.msra.mxu0 %v976
    %1016 = vmatpush.bf16.msra.mxu0 %v975
    %1017 = vmatpush.bf16.msra.mxu0 %v974
    %1018 = vmatpush.bf16.msra.mxu0 %v973
    %1019 = vmatpush.bf16.msra.mxu0 %v972
    %1020 = vmatmul.bf16.gmra.mxu0 %v78
    %v1021 = vpop.f32.mrf.mxu0
    %v1022 = vadd.f32 %v894, %v1021
    %v1023 = vpop.f32.mrf.mxu0
    %v1024 = vadd.f32 %v894, %v1023
    %1025 = vdwg.mxu0
    %1026 = vmatpush.bf16.msra.mxu0 %v987
    %1027 = vmatpush.bf16.msra.mxu0 %v986
    %1028 = vmatpush.bf16.msra.mxu0 %v985
    %1029 = vmatpush.bf16.msra.mxu0 %v984
    %1030 = vmatpush.bf16.msra.mxu0 %v983
    %1031 = vmatpush.bf16.msra.mxu0 %v982
    %1032 = vmatpush.bf16.msra.mxu0 %v981
    %1033 = vmatpush.bf16.msra.mxu0 %v980
    %1034 = vmatmul.bf16.gmra.mxu0 %v79
    %v1035 = vpop.f32.mrf.mxu0
    %v1036 = vadd.f32 %v1022, %v1035
    %v1037 = vpop.f32.mrf.mxu0
    %v1038 = vadd.f32 %v1024, %v1037
    %1039 = vdwg.mxu0
    %1040 = vmatpush.bf16.msra.mxu0 0
    %1041 = vmatpush.bf16.msra.mxu0 0
    %1042 = vmatpush.bf16.msra.mxu0 0
    %1043 = vmatpush.bf16.msra.mxu0 0
    %1044 = vmatpush.bf16.msra.mxu0 0
    %1045 = vmatpush.bf16.msra.mxu0 %v1010
    %1046 = vmatpush.bf16.msra.mxu0 %v989
    %1047 = vmatpush.bf16.msra.mxu0 %v988
    %1048 = vmatmul.bf16.gmra.mxu0 %v198
    %v1049 = vpop.f32.mrf.mxu0
    %v1050 = vadd.f32 %v1036, %v1049
    %v1051 = vpop.f32.mrf.mxu0
    %v1052 = vadd.f32 %v1038, %v1051
    %1053 = vdwg.mxu0
    %s1054 = scalar_lea.vmem %s1, 760
    %v1055 = vld [vmem:[%s1054] sm:$0xf]
    %v1056 = vld [vmem:[%s1054 + $0x4] sm:$0xf]
    %v1057 = vld [vmem:[%s1054 + $0x8] sm:$0xf]
    %v1058 = vld [vmem:[%s1054 + $0xc] sm:$0xf]
    %v1059 = vld [vmem:[%s1054 + $0x10] sm:$0xf]
    %v1060 = vld [vmem:[%s1054 + $0x14] sm:$0xf]
    %v1061 = vld [vmem:[%s1054 + $0x18] sm:$0xf]
    %v1062 = vld [vmem:[%s1054 + $0x1c] sm:$0xf]
    %v1063 = vld [vmem:[%s1054 + $0x20] sm:$0xf]
    %v1064 = vld [vmem:[%s1054 + $0x24] sm:$0xf]
    %v1065 = vld [vmem:[%s1054 + $0x28] sm:$0xf]
    %v1066 = vld [vmem:[%s1054 + $0x2c] sm:$0xf]
    %v1067 = vld [vmem:[%s1054 + $0x30] sm:$0xf]
    %v1068 = vld [vmem:[%s1054 + $0x34] sm:$0xf]
    %v1069 = vld [vmem:[%s1054 + $0x38] sm:$0xf]
    %v1070 = vld [vmem:[%s1054 + $0x3c] sm:$0xf]
    %v1071 = vld [vmem:[%s1054 + $0x40] sm:$0xf]
    %v1072 = vld [vmem:[%s1054 + $0x44] sm:$0xf]
    %v1073 = vld [vmem:[%s1054 + $0x48] sm:$0xf]
    %v1074 = vld [vmem:[%s1054 + $0x4c] sm:$0xf]
    %v1075 = vld [vmem:[%s1054 + $0x50] sm:$0xf]
    %v1076 = vld [vmem:[%s1054 + $0x54] sm:$0xf]
    %v1077 = vld [vmem:[%s1054 + $0x58] sm:$0xf]
    %v1078 = vld [vmem:[%s1054 + $0x5c] sm:$0xf]
    %v1079 = vld [vmem:[%s1054 + $0x60] sm:$0xf]
    %v1080 = vld [vmem:[%s1054 + $0x64] sm:$0xf]
    %v1081 = vld [vmem:[%s1054 + $0x68] sm:$0xf]
    %v1082 = vld [vmem:[%s1054 + $0x6c] sm:$0xf]
    %v1083 = vld [vmem:[%s1054 + $0x70] sm:$0xf]
    %v1084 = vld [vmem:[%s1054 + $0x74] sm:$0xf]
    %v1085 = vld [vmem:[%s1054 + $0x78] sm:$0xf]
    %v1086 = vld [vmem:[%s1054 + $0x7c] sm:$0xf]
    %v1087 = vld [vmem:[%s1054 + $0x80] sm:$0xf]
    %v1088 = vld [vmem:[%s1054 + $0x84] sm:$0xf]
    %v1089 = vld [vmem:[%s1054 + $0x88] sm:$0xf]
    %v1090 = vld [vmem:[%s1054 + $0x8c] sm:$0xf]
    %v1091 = vld [vmem:[%s1054 + $0x90] sm:$0xf]
    %v1092 = vld [vmem:[%s1054 + $0x94] sm:$0x3]
    %s1093 = scalar_lea.vmem %s3, 5
    %v1094 = vld [vmem:[%s1093] sm:$0x1]
    %v1096 = vperm.slane %v1094, 0
    %v1136 = vunpack.c.l.b16 %v1055
    %v1137 = vunpack.c.l.b16 %v1056
    %v1138 = vunpack.c.l.b16 %v1057
    %v1139 = vunpack.c.l.b16 %v1058
    %v1140 = vunpack.c.l.b16 %v1059
    %v1141 = vunpack.c.l.b16 %v1060
    %v1142 = vunpack.c.l.b16 %v1061
    %v1143 = vunpack.c.l.b16 %v1062
    %v1144 = vunpack.c.l.b16 %v1063
    %v1145 = vunpack.c.l.b16 %v1064
    %v1146 = vunpack.c.l.b16 %v1065
    %v1147 = vunpack.c.l.b16 %v1066
    %v1148 = vunpack.c.l.b16 %v1067
    %v1149 = vunpack.c.l.b16 %v1068
    %v1150 = vunpack.c.l.b16 %v1069
    %v1151 = vunpack.c.l.b16 %v1070
    %v1152 = vunpack.c.l.b16 %v1071
    %v1153 = vunpack.c.l.b16 %v1072
    %v1154 = vunpack.c.l.b16 %v1073
    %v1155 = vunpack.c.l.b16 %v1074
    %v1156 = vunpack.c.l.b16 %v1075
    %v1157 = vunpack.c.l.b16 %v1076
    %v1158 = vunpack.c.l.b16 %v1077
    %v1159 = vunpack.c.l.b16 %v1078
    %v1160 = vunpack.c.l.b16 %v1079
    %v1161 = vunpack.c.l.b16 %v1080
    %v1162 = vunpack.c.l.b16 %v1081
    %v1163 = vunpack.c.l.b16 %v1082
    %v1164 = vunpack.c.l.b16 %v1083
    %v1165 = vunpack.c.l.b16 %v1084
    %v1166 = vunpack.c.l.b16 %v1085
    %v1167 = vunpack.c.l.b16 %v1086
    %v1168 = vunpack.c.l.b16 %v1087
    %v1169 = vunpack.c.l.b16 %v1088
    %v1170 = vunpack.c.l.b16 %v1089
    %v1171 = vunpack.c.l.b16 %v1090
    %v1172 = vunpack.c.l.b16 %v1091
    %v1173 = vunpack.c.l.b16 %v1092
    %v1174 = vpack.c.b16 %v1137, %v1136
    %v1175 = vpack.c.b16 %v1139, %v1138
    %v1176 = vpack.c.b16 %v1141, %v1140
    %v1177 = vpack.c.b16 %v1143, %v1142
    %v1178 = vpack.c.b16 %v1145, %v1144
    %v1179 = vpack.c.b16 %v1147, %v1146
    %v1180 = vpack.c.b16 %v1149, %v1148
    %v1181 = vpack.c.b16 %v1151, %v1150
    %v1182 = vpack.c.b16 %v1153, %v1152
    %v1183 = vpack.c.b16 %v1155, %v1154
    %v1184 = vpack.c.b16 %v1157, %v1156
    %v1185 = vpack.c.b16 %v1159, %v1158
    %v1186 = vpack.c.b16 %v1161, %v1160
    %v1187 = vpack.c.b16 %v1163, %v1162
    %v1188 = vpack.c.b16 %v1165, %v1164
    %v1189 = vpack.c.b16 %v1167, %v1166
    %v1190 = vpack.c.b16 %v1169, %v1168
    %v1191 = vpack.c.b16 %v1171, %v1170
    %v1192 = vpack.c.b16 %v1173, %v1172
    %v1212 = vsel %vm200, %v1192, 0
    %1214 = vmatpush.bf16.msra.mxu0 %v1181
    %1215 = vmatpush.bf16.msra.mxu0 %v1180
    %1216 = vmatpush.bf16.msra.mxu0 %v1179
    %1217 = vmatpush.bf16.msra.mxu0 %v1178
    %1218 = vmatpush.bf16.msra.mxu0 %v1177
    %1219 = vmatpush.bf16.msra.mxu0 %v1176
    %1220 = vmatpush.bf16.msra.mxu0 %v1175
    %1221 = vmatpush.bf16.msra.mxu0 %v1174
    %1222 = vmatmul.bf16.gmra.mxu0 %v78
    %v1223 = vpop.f32.mrf.mxu0
    %v1224 = vadd.f32 %v1096, %v1223
    %v1225 = vpop.f32.mrf.mxu0
    %v1226 = vadd.f32 %v1096, %v1225
    %1227 = vdwg.mxu0
    %1228 = vmatpush.bf16.msra.mxu0 %v1189
    %1229 = vmatpush.bf16.msra.mxu0 %v1188
    %1230 = vmatpush.bf16.msra.mxu0 %v1187
    %1231 = vmatpush.bf16.msra.mxu0 %v1186
    %1232 = vmatpush.bf16.msra.mxu0 %v1185
    %1233 = vmatpush.bf16.msra.mxu0 %v1184
    %1234 = vmatpush.bf16.msra.mxu0 %v1183
    %1235 = vmatpush.bf16.msra.mxu0 %v1182
    %1236 = vmatmul.bf16.gmra.mxu0 %v79
    %v1237 = vpop.f32.mrf.mxu0
    %v1238 = vadd.f32 %v1224, %v1237
    %v1239 = vpop.f32.mrf.mxu0
    %v1240 = vadd.f32 %v1226, %v1239
    %1241 = vdwg.mxu0
    %1242 = vmatpush.bf16.msra.mxu0 0
    %1243 = vmatpush.bf16.msra.mxu0 0
    %1244 = vmatpush.bf16.msra.mxu0 0
    %1245 = vmatpush.bf16.msra.mxu0 0
    %1246 = vmatpush.bf16.msra.mxu0 0
    %1247 = vmatpush.bf16.msra.mxu0 %v1212
    %1248 = vmatpush.bf16.msra.mxu0 %v1191
    %1249 = vmatpush.bf16.msra.mxu0 %v1190
    %1250 = vmatmul.bf16.gmra.mxu0 %v198
    %v1251 = vpop.f32.mrf.mxu0
    %v1252 = vadd.f32 %v1238, %v1251
    %v1253 = vpop.f32.mrf.mxu0
    %v1254 = vadd.f32 %v1240, %v1253
    %1255 = vdwg.mxu0
    %v1256 = vld [vmem:[%s2] sm:$0xf]
    %v1257 = vld [vmem:[%s2 + $0x4] sm:$0xf]
    %v1258 = vld [vmem:[%s2 + $0x8] sm:$0xf]
    %v1259 = vld [vmem:[%s2 + $0xc] sm:$0xf]
    %s1260 = scalar_lea.vmem %s2, 16
    %v1261 = vld [vmem:[%s1260] sm:$0xf]
    %v1262 = vld [vmem:[%s1260 + $0x4] sm:$0xf]
    %v1263 = vld [vmem:[%s1260 + $0x8] sm:$0xf]
    %v1264 = vld [vmem:[%s1260 + $0xc] sm:$0xf]
    %s1265 = scalar_lea.vmem %s2, 32
    %v1266 = vld [vmem:[%s1265] sm:$0xf]
    %v1267 = vld [vmem:[%s1265 + $0x4] sm:$0xf]
    %v1268 = vld [vmem:[%s1265 + $0x8] sm:$0xf]
    %v1269 = vld [vmem:[%s1265 + $0xc] sm:$0xf]
    %s1270 = scalar_lea.vmem %s2, 48
    %v1271 = vld [vmem:[%s1270] sm:$0xf]
    %v1272 = vld [vmem:[%s1270 + $0x4] sm:$0xf]
    %v1273 = vld [vmem:[%s1270 + $0x8] sm:$0xf]
    %v1274 = vld [vmem:[%s1270 + $0xc] sm:$0xf]
    %s1275 = scalar_lea.vmem %s2, 64
    %v1276 = vld [vmem:[%s1275] sm:$0xf]
    %v1277 = vld [vmem:[%s1275 + $0x4] sm:$0xf]
    %v1278 = vld [vmem:[%s1275 + $0x8] sm:$0xf]
    %v1279 = vld [vmem:[%s1275 + $0xc] sm:$0xf]
    %s1280 = scalar_lea.vmem %s2, 80
    %v1281 = vld [vmem:[%s1280] sm:$0xf]
    %v1282 = vld [vmem:[%s1280 + $0x4] sm:$0xf]
    %v1283 = vld [vmem:[%s1280 + $0x8] sm:$0xf]
    %v1284 = vld [vmem:[%s1280 + $0xc] sm:$0xf]
    %v1285 = vld [vmem:[%s4] sm:$0x1]
    %s1286 = scalar_lea.vmem %s4, 1
    %v1287 = vld [vmem:[%s1286] sm:$0x1]
    %s1288 = scalar_lea.vmem %s4, 2
    %v1289 = vld [vmem:[%s1288] sm:$0x1]
    %s1290 = scalar_lea.vmem %s4, 3
    %v1291 = vld [vmem:[%s1290] sm:$0x1]
    %s1292 = scalar_lea.vmem %s4, 4
    %v1293 = vld [vmem:[%s1292] sm:$0x1]
    %s1294 = scalar_lea.vmem %s4, 5
    %v1295 = vld [vmem:[%s1294] sm:$0x1]
    %v1297 = vperm.slane %v1285, 0
    %v1303 = vunpack.c.l.b16 %v1256
    %v1304 = vunpack.c.l.b16 %v1257
    %v1305 = vunpack.c.l.b16 %v1258
    %v1306 = vunpack.c.l.b16 %v1259
    %v1307 = vpack.c.b16 %v1304, %v1303
    %v1308 = vpack.c.b16 %v1306, %v1305
    %vm1311 = vcmask 261120
    %v1313 = vsel %vm1311, 0, 0
    %1315 = vmatpush.bf16.msra.mxu0 0
    %1316 = vmatpush.bf16.msra.mxu0 0
    %1317 = vmatpush.bf16.msra.mxu0 0
    %1318 = vmatpush.bf16.msra.mxu0 0
    %1319 = vmatpush.bf16.msra.mxu0 0
    %1320 = vmatpush.bf16.msra.mxu0 0
    %1321 = vmatpush.bf16.msra.mxu0 %v1308
    %1322 = vmatpush.bf16.msra.mxu0 %v1307
    %1323 = vmatmul.bf16.gmra.mxu0 %v1313
    %v1324 = vpop.f32.mrf.mxu0
    %v1325 = vadd.f32 %v1297, %v1324
    %v1326 = vpop.f32.mrf.mxu0
    %1327 = vdwg.mxu0
    %v1329 = vperm.slane %v1287, 0
    %v1335 = vunpack.c.l.b16 %v1261
    %v1336 = vunpack.c.l.b16 %v1262
    %v1337 = vunpack.c.l.b16 %v1263
    %v1338 = vunpack.c.l.b16 %v1264
    %v1339 = vpack.c.b16 %v1336, %v1335
    %v1340 = vpack.c.b16 %v1338, %v1337
    %1343 = vmatpush.bf16.msra.mxu0 0
    %1344 = vmatpush.bf16.msra.mxu0 0
    %1345 = vmatpush.bf16.msra.mxu0 0
    %1346 = vmatpush.bf16.msra.mxu0 0
    %1347 = vmatpush.bf16.msra.mxu0 0
    %1348 = vmatpush.bf16.msra.mxu0 0
    %1349 = vmatpush.bf16.msra.mxu0 %v1340
    %1350 = vmatpush.bf16.msra.mxu0 %v1339
    %1351 = vmatmul.bf16.gmra.mxu0 %v1313
    %v1352 = vpop.f32.mrf.mxu0
    %v1353 = vadd.f32 %v1329, %v1352
    %v1354 = vpop.f32.mrf.mxu0
    %1355 = vdwg.mxu0
    %v1357 = vperm.slane %v1289, 0
    %v1363 = vunpack.c.l.b16 %v1266
    %v1364 = vunpack.c.l.b16 %v1267
    %v1365 = vunpack.c.l.b16 %v1268
    %v1366 = vunpack.c.l.b16 %v1269
    %v1367 = vpack.c.b16 %v1364, %v1363
    %v1368 = vpack.c.b16 %v1366, %v1365
    %1371 = vmatpush.bf16.msra.mxu0 0
    %1372 = vmatpush.bf16.msra.mxu0 0
    %1373 = vmatpush.bf16.msra.mxu0 0
    %1374 = vmatpush.bf16.msra.mxu0 0
    %1375 = vmatpush.bf16.msra.mxu0 0
    %1376 = vmatpush.bf16.msra.mxu0 0
    %1377 = vmatpush.bf16.msra.mxu0 %v1368
    %1378 = vmatpush.bf16.msra.mxu0 %v1367
    %1379 = vmatmul.bf16.gmra.mxu0 %v1313
    %v1380 = vpop.f32.mrf.mxu0
    %v1381 = vadd.f32 %v1357, %v1380
    %v1382 = vpop.f32.mrf.mxu0
    %1383 = vdwg.mxu0
    %v1385 = vperm.slane %v1291, 0
    %v1391 = vunpack.c.l.b16 %v1271
    %v1392 = vunpack.c.l.b16 %v1272
    %v1393 = vunpack.c.l.b16 %v1273
    %v1394 = vunpack.c.l.b16 %v1274
    %v1395 = vpack.c.b16 %v1392, %v1391
    %v1396 = vpack.c.b16 %v1394, %v1393
    %1399 = vmatpush.bf16.msra.mxu0 0
    %1400 = vmatpush.bf16.msra.mxu0 0
    %1401 = vmatpush.bf16.msra.mxu0 0
    %1402 = vmatpush.bf16.msra.mxu0 0
    %1403 = vmatpush.bf16.msra.mxu0 0
    %1404 = vmatpush.bf16.msra.mxu0 0
    %1405 = vmatpush.bf16.msra.mxu0 %v1396
    %1406 = vmatpush.bf16.msra.mxu0 %v1395
    %1407 = vmatmul.bf16.gmra.mxu0 %v1313
    %v1408 = vpop.f32.mrf.mxu0
    %v1409 = vadd.f32 %v1385, %v1408
    %v1410 = vpop.f32.mrf.mxu0
    %1411 = vdwg.mxu0
    %v1413 = vperm.slane %v1293, 0
    %v1419 = vunpack.c.l.b16 %v1276
    %v1420 = vunpack.c.l.b16 %v1277
    %v1421 = vunpack.c.l.b16 %v1278
    %v1422 = vunpack.c.l.b16 %v1279
    %v1423 = vpack.c.b16 %v1420, %v1419
    %v1424 = vpack.c.b16 %v1422, %v1421
    %1427 = vmatpush.bf16.msra.mxu0 0
    %1428 = vmatpush.bf16.msra.mxu0 0
    %1429 = vmatpush.bf16.msra.mxu0 0
    %1430 = vmatpush.bf16.msra.mxu0 0
    %1431 = vmatpush.bf16.msra.mxu0 0
    %1432 = vmatpush.bf16.msra.mxu0 0
    %1433 = vmatpush.bf16.msra.mxu0 %v1424
    %1434 = vmatpush.bf16.msra.mxu0 %v1423
    %1435 = vmatmul.bf16.gmra.mxu0 %v1313
    %v1436 = vpop.f32.mrf.mxu0
    %v1437 = vadd.f32 %v1413, %v1436
    %v1438 = vpop.f32.mrf.mxu0
    %1439 = vdwg.mxu0
    %v1441 = vperm.slane %v1295, 0
    %v1447 = vunpack.c.l.b16 %v1281
    %v1448 = vunpack.c.l.b16 %v1282
    %v1449 = vunpack.c.l.b16 %v1283
    %v1450 = vunpack.c.l.b16 %v1284
    %v1451 = vpack.c.b16 %v1448, %v1447
    %v1452 = vpack.c.b16 %v1450, %v1449
    %1455 = vmatpush.bf16.msra.mxu0 0
    %1456 = vmatpush.bf16.msra.mxu0 0
    %1457 = vmatpush.bf16.msra.mxu0 0
    %1458 = vmatpush.bf16.msra.mxu0 0
    %1459 = vmatpush.bf16.msra.mxu0 0
    %1460 = vmatpush.bf16.msra.mxu0 0
    %1461 = vmatpush.bf16.msra.mxu0 %v1452
    %1462 = vmatpush.bf16.msra.mxu0 %v1451
    %1463 = vmatmul.bf16.gmra.mxu0 %v1313
    %v1464 = vpop.f32.mrf.mxu0
    %v1465 = vadd.f32 %v1441, %v1464
    %v1466 = vpop.f32.mrf.mxu0
    %1467 = vdwg.mxu0
    %v1469 = vrot.slane %v1325, 1
    %v1472 = vadd.f32 %v242, %v1325
    %v1473 = vadd.f32 %v244, %v1469
    %v1474 = vxor.u32 %v1472, 2147483648
    %v1475 = vxor.u32 %v1473, 2147483648
    %v1476 = vmul.f32 %v1474, 1.442695
    %v1477 = vpow.pop %v1476
    %v1478 = vmul.f32 %v1475, 1.442695
    %v1479 = vpow.pop %v1478
    %v1480 = vadd.f32 %v1477, 1.0
    %v1481 = vadd.f32 %v1479, 1.0
    %v1482 = vrcp.pop %v1480
    %v1483 = vmul.f32 %v1480, %v1482
    %v1484 = vsub.f32 1.0, %v1483
    %v1485 = vmul.f32 %v1482, %v1484
    %v1486 = vadd.f32 %v1482, %v1485
    %vm1487 = vweird.f32 %v1480
    %vm1488 = vweird.f32 %v1482
    %vm1489 = vmor %vm1487, %vm1488
    %v1490 = vsel %vm1489, %v1482, %v1486
    %v1491 = vand.u32 2147483647, %v1480
    %vm1492 = vcmp.eq.f32.partialorder %v1491, 8.507059e+37
    %v1493 = vand.u32 %v1480, 2147483648
    %v1494 = vor.u32 1.1754944e-38, %v1493
    %v1495 = vsel %vm1492, %v1494, %v1490
    %v1496 = vmul.f32 1.0, %v1495
    %v1497 = vrcp.pop %v1481
    %v1498 = vmul.f32 %v1481, %v1497
    %v1499 = vsub.f32 1.0, %v1498
    %v1500 = vmul.f32 %v1497, %v1499
    %v1501 = vadd.f32 %v1497, %v1500
    %vm1502 = vweird.f32 %v1481
    %vm1503 = vweird.f32 %v1497
    %vm1504 = vmor %vm1502, %vm1503
    %v1505 = vsel %vm1504, %v1497, %v1501
    %v1506 = vand.u32 2147483647, %v1481
    %vm1507 = vcmp.eq.f32.partialorder %v1506, 8.507059e+37
    %v1508 = vand.u32 %v1481, 2147483648
    %v1509 = vor.u32 1.1754944e-38, %v1508
    %v1510 = vsel %vm1507, %v1509, %v1505
    %v1511 = vmul.f32 1.0, %v1510
    %v1513 = vrot.slane %v1353, 1
    %v1516 = vadd.f32 %v444, %v1353
    %v1517 = vadd.f32 %v446, %v1513
    %v1518 = vxor.u32 %v1516, 2147483648
    %v1519 = vxor.u32 %v1517, 2147483648
    %v1520 = vmul.f32 %v1518, 1.442695
    %v1521 = vpow.pop %v1520
    %v1522 = vmul.f32 %v1519, 1.442695
    %v1523 = vpow.pop %v1522
    %v1524 = vadd.f32 %v1521, 1.0
    %v1525 = vadd.f32 %v1523, 1.0
    %v1526 = vrcp.pop %v1524
    %v1527 = vmul.f32 %v1524, %v1526
    %v1528 = vsub.f32 1.0, %v1527
    %v1529 = vmul.f32 %v1526, %v1528
    %v1530 = vadd.f32 %v1526, %v1529
    %vm1531 = vweird.f32 %v1524
    %vm1532 = vweird.f32 %v1526
    %vm1533 = vmor %vm1531, %vm1532
    %v1534 = vsel %vm1533, %v1526, %v1530
    %v1535 = vand.u32 2147483647, %v1524
    %vm1536 = vcmp.eq.f32.partialorder %v1535, 8.507059e+37
    %v1537 = vand.u32 %v1524, 2147483648
    %v1538 = vor.u32 1.1754944e-38, %v1537
    %v1539 = vsel %vm1536, %v1538, %v1534
    %v1540 = vmul.f32 1.0, %v1539
    %v1541 = vrcp.pop %v1525
    %v1542 = vmul.f32 %v1525, %v1541
    %v1543 = vsub.f32 1.0, %v1542
    %v1544 = vmul.f32 %v1541, %v1543
    %v1545 = vadd.f32 %v1541, %v1544
    %vm1546 = vweird.f32 %v1525
    %vm1547 = vweird.f32 %v1541
    %vm1548 = vmor %vm1546, %vm1547
    %v1549 = vsel %vm1548, %v1541, %v1545
    %v1550 = vand.u32 2147483647, %v1525
    %vm1551 = vcmp.eq.f32.partialorder %v1550, 8.507059e+37
    %v1552 = vand.u32 %v1525, 2147483648
    %v1553 = vor.u32 1.1754944e-38, %v1552
    %v1554 = vsel %vm1551, %v1553, %v1549
    %v1555 = vmul.f32 1.0, %v1554
    %v1557 = vrot.slane %v1381, 1
    %v1560 = vmul.f32 %v1496, %v1381
    %v1561 = vmul.f32 %v1511, %v1557
    %v1562 = vadd.f32 %v646, %v1560
    %v1563 = vadd.f32 %v648, %v1561
    %v1564 = vtanh.pop %v1562
    %v1565 = vtanh.pop %v1563
    %v1566 = vsub.f32 1.0, %v1540
    %v1567 = vsub.f32 1.0, %v1555
    %v1568 = vmul.f32 %v1566, %v1564
    %v1569 = vmul.f32 %v1567, %v1565
    %v1570 = vmul.f32 %v1540, 0.0
    %v1571 = vmul.f32 %v1555, 0.0
    %v1572 = vadd.f32 %v1568, %v1570
    %v1573 = vadd.f32 %v1569, %v1571
    %v1575 = vrot.slane %v1409, 1
    %v1576 = vrot.slane %v1409, 2
    %v1579 = vadd.f32 %v848, %v1575
    %v1580 = vadd.f32 %v850, %v1576
    %v1581 = vxor.u32 %v1579, 2147483648
    %v1582 = vxor.u32 %v1580, 2147483648
    %v1583 = vmul.f32 %v1581, 1.442695
    %v1584 = vpow.pop %v1583
    %v1585 = vmul.f32 %v1582, 1.442695
    %v1586 = vpow.pop %v1585
    %v1587 = vadd.f32 %v1584, 1.0
    %v1588 = vadd.f32 %v1586, 1.0
    %v1589 = vrcp.pop %v1587
    %v1590 = vmul.f32 %v1587, %v1589
    %v1591 = vsub.f32 1.0, %v1590
    %v1592 = vmul.f32 %v1589, %v1591
    %v1593 = vadd.f32 %v1589, %v1592
    %vm1594 = vweird.f32 %v1587
    %vm1595 = vweird.f32 %v1589
    %vm1596 = vmor %vm1594, %vm1595
    %v1597 = vsel %vm1596, %v1589, %v1593
    %v1598 = vand.u32 2147483647, %v1587
    %vm1599 = vcmp.eq.f32.partialorder %v1598, 8.507059e+37
    %v1600 = vand.u32 %v1587, 2147483648
    %v1601 = vor.u32 1.1754944e-38, %v1600
    %v1602 = vsel %vm1599, %v1601, %v1597
    %v1603 = vmul.f32 1.0, %v1602
    %v1604 = vrcp.pop %v1588
    %v1605 = vmul.f32 %v1588, %v1604
    %v1606 = vsub.f32 1.0, %v1605
    %v1607 = vmul.f32 %v1604, %v1606
    %v1608 = vadd.f32 %v1604, %v1607
    %vm1609 = vweird.f32 %v1588
    %vm1610 = vweird.f32 %v1604
    %vm1611 = vmor %vm1609, %vm1610
    %v1612 = vsel %vm1611, %v1604, %v1608
    %v1613 = vand.u32 2147483647, %v1588
    %vm1614 = vcmp.eq.f32.partialorder %v1613, 8.507059e+37
    %v1615 = vand.u32 %v1588, 2147483648
    %v1616 = vor.u32 1.1754944e-38, %v1615
    %v1617 = vsel %vm1614, %v1616, %v1612
    %v1618 = vmul.f32 1.0, %v1617
    %v1620 = vrot.slane %v1437, 1
    %v1621 = vrot.slane %v1437, 2
    %v1624 = vadd.f32 %v1050, %v1620
    %v1625 = vadd.f32 %v1052, %v1621
    %v1626 = vxor.u32 %v1624, 2147483648
    %v1627 = vxor.u32 %v1625, 2147483648
    %v1628 = vmul.f32 %v1626, 1.442695
    %v1629 = vpow.pop %v1628
    %v1630 = vmul.f32 %v1627, 1.442695
    %v1631 = vpow.pop %v1630
    %v1632 = vadd.f32 %v1629, 1.0
    %v1633 = vadd.f32 %v1631, 1.0
    %v1634 = vrcp.pop %v1632
    %v1635 = vmul.f32 %v1632, %v1634
    %v1636 = vsub.f32 1.0, %v1635
    %v1637 = vmul.f32 %v1634, %v1636
    %v1638 = vadd.f32 %v1634, %v1637
    %vm1639 = vweird.f32 %v1632
    %vm1640 = vweird.f32 %v1634
    %vm1641 = vmor %vm1639, %vm1640
    %v1642 = vsel %vm1641, %v1634, %v1638
    %v1643 = vand.u32 2147483647, %v1632
    %vm1644 = vcmp.eq.f32.partialorder %v1643, 8.507059e+37
    %v1645 = vand.u32 %v1632, 2147483648
    %v1646 = vor.u32 1.1754944e-38, %v1645
    %v1647 = vsel %vm1644, %v1646, %v1642
    %v1648 = vmul.f32 1.0, %v1647
    %v1649 = vrcp.pop %v1633
    %v1650 = vmul.f32 %v1633, %v1649
    %v1651 = vsub.f32 1.0, %v1650
    %v1652 = vmul.f32 %v1649, %v1651
    %v1653 = vadd.f32 %v1649, %v1652
    %vm1654 = vweird.f32 %v1633
    %vm1655 = vweird.f32 %v1649
    %vm1656 = vmor %vm1654, %vm1655
    %v1657 = vsel %vm1656, %v1649, %v1653
    %v1658 = vand.u32 2147483647, %v1633
    %vm1659 = vcmp.eq.f32.partialorder %v1658, 8.507059e+37
    %v1660 = vand.u32 %v1633, 2147483648
    %v1661 = vor.u32 1.1754944e-38, %v1660
    %v1662 = vsel %vm1659, %v1661, %v1657
    %v1663 = vmul.f32 1.0, %v1662
    %v1665 = vrot.slane %v1465, 1
    %v1666 = vrot.slane %v1465, 2
    %v1669 = vmul.f32 %v1603, %v1665
    %v1670 = vmul.f32 %v1618, %v1666
    %v1671 = vadd.f32 %v1252, %v1669
    %v1672 = vadd.f32 %v1254, %v1670
    %v1673 = vtanh.pop %v1671
    %v1674 = vtanh.pop %v1672
    %v1675 = vsub.f32 1.0, %v1648
    %v1676 = vsub.f32 1.0, %v1663
    %v1677 = vmul.f32 %v1675, %v1673
    %v1678 = vmul.f32 %v1676, %v1674
    %v1679 = vmul.f32 %v1648, 0.0
    %v1680 = vmul.f32 %v1663, 0.0
    %v1681 = vadd.f32 %v1677, %v1679
    %v1682 = vadd.f32 %v1678, %v1680
    %v1683 = vpack.c.bf16 %v1572, %v1572
    %v1684 = vpack.c.bf16 %v1573, %v1573
    %v1687 = vunpack.c.l.b16 %v1683
    %v1688 = vunpack.c.l.b16 %v1684
    %v1689 = vrot.slane %v1688, 7
    %vm1690 = vcmask 1041409
    %v1691 = vsel %vm1690, %v1689, %v1687
    %v1692 = vpack.c.b16 %v1691, %v1691
    %v1694 = vsel %vm1311, %v1692, 0
    %1696 = vmatpush.bf16.msra.mxu0 0
    %1697 = vmatpush.bf16.msra.mxu0 0
    %1698 = vmatpush.bf16.msra.mxu0 0
    %1699 = vmatpush.bf16.msra.mxu0 0
    %1700 = vmatpush.bf16.msra.mxu0 0
    %1701 = vmatpush.bf16.msra.mxu0 0
    %1702 = vmatpush.bf16.msra.mxu0 %v1308
    %1703 = vmatpush.bf16.msra.mxu0 %v1307
    %1704 = vmatmul.bf16.gmra.mxu0 %v1694
    %v1705 = vpop.f32.mrf.mxu0
    %v1706 = vadd.f32 %v1297, %v1705
    %v1707 = vpop.f32.mrf.mxu0
    %1708 = vdwg.mxu0
    %1709 = vmatpush.bf16.msra.mxu0 0
    %1710 = vmatpush.bf16.msra.mxu0 0
    %1711 = vmatpush.bf16.msra.mxu0 0
    %1712 = vmatpush.bf16.msra.mxu0 0
    %1713 = vmatpush.bf16.msra.mxu0 0
    %1714 = vmatpush.bf16.msra.mxu0 0
    %1715 = vmatpush.bf16.msra.mxu0 %v1340
    %1716 = vmatpush.bf16.msra.mxu0 %v1339
    %1717 = vmatmul.bf16.gmra.mxu0 %v1694
    %v1718 = vpop.f32.mrf.mxu0
    %v1719 = vadd.f32 %v1329, %v1718
    %v1720 = vpop.f32.mrf.mxu0
    %1721 = vdwg.mxu0
    %1722 = vmatpush.bf16.msra.mxu0 0
    %1723 = vmatpush.bf16.msra.mxu0 0
    %1724 = vmatpush.bf16.msra.mxu0 0
    %1725 = vmatpush.bf16.msra.mxu0 0
    %1726 = vmatpush.bf16.msra.mxu0 0
    %1727 = vmatpush.bf16.msra.mxu0 0
    %1728 = vmatpush.bf16.msra.mxu0 %v1368
    %1729 = vmatpush.bf16.msra.mxu0 %v1367
    %1730 = vmatmul.bf16.gmra.mxu0 %v1694
    %v1731 = vpop.f32.mrf.mxu0
    %v1732 = vadd.f32 %v1357, %v1731
    %v1733 = vpop.f32.mrf.mxu0
    %1734 = vdwg.mxu0
    %v1735 = vpack.c.bf16 %v1681, %v1681
    %v1736 = vpack.c.bf16 %v1682, %v1682
    %v1739 = vunpack.c.l.b16 %v1735
    %v1740 = vunpack.c.l.b16 %v1736
    %v1741 = vrot.slane %v1739, 7
    %v1742 = vrot.slane %v1740, 6
    %v1743 = vsel %vm1690, %v1742, %v1741
    %v1744 = vpack.c.b16 %v1743, %v1743
    %v1746 = vsel %vm1311, %v1744, 0
    %1748 = vmatpush.bf16.msra.mxu0 0
    %1749 = vmatpush.bf16.msra.mxu0 0
    %1750 = vmatpush.bf16.msra.mxu0 0
    %1751 = vmatpush.bf16.msra.mxu0 0
    %1752 = vmatpush.bf16.msra.mxu0 0
    %1753 = vmatpush.bf16.msra.mxu0 0
    %1754 = vmatpush.bf16.msra.mxu0 %v1396
    %1755 = vmatpush.bf16.msra.mxu0 %v1395
    %1756 = vmatmul.bf16.gmra.mxu0 %v1746
    %v1757 = vpop.f32.mrf.mxu0
    %v1758 = vadd.f32 %v1385, %v1757
    %v1759 = vpop.f32.mrf.mxu0
    %1760 = vdwg.mxu0
    %1761 = vmatpush.bf16.msra.mxu0 0
    %1762 = vmatpush.bf16.msra.mxu0 0
    %1763 = vmatpush.bf16.msra.mxu0 0
    %1764 = vmatpush.bf16.msra.mxu0 0
    %1765 = vmatpush.bf16.msra.mxu0 0
    %1766 = vmatpush.bf16.msra.mxu0 0
    %1767 = vmatpush.bf16.msra.mxu0 %v1424
    %1768 = vmatpush.bf16.msra.mxu0 %v1423
    %1769 = vmatmul.bf16.gmra.mxu0 %v1746
    %v1770 = vpop.f32.mrf.mxu0
    %v1771 = vadd.f32 %v1413, %v1770
    %v1772 = vpop.f32.mrf.mxu0
    %1773 = vdwg.mxu0
    %1774 = vmatpush.bf16.msra.mxu0 0
    %1775 = vmatpush.bf16.msra.mxu0 0
    %1776 = vmatpush.bf16.msra.mxu0 0
    %1777 = vmatpush.bf16.msra.mxu0 0
    %1778 = vmatpush.bf16.msra.mxu0 0
    %1779 = vmatpush.bf16.msra.mxu0 0
    %1780 = vmatpush.bf16.msra.mxu0 %v1452
    %1781 = vmatpush.bf16.msra.mxu0 %v1451
    %1782 = vmatmul.bf16.gmra.mxu0 %v1746
    %v1783 = vpop.f32.mrf.mxu0
    %v1784 = vadd.f32 %v1441, %v1783
    %v1785 = vpop.f32.mrf.mxu0
    %1786 = vdwg.mxu0
    %v1788 = vrot.slane %v1706, 7
    %v1791 = vadd.f32 %v242, %v1788
    %v1792 = vadd.f32 %v244, %v1706
    %v1793 = vxor.u32 %v1791, 2147483648
    %v1794 = vxor.u32 %v1792, 2147483648
    %v1795 = vmul.f32 %v1793, 1.442695
    %v1796 = vpow.pop %v1795
    %v1797 = vmul.f32 %v1794, 1.442695
    %v1798 = vpow.pop %v1797
    %v1799 = vadd.f32 %v1796, 1.0
    %v1800 = vadd.f32 %v1798, 1.0
    %v1801 = vrcp.pop %v1799
    %v1802 = vmul.f32 %v1799, %v1801
    %v1803 = vsub.f32 1.0, %v1802
    %v1804 = vmul.f32 %v1801, %v1803
    %v1805 = vadd.f32 %v1801, %v1804
    %vm1806 = vweird.f32 %v1799
    %vm1807 = vweird.f32 %v1801
    %vm1808 = vmor %vm1806, %vm1807
    %v1809 = vsel %vm1808, %v1801, %v1805
    %v1810 = vand.u32 2147483647, %v1799
    %vm1811 = vcmp.eq.f32.partialorder %v1810, 8.507059e+37
    %v1812 = vand.u32 %v1799, 2147483648
    %v1813 = vor.u32 1.1754944e-38, %v1812
    %v1814 = vsel %vm1811, %v1813, %v1809
    %v1815 = vmul.f32 1.0, %v1814
    %v1816 = vrcp.pop %v1800
    %v1817 = vmul.f32 %v1800, %v1816
    %v1818 = vsub.f32 1.0, %v1817
    %v1819 = vmul.f32 %v1816, %v1818
    %v1820 = vadd.f32 %v1816, %v1819
    %vm1821 = vweird.f32 %v1800
    %vm1822 = vweird.f32 %v1816
    %vm1823 = vmor %vm1821, %vm1822
    %v1824 = vsel %vm1823, %v1816, %v1820
    %v1825 = vand.u32 2147483647, %v1800
    %vm1826 = vcmp.eq.f32.partialorder %v1825, 8.507059e+37
    %v1827 = vand.u32 %v1800, 2147483648
    %v1828 = vor.u32 1.1754944e-38, %v1827
    %v1829 = vsel %vm1826, %v1828, %v1824
    %v1830 = vmul.f32 1.0, %v1829
    %v1832 = vrot.slane %v1719, 7
    %v1835 = vadd.f32 %v444, %v1832
    %v1836 = vadd.f32 %v446, %v1719
    %v1837 = vxor.u32 %v1835, 2147483648
    %v1838 = vxor.u32 %v1836, 2147483648
    %v1839 = vmul.f32 %v1837, 1.442695
    %v1840 = vpow.pop %v1839
    %v1841 = vmul.f32 %v1838, 1.442695
    %v1842 = vpow.pop %v1841
    %v1843 = vadd.f32 %v1840, 1.0
    %v1844 = vadd.f32 %v1842, 1.0
    %v1845 = vrcp.pop %v1843
    %v1846 = vmul.f32 %v1843, %v1845
    %v1847 = vsub.f32 1.0, %v1846
    %v1848 = vmul.f32 %v1845, %v1847
    %v1849 = vadd.f32 %v1845, %v1848
    %vm1850 = vweird.f32 %v1843
    %vm1851 = vweird.f32 %v1845
    %vm1852 = vmor %vm1850, %vm1851
    %v1853 = vsel %vm1852, %v1845, %v1849
    %v1854 = vand.u32 2147483647, %v1843
    %vm1855 = vcmp.eq.f32.partialorder %v1854, 8.507059e+37
    %v1856 = vand.u32 %v1843, 2147483648
    %v1857 = vor.u32 1.1754944e-38, %v1856
    %v1858 = vsel %vm1855, %v1857, %v1853
    %v1859 = vmul.f32 1.0, %v1858
    %v1860 = vrcp.pop %v1844
    %v1861 = vmul.f32 %v1844, %v1860
    %v1862 = vsub.f32 1.0, %v1861
    %v1863 = vmul.f32 %v1860, %v1862
    %v1864 = vadd.f32 %v1860, %v1863
    %vm1865 = vweird.f32 %v1844
    %vm1866 = vweird.f32 %v1860
    %vm1867 = vmor %vm1865, %vm1866
    %v1868 = vsel %vm1867, %v1860, %v1864
    %v1869 = vand.u32 2147483647, %v1844
    %vm1870 = vcmp.eq.f32.partialorder %v1869, 8.507059e+37
    %v1871 = vand.u32 %v1844, 2147483648
    %v1872 = vor.u32 1.1754944e-38, %v1871
    %v1873 = vsel %vm1870, %v1872, %v1868
    %v1874 = vmul.f32 1.0, %v1873
    %v1876 = vrot.slane %v1732, 7
    %v1879 = vmul.f32 %v1815, %v1876
    %v1880 = vmul.f32 %v1830, %v1732
    %v1881 = vadd.f32 %v646, %v1879
    %v1882 = vadd.f32 %v648, %v1880
    %v1883 = vtanh.pop %v1881
    %v1884 = vtanh.pop %v1882
    %v1885 = vsub.f32 1.0, %v1859
    %v1886 = vsub.f32 1.0, %v1874
    %v1887 = vmul.f32 %v1885, %v1883
    %v1888 = vmul.f32 %v1886, %v1884
    %v1891 = vrot.slane %v1572, 7
    %v1892 = vrot.slane %v1573, 7
    %v1895 = vmul.f32 %v1859, %v1891
    %v1896 = vmul.f32 %v1874, %v1892
    %v1897 = vadd.f32 %v1887, %v1895
    %v1898 = vadd.f32 %v1888, %v1896
    %v1900 = vrot.slane %v1758, 2
    %v1901 = vrot.slane %v1758, 3
    %v1904 = vadd.f32 %v848, %v1900
    %v1905 = vadd.f32 %v850, %v1901
    %v1906 = vxor.u32 %v1904, 2147483648
    %v1907 = vxor.u32 %v1905, 2147483648
    %v1908 = vmul.f32 %v1906, 1.442695
    %v1909 = vpow.pop %v1908
    %v1910 = vmul.f32 %v1907, 1.442695
    %v1911 = vpow.pop %v1910
    %v1912 = vadd.f32 %v1909, 1.0
    %v1913 = vadd.f32 %v1911, 1.0
    %v1914 = vrcp.pop %v1912
    %v1915 = vmul.f32 %v1912, %v1914
    %v1916 = vsub.f32 1.0, %v1915
    %v1917 = vmul.f32 %v1914, %v1916
    %v1918 = vadd.f32 %v1914, %v1917
    %vm1919 = vweird.f32 %v1912
    %vm1920 = vweird.f32 %v1914
    %vm1921 = vmor %vm1919, %vm1920
    %v1922 = vsel %vm1921, %v1914, %v1918
    %v1923 = vand.u32 2147483647, %v1912
    %vm1924 = vcmp.eq.f32.partialorder %v1923, 8.507059e+37
    %v1925 = vand.u32 %v1912, 2147483648
    %v1926 = vor.u32 1.1754944e-38, %v1925
    %v1927 = vsel %vm1924, %v1926, %v1922
    %v1928 = vmul.f32 1.0, %v1927
    %v1929 = vrcp.pop %v1913
    %v1930 = vmul.f32 %v1913, %v1929
    %v1931 = vsub.f32 1.0, %v1930
    %v1932 = vmul.f32 %v1929, %v1931
    %v1933 = vadd.f32 %v1929, %v1932
    %vm1934 = vweird.f32 %v1913
    %vm1935 = vweird.f32 %v1929
    %vm1936 = vmor %vm1934, %vm1935
    %v1937 = vsel %vm1936, %v1929, %v1933
    %v1938 = vand.u32 2147483647, %v1913
    %vm1939 = vcmp.eq.f32.partialorder %v1938, 8.507059e+37
    %v1940 = vand.u32 %v1913, 2147483648
    %v1941 = vor.u32 1.1754944e-38, %v1940
    %v1942 = vsel %vm1939, %v1941, %v1937
    %v1943 = vmul.f32 1.0, %v1942
    %v1945 = vrot.slane %v1771, 2
    %v1946 = vrot.slane %v1771, 3
    %v1949 = vadd.f32 %v1050, %v1945
    %v1950 = vadd.f32 %v1052, %v1946
    %v1951 = vxor.u32 %v1949, 2147483648
    %v1952 = vxor.u32 %v1950, 2147483648
    %v1953 = vmul.f32 %v1951, 1.442695
    %v1954 = vpow.pop %v1953
    %v1955 = vmul.f32 %v1952, 1.442695
    %v1956 = vpow.pop %v1955
    %v1957 = vadd.f32 %v1954, 1.0
    %v1958 = vadd.f32 %v1956, 1.0
    %v1959 = vrcp.pop %v1957
    %v1960 = vmul.f32 %v1957, %v1959
    %v1961 = vsub.f32 1.0, %v1960
    %v1962 = vmul.f32 %v1959, %v1961
    %v1963 = vadd.f32 %v1959, %v1962
    %vm1964 = vweird.f32 %v1957
    %vm1965 = vweird.f32 %v1959
    %vm1966 = vmor %vm1964, %vm1965
    %v1967 = vsel %vm1966, %v1959, %v1963
    %v1968 = vand.u32 2147483647, %v1957
    %vm1969 = vcmp.eq.f32.partialorder %v1968, 8.507059e+37
    %v1970 = vand.u32 %v1957, 2147483648
    %v1971 = vor.u32 1.1754944e-38, %v1970
    %v1972 = vsel %vm1969, %v1971, %v1967
    %v1973 = vmul.f32 1.0, %v1972
    %v1974 = vrcp.pop %v1958
    %v1975 = vmul.f32 %v1958, %v1974
    %v1976 = vsub.f32 1.0, %v1975
    %v1977 = vmul.f32 %v1974, %v1976
    %v1978 = vadd.f32 %v1974, %v1977
    %vm1979 = vweird.f32 %v1958
    %vm1980 = vweird.f32 %v1974
    %vm1981 = vmor %vm1979, %vm1980
    %v1982 = vsel %vm1981, %v1974, %v1978
    %v1983 = vand.u32 2147483647, %v1958
    %vm1984 = vcmp.eq.f32.partialorder %v1983, 8.507059e+37
    %v1985 = vand.u32 %v1958, 2147483648
    %v1986 = vor.u32 1.1754944e-38, %v1985
    %v1987 = vsel %vm1984, %v1986, %v1982
    %v1988 = vmul.f32 1.0, %v1987
    %v1990 = vrot.slane %v1784, 2
    %v1991 = vrot.slane %v1784, 3
    %v1994 = vmul.f32 %v1928, %v1990
    %v1995 = vmul.f32 %v1943, %v1991
    %v1996 = vadd.f32 %v1252, %v1994
    %v1997 = vadd.f32 %v1254, %v1995
    %v1998 = vtanh.pop %v1996
    %v1999 = vtanh.pop %v1997
    %v2000 = vsub.f32 1.0, %v1973
    %v2001 = vsub.f32 1.0, %v1988
    %v2002 = vmul.f32 %v2000, %v1998
    %v2003 = vmul.f32 %v2001, %v1999
    %v2006 = vrot.slane %v1681, 1
    %v2007 = vrot.slane %v1682, 1
    %v2010 = vmul.f32 %v1973, %v2006
    %v2011 = vmul.f32 %v1988, %v2007
    %v2012 = vadd.f32 %v2002, %v2010
    %v2013 = vadd.f32 %v2003, %v2011
    %v2014 = vpack.c.bf16 %v1897, %v1897
    %v2015 = vpack.c.bf16 %v1898, %v1898
    %v2018 = vunpack.c.l.b16 %v2014
    %v2019 = vunpack.c.l.b16 %v2015
    %v2020 = vrot.slane %v2018, 1
    %v2021 = vsel %vm1690, %v2019, %v2020
    %v2022 = vpack.c.b16 %v2021, %v2021
    %v2024 = vsel %vm1311, %v2022, 0
    %2026 = vmatpush.bf16.msra.mxu0 0
    %2027 = vmatpush.bf16.msra.mxu0 0
    %2028 = vmatpush.bf16.msra.mxu0 0
    %2029 = vmatpush.bf16.msra.mxu0 0
    %2030 = vmatpush.bf16.msra.mxu0 0
    %2031 = vmatpush.bf16.msra.mxu0 0
    %2032 = vmatpush.bf16.msra.mxu0 %v1308
    %2033 = vmatpush.bf16.msra.mxu0 %v1307
    %2034 = vmatmul.bf16.gmra.mxu0 %v2024
    %v2035 = vpop.f32.mrf.mxu0
    %v2036 = vadd.f32 %v1297, %v2035
    %v2037 = vpop.f32.mrf.mxu0
    %2038 = vdwg.mxu0
    %2039 = vmatpush.bf16.msra.mxu0 0
    %2040 = vmatpush.bf16.msra.mxu0 0
    %2041 = vmatpush.bf16.msra.mxu0 0
    %2042 = vmatpush.bf16.msra.mxu0 0
    %2043 = vmatpush.bf16.msra.mxu0 0
    %2044 = vmatpush.bf16.msra.mxu0 0
    %2045 = vmatpush.bf16.msra.mxu0 %v1340
    %2046 = vmatpush.bf16.msra.mxu0 %v1339
    %2047 = vmatmul.bf16.gmra.mxu0 %v2024
    %v2048 = vpop.f32.mrf.mxu0
    %v2049 = vadd.f32 %v1329, %v2048
    %v2050 = vpop.f32.mrf.mxu0
    %2051 = vdwg.mxu0
    %2052 = vmatpush.bf16.msra.mxu0 0
    %2053 = vmatpush.bf16.msra.mxu0 0
    %2054 = vmatpush.bf16.msra.mxu0 0
    %2055 = vmatpush.bf16.msra.mxu0 0
    %2056 = vmatpush.bf16.msra.mxu0 0
    %2057 = vmatpush.bf16.msra.mxu0 0
    %2058 = vmatpush.bf16.msra.mxu0 %v1368
    %2059 = vmatpush.bf16.msra.mxu0 %v1367
    %2060 = vmatmul.bf16.gmra.mxu0 %v2024
    %v2061 = vpop.f32.mrf.mxu0
    %v2062 = vadd.f32 %v1357, %v2061
    %v2063 = vpop.f32.mrf.mxu0
    %2064 = vdwg.mxu0
    %v2065 = vpack.c.bf16 %v2012, %v2012
    %v2066 = vpack.c.bf16 %v2013, %v2013
    %v2069 = vunpack.c.l.b16 %v2065
    %v2070 = vunpack.c.l.b16 %v2066
    %v2071 = vrot.slane %v2069, 6
    %v2072 = vrot.slane %v2070, 5
    %v2073 = vsel %vm1690, %v2072, %v2071
    %v2074 = vpack.c.b16 %v2073, %v2073
    %v2076 = vsel %vm1311, %v2074, 0
    %2078 = vmatpush.bf16.msra.mxu0 0
    %2079 = vmatpush.bf16.msra.mxu0 0
    %2080 = vmatpush.bf16.msra.mxu0 0
    %2081 = vmatpush.bf16.msra.mxu0 0
    %2082 = vmatpush.bf16.msra.mxu0 0
    %2083 = vmatpush.bf16.msra.mxu0 0
    %2084 = vmatpush.bf16.msra.mxu0 %v1396
    %2085 = vmatpush.bf16.msra.mxu0 %v1395
    %2086 = vmatmul.bf16.gmra.mxu0 %v2076
    %v2087 = vpop.f32.mrf.mxu0
    %v2088 = vadd.f32 %v1385, %v2087
    %v2089 = vpop.f32.mrf.mxu0
    %2090 = vdwg.mxu0
    %2091 = vmatpush.bf16.msra.mxu0 0
    %2092 = vmatpush.bf16.msra.mxu0 0
    %2093 = vmatpush.bf16.msra.mxu0 0
    %2094 = vmatpush.bf16.msra.mxu0 0
    %2095 = vmatpush.bf16.msra.mxu0 0
    %2096 = vmatpush.bf16.msra.mxu0 0
    %2097 = vmatpush.bf16.msra.mxu0 %v1424
    %2098 = vmatpush.bf16.msra.mxu0 %v1423
    %2099 = vmatmul.bf16.gmra.mxu0 %v2076
    %v2100 = vpop.f32.mrf.mxu0
    %v2101 = vadd.f32 %v1413, %v2100
    %v2102 = vpop.f32.mrf.mxu0
    %2103 = vdwg.mxu0
    %2104 = vmatpush.bf16.msra.mxu0 0
    %2105 = vmatpush.bf16.msra.mxu0 0
    %2106 = vmatpush.bf16.msra.mxu0 0
    %2107 = vmatpush.bf16.msra.mxu0 0
    %2108 = vmatpush.bf16.msra.mxu0 0
    %2109 = vmatpush.bf16.msra.mxu0 0
    %2110 = vmatpush.bf16.msra.mxu0 %v1452
    %2111 = vmatpush.bf16.msra.mxu0 %v1451
    %2112 = vmatmul.bf16.gmra.mxu0 %v2076
    %v2113 = vpop.f32.mrf.mxu0
    %v2114 = vadd.f32 %v1441, %v2113
    %v2115 = vpop.f32.mrf.mxu0
    %2116 = vdwg.mxu0
    %v2118 = vrot.slane %v2036, 6
    %v2119 = vrot.slane %v2036, 7
    %v2122 = vadd.f32 %v242, %v2118
    %v2123 = vadd.f32 %v244, %v2119
    %v2124 = vxor.u32 %v2122, 2147483648
    %v2125 = vxor.u32 %v2123, 2147483648
    %v2126 = vmul.f32 %v2124, 1.442695
    %v2127 = vpow.pop %v2126
    %v2128 = vmul.f32 %v2125, 1.442695
    %v2129 = vpow.pop %v2128
    %v2130 = vadd.f32 %v2127, 1.0
    %v2131 = vadd.f32 %v2129, 1.0
    %v2132 = vrcp.pop %v2130
    %v2133 = vmul.f32 %v2130, %v2132
    %v2134 = vsub.f32 1.0, %v2133
    %v2135 = vmul.f32 %v2132, %v2134
    %v2136 = vadd.f32 %v2132, %v2135
    %vm2137 = vweird.f32 %v2130
    %vm2138 = vweird.f32 %v2132
    %vm2139 = vmor %vm2137, %vm2138
    %v2140 = vsel %vm2139, %v2132, %v2136
    %v2141 = vand.u32 2147483647, %v2130
    %vm2142 = vcmp.eq.f32.partialorder %v2141, 8.507059e+37
    %v2143 = vand.u32 %v2130, 2147483648
    %v2144 = vor.u32 1.1754944e-38, %v2143
    %v2145 = vsel %vm2142, %v2144, %v2140
    %v2146 = vmul.f32 1.0, %v2145
    %v2147 = vrcp.pop %v2131
    %v2148 = vmul.f32 %v2131, %v2147
    %v2149 = vsub.f32 1.0, %v2148
    %v2150 = vmul.f32 %v2147, %v2149
    %v2151 = vadd.f32 %v2147, %v2150
    %vm2152 = vweird.f32 %v2131
    %vm2153 = vweird.f32 %v2147
    %vm2154 = vmor %vm2152, %vm2153
    %v2155 = vsel %vm2154, %v2147, %v2151
    %v2156 = vand.u32 2147483647, %v2131
    %vm2157 = vcmp.eq.f32.partialorder %v2156, 8.507059e+37
    %v2158 = vand.u32 %v2131, 2147483648
    %v2159 = vor.u32 1.1754944e-38, %v2158
    %v2160 = vsel %vm2157, %v2159, %v2155
    %v2161 = vmul.f32 1.0, %v2160
    %v2163 = vrot.slane %v2049, 6
    %v2164 = vrot.slane %v2049, 7
    %v2167 = vadd.f32 %v444, %v2163
    %v2168 = vadd.f32 %v446, %v2164
    %v2169 = vxor.u32 %v2167, 2147483648
    %v2170 = vxor.u32 %v2168, 2147483648
    %v2171 = vmul.f32 %v2169, 1.442695
    %v2172 = vpow.pop %v2171
    %v2173 = vmul.f32 %v2170, 1.442695
    %v2174 = vpow.pop %v2173
    %v2175 = vadd.f32 %v2172, 1.0
    %v2176 = vadd.f32 %v2174, 1.0
    %v2177 = vrcp.pop %v2175
    %v2178 = vmul.f32 %v2175, %v2177
    %v2179 = vsub.f32 1.0, %v2178
    %v2180 = vmul.f32 %v2177, %v2179
    %v2181 = vadd.f32 %v2177, %v2180
    %vm2182 = vweird.f32 %v2175
    %vm2183 = vweird.f32 %v2177
    %vm2184 = vmor %vm2182, %vm2183
    %v2185 = vsel %vm2184, %v2177, %v2181
    %v2186 = vand.u32 2147483647, %v2175
    %vm2187 = vcmp.eq.f32.partialorder %v2186, 8.507059e+37
    %v2188 = vand.u32 %v2175, 2147483648
    %v2189 = vor.u32 1.1754944e-38, %v2188
    %v2190 = vsel %vm2187, %v2189, %v2185
    %v2191 = vmul.f32 1.0, %v2190
    %v2192 = vrcp.pop %v2176
    %v2193 = vmul.f32 %v2176, %v2192
    %v2194 = vsub.f32 1.0, %v2193
    %v2195 = vmul.f32 %v2192, %v2194
    %v2196 = vadd.f32 %v2192, %v2195
    %vm2197 = vweird.f32 %v2176
    %vm2198 = vweird.f32 %v2192
    %vm2199 = vmor %vm2197, %vm2198
    %v2200 = vsel %vm2199, %v2192, %v2196
    %v2201 = vand.u32 2147483647, %v2176
    %vm2202 = vcmp.eq.f32.partialorder %v2201, 8.507059e+37
    %v2203 = vand.u32 %v2176, 2147483648
    %v2204 = vor.u32 1.1754944e-38, %v2203
    %v2205 = vsel %vm2202, %v2204, %v2200
    %v2206 = vmul.f32 1.0, %v2205
    %v2208 = vrot.slane %v2062, 6
    %v2209 = vrot.slane %v2062, 7
    %v2212 = vmul.f32 %v2146, %v2208
    %v2213 = vmul.f32 %v2161, %v2209
    %v2214 = vadd.f32 %v646, %v2212
    %v2215 = vadd.f32 %v648, %v2213
    %v2216 = vtanh.pop %v2214
    %v2217 = vtanh.pop %v2215
    %v2218 = vsub.f32 1.0, %v2191
    %v2219 = vsub.f32 1.0, %v2206
    %v2220 = vmul.f32 %v2218, %v2216
    %v2221 = vmul.f32 %v2219, %v2217
    %v2224 = vrot.slane %v1897, 7
    %v2225 = vrot.slane %v1898, 7
    %v2228 = vmul.f32 %v2191, %v2224
    %v2229 = vmul.f32 %v2206, %v2225
    %v2230 = vadd.f32 %v2220, %v2228
    %v2231 = vadd.f32 %v2221, %v2229
    %v2233 = vrot.slane %v2088, 3
    %v2234 = vrot.slane %v2088, 4
    %v2237 = vadd.f32 %v848, %v2233
    %v2238 = vadd.f32 %v850, %v2234
    %v2239 = vxor.u32 %v2237, 2147483648
    %v2240 = vxor.u32 %v2238, 2147483648
    %v2241 = vmul.f32 %v2239, 1.442695
    %v2242 = vpow.pop %v2241
    %v2243 = vmul.f32 %v2240, 1.442695
    %v2244 = vpow.pop %v2243
    %v2245 = vadd.f32 %v2242, 1.0
    %v2246 = vadd.f32 %v2244, 1.0
    %v2247 = vrcp.pop %v2245
    %v2248 = vmul.f32 %v2245, %v2247
    %v2249 = vsub.f32 1.0, %v2248
    %v2250 = vmul.f32 %v2247, %v2249
    %v2251 = vadd.f32 %v2247, %v2250
    %vm2252 = vweird.f32 %v2245
    %vm2253 = vweird.f32 %v2247
    %vm2254 = vmor %vm2252, %vm2253
    %v2255 = vsel %vm2254, %v2247, %v2251
    %v2256 = vand.u32 2147483647, %v2245
    %vm2257 = vcmp.eq.f32.partialorder %v2256, 8.507059e+37
    %v2258 = vand.u32 %v2245, 2147483648
    %v2259 = vor.u32 1.1754944e-38, %v2258
    %v2260 = vsel %vm2257, %v2259, %v2255
    %v2261 = vmul.f32 1.0, %v2260
    %v2262 = vrcp.pop %v2246
    %v2263 = vmul.f32 %v2246, %v2262
    %v2264 = vsub.f32 1.0, %v2263
    %v2265 = vmul.f32 %v2262, %v2264
    %v2266 = vadd.f32 %v2262, %v2265
    %vm2267 = vweird.f32 %v2246
    %vm2268 = vweird.f32 %v2262
    %vm2269 = vmor %vm2267, %vm2268
    %v2270 = vsel %vm2269, %v2262, %v2266
    %v2271 = vand.u32 2147483647, %v2246
    %vm2272 = vcmp.eq.f32.partialorder %v2271, 8.507059e+37
    %v2273 = vand.u32 %v2246, 2147483648
    %v2274 = vor.u32 1.1754944e-38, %v2273
    %v2275 = vsel %vm2272, %v2274, %v2270
    %v2276 = vmul.f32 1.0, %v2275
    %v2278 = vrot.slane %v2101, 3
    %v2279 = vrot.slane %v2101, 4
    %v2282 = vadd.f32 %v1050, %v2278
    %v2283 = vadd.f32 %v1052, %v2279
    %v2284 = vxor.u32 %v2282, 2147483648
    %v2285 = vxor.u32 %v2283, 2147483648
    %v2286 = vmul.f32 %v2284, 1.442695
    %v2287 = vpow.pop %v2286
    %v2288 = vmul.f32 %v2285, 1.442695
    %v2289 = vpow.pop %v2288
    %v2290 = vadd.f32 %v2287, 1.0
    %v2291 = vadd.f32 %v2289, 1.0
    %v2292 = vrcp.pop %v2290
    %v2293 = vmul.f32 %v2290, %v2292
    %v2294 = vsub.f32 1.0, %v2293
    %v2295 = vmul.f32 %v2292, %v2294
    %v2296 = vadd.f32 %v2292, %v2295
    %vm2297 = vweird.f32 %v2290
    %vm2298 = vweird.f32 %v2292
    %vm2299 = vmor %vm2297, %vm2298
    %v2300 = vsel %vm2299, %v2292, %v2296
    %v2301 = vand.u32 2147483647, %v2290
    %vm2302 = vcmp.eq.f32.partialorder %v2301, 8.507059e+37
    %v2303 = vand.u32 %v2290, 2147483648
    %v2304 = vor.u32 1.1754944e-38, %v2303
    %v2305 = vsel %vm2302, %v2304, %v2300
    %v2306 = vmul.f32 1.0, %v2305
    %v2307 = vrcp.pop %v2291
    %v2308 = vmul.f32 %v2291, %v2307
    %v2309 = vsub.f32 1.0, %v2308
    %v2310 = vmul.f32 %v2307, %v2309
    %v2311 = vadd.f32 %v2307, %v2310
    %vm2312 = vweird.f32 %v2291
    %vm2313 = vweird.f32 %v2307
    %vm2314 = vmor %vm2312, %vm2313
    %v2315 = vsel %vm2314, %v2307, %v2311
    %v2316 = vand.u32 2147483647, %v2291
    %vm2317 = vcmp.eq.f32.partialorder %v2316, 8.507059e+37
    %v2318 = vand.u32 %v2291, 2147483648
    %v2319 = vor.u32 1.1754944e-38, %v2318
    %v2320 = vsel %vm2317, %v2319, %v2315
    %v2321 = vmul.f32 1.0, %v2320
    %v2323 = vrot.slane %v2114, 3
    %v2324 = vrot.slane %v2114, 4
    %v2327 = vmul.f32 %v2261, %v2323
    %v2328 = vmul.f32 %v2276, %v2324
    %v2329 = vadd.f32 %v1252, %v2327
    %v2330 = vadd.f32 %v1254, %v2328
    %v2331 = vtanh.pop %v2329
    %v2332 = vtanh.pop %v2330
    %v2333 = vsub.f32 1.0, %v2306
    %v2334 = vsub.f32 1.0, %v2321
    %v2335 = vmul.f32 %v2333, %v2331
    %v2336 = vmul.f32 %v2334, %v2332
    %v2339 = vrot.slane %v2012, 1
    %v2340 = vrot.slane %v2013, 1
    %v2343 = vmul.f32 %v2306, %v2339
    %v2344 = vmul.f32 %v2321, %v2340
    %v2345 = vadd.f32 %v2335, %v2343
    %v2346 = vadd.f32 %v2336, %v2344
    %v2347 = vpack.c.bf16 %v2230, %v2230
    %v2348 = vpack.c.bf16 %v2231, %v2231
    %v2351 = vunpack.c.l.b16 %v2347
    %v2352 = vunpack.c.l.b16 %v2348
    %v2353 = vrot.slane %v2351, 2
    %v2354 = vrot.slane %v2352, 1
    %v2355 = vsel %vm1690, %v2354, %v2353
    %v2356 = vpack.c.b16 %v2355, %v2355
    %v2358 = vsel %vm1311, %v2356, 0
    %2360 = vmatpush.bf16.msra.mxu0 0
    %2361 = vmatpush.bf16.msra.mxu0 0
    %2362 = vmatpush.bf16.msra.mxu0 0
    %2363 = vmatpush.bf16.msra.mxu0 0
    %2364 = vmatpush.bf16.msra.mxu0 0
    %2365 = vmatpush.bf16.msra.mxu0 0
    %2366 = vmatpush.bf16.msra.mxu0 %v1308
    %2367 = vmatpush.bf16.msra.mxu0 %v1307
    %2368 = vmatmul.bf16.gmra.mxu0 %v2358
    %v2369 = vpop.f32.mrf.mxu0
    %v2370 = vadd.f32 %v1297, %v2369
    %v2371 = vpop.f32.mrf.mxu0
    %2372 = vdwg.mxu0
    %2373 = vmatpush.bf16.msra.mxu0 0
    %2374 = vmatpush.bf16.msra.mxu0 0
    %2375 = vmatpush.bf16.msra.mxu0 0
    %2376 = vmatpush.bf16.msra.mxu0 0
    %2377 = vmatpush.bf16.msra.mxu0 0
    %2378 = vmatpush.bf16.msra.mxu0 0
    %2379 = vmatpush.bf16.msra.mxu0 %v1340
    %2380 = vmatpush.bf16.msra.mxu0 %v1339
    %2381 = vmatmul.bf16.gmra.mxu0 %v2358
    %v2382 = vpop.f32.mrf.mxu0
    %v2383 = vadd.f32 %v1329, %v2382
    %v2384 = vpop.f32.mrf.mxu0
    %2385 = vdwg.mxu0
    %2386 = vmatpush.bf16.msra.mxu0 0
    %2387 = vmatpush.bf16.msra.mxu0 0
    %2388 = vmatpush.bf16.msra.mxu0 0
    %2389 = vmatpush.bf16.msra.mxu0 0
    %2390 = vmatpush.bf16.msra.mxu0 0
    %2391 = vmatpush.bf16.msra.mxu0 0
    %2392 = vmatpush.bf16.msra.mxu0 %v1368
    %2393 = vmatpush.bf16.msra.mxu0 %v1367
    %2394 = vmatmul.bf16.gmra.mxu0 %v2358
    %v2395 = vpop.f32.mrf.mxu0
    %v2396 = vadd.f32 %v1357, %v2395
    %v2397 = vpop.f32.mrf.mxu0
    %2398 = vdwg.mxu0
    %v2399 = vpack.c.bf16 %v2345, %v2345
    %v2400 = vpack.c.bf16 %v2346, %v2346
    %v2403 = vunpack.c.l.b16 %v2399
    %v2404 = vunpack.c.l.b16 %v2400
    %v2405 = vrot.slane %v2403, 5
    %v2406 = vrot.slane %v2404, 4
    %v2407 = vsel %vm1690, %v2406, %v2405
    %v2408 = vpack.c.b16 %v2407, %v2407
    %v2410 = vsel %vm1311, %v2408, 0
    %2412 = vmatpush.bf16.msra.mxu0 0
    %2413 = vmatpush.bf16.msra.mxu0 0
    %2414 = vmatpush.bf16.msra.mxu0 0
    %2415 = vmatpush.bf16.msra.mxu0 0
    %2416 = vmatpush.bf16.msra.mxu0 0
    %2417 = vmatpush.bf16.msra.mxu0 0
    %2418 = vmatpush.bf16.msra.mxu0 %v1396
    %2419 = vmatpush.bf16.msra.mxu0 %v1395
    %2420 = vmatmul.bf16.gmra.mxu0 %v2410
    %v2421 = vpop.f32.mrf.mxu0
    %v2422 = vadd.f32 %v1385, %v2421
    %v2423 = vpop.f32.mrf.mxu0
    %2424 = vdwg.mxu0
    %2425 = vmatpush.bf16.msra.mxu0 0
    %2426 = vmatpush.bf16.msra.mxu0 0
    %2427 = vmatpush.bf16.msra.mxu0 0
    %2428 = vmatpush.bf16.msra.mxu0 0
    %2429 = vmatpush.bf16.msra.mxu0 0
    %2430 = vmatpush.bf16.msra.mxu0 0
    %2431 = vmatpush.bf16.msra.mxu0 %v1424
    %2432 = vmatpush.bf16.msra.mxu0 %v1423
    %2433 = vmatmul.bf16.gmra.mxu0 %v2410
    %v2434 = vpop.f32.mrf.mxu0
    %v2435 = vadd.f32 %v1413, %v2434
    %v2436 = vpop.f32.mrf.mxu0
    %2437 = vdwg.mxu0
    %2438 = vmatpush.bf16.msra.mxu0 0
    %2439 = vmatpush.bf16.msra.mxu0 0
    %2440 = vmatpush.bf16.msra.mxu0 0
    %2441 = vmatpush.bf16.msra.mxu0 0
    %2442 = vmatpush.bf16.msra.mxu0 0
    %2443 = vmatpush.bf16.msra.mxu0 0
    %2444 = vmatpush.bf16.msra.mxu0 %v1452
    %2445 = vmatpush.bf16.msra.mxu0 %v1451
    %2446 = vmatmul.bf16.gmra.mxu0 %v2410
    %v2447 = vpop.f32.mrf.mxu0
    %v2448 = vadd.f32 %v1441, %v2447
    %v2449 = vpop.f32.mrf.mxu0
    %2450 = vdwg.mxu0
    %v2452 = vrot.slane %v2370, 5
    %v2453 = vrot.slane %v2370, 6
    %v2456 = vadd.f32 %v242, %v2452
    %v2457 = vadd.f32 %v244, %v2453
    %v2458 = vxor.u32 %v2456, 2147483648
    %v2459 = vxor.u32 %v2457, 2147483648
    %v2460 = vmul.f32 %v2458, 1.442695
    %v2461 = vpow.pop %v2460
    %v2462 = vmul.f32 %v2459, 1.442695
    %v2463 = vpow.pop %v2462
    %v2464 = vadd.f32 %v2461, 1.0
    %v2465 = vadd.f32 %v2463, 1.0
    %v2466 = vrcp.pop %v2464
    %v2467 = vmul.f32 %v2464, %v2466
    %v2468 = vsub.f32 1.0, %v2467
    %v2469 = vmul.f32 %v2466, %v2468
    %v2470 = vadd.f32 %v2466, %v2469
    %vm2471 = vweird.f32 %v2464
    %vm2472 = vweird.f32 %v2466
    %vm2473 = vmor %vm2471, %vm2472
    %v2474 = vsel %vm2473, %v2466, %v2470
    %v2475 = vand.u32 2147483647, %v2464
    %vm2476 = vcmp.eq.f32.partialorder %v2475, 8.507059e+37
    %v2477 = vand.u32 %v2464, 2147483648
    %v2478 = vor.u32 1.1754944e-38, %v2477
    %v2479 = vsel %vm2476, %v2478, %v2474
    %v2480 = vmul.f32 1.0, %v2479
    %v2481 = vrcp.pop %v2465
    %v2482 = vmul.f32 %v2465, %v2481
    %v2483 = vsub.f32 1.0, %v2482
    %v2484 = vmul.f32 %v2481, %v2483
    %v2485 = vadd.f32 %v2481, %v2484
    %vm2486 = vweird.f32 %v2465
    %vm2487 = vweird.f32 %v2481
    %vm2488 = vmor %vm2486, %vm2487
    %v2489 = vsel %vm2488, %v2481, %v2485
    %v2490 = vand.u32 2147483647, %v2465
    %vm2491 = vcmp.eq.f32.partialorder %v2490, 8.507059e+37
    %v2492 = vand.u32 %v2465, 2147483648
    %v2493 = vor.u32 1.1754944e-38, %v2492
    %v2494 = vsel %vm2491, %v2493, %v2489
    %v2495 = vmul.f32 1.0, %v2494
    %v2497 = vrot.slane %v2383, 5
    %v2498 = vrot.slane %v2383, 6
    %v2501 = vadd.f32 %v444, %v2497
    %v2502 = vadd.f32 %v446, %v2498
    %v2503 = vxor.u32 %v2501, 2147483648
    %v2504 = vxor.u32 %v2502, 2147483648
    %v2505 = vmul.f32 %v2503, 1.442695
    %v2506 = vpow.pop %v2505
    %v2507 = vmul.f32 %v2504, 1.442695
    %v2508 = vpow.pop %v2507
    %v2509 = vadd.f32 %v2506, 1.0
    %v2510 = vadd.f32 %v2508, 1.0
    %v2511 = vrcp.pop %v2509
    %v2512 = vmul.f32 %v2509, %v2511
    %v2513 = vsub.f32 1.0, %v2512
    %v2514 = vmul.f32 %v2511, %v2513
    %v2515 = vadd.f32 %v2511, %v2514
    %vm2516 = vweird.f32 %v2509
    %vm2517 = vweird.f32 %v2511
    %vm2518 = vmor %vm2516, %vm2517
    %v2519 = vsel %vm2518, %v2511, %v2515
    %v2520 = vand.u32 2147483647, %v2509
    %vm2521 = vcmp.eq.f32.partialorder %v2520, 8.507059e+37
    %v2522 = vand.u32 %v2509, 2147483648
    %v2523 = vor.u32 1.1754944e-38, %v2522
    %v2524 = vsel %vm2521, %v2523, %v2519
    %v2525 = vmul.f32 1.0, %v2524
    %v2526 = vrcp.pop %v2510
    %v2527 = vmul.f32 %v2510, %v2526
    %v2528 = vsub.f32 1.0, %v2527
    %v2529 = vmul.f32 %v2526, %v2528
    %v2530 = vadd.f32 %v2526, %v2529
    %vm2531 = vweird.f32 %v2510
    %vm2532 = vweird.f32 %v2526
    %vm2533 = vmor %vm2531, %vm2532
    %v2534 = vsel %vm2533, %v2526, %v2530
    %v2535 = vand.u32 2147483647, %v2510
    %vm2536 = vcmp.eq.f32.partialorder %v2535, 8.507059e+37
    %v2537 = vand.u32 %v2510, 2147483648
    %v2538 = vor.u32 1.1754944e-38, %v2537
    %v2539 = vsel %vm2536, %v2538, %v2534
    %v2540 = vmul.f32 1.0, %v2539
    %v2542 = vrot.slane %v2396, 5
    %v2543 = vrot.slane %v2396, 6
    %v2546 = vmul.f32 %v2480, %v2542
    %v2547 = vmul.f32 %v2495, %v2543
    %v2548 = vadd.f32 %v646, %v2546
    %v2549 = vadd.f32 %v648, %v2547
    %v2550 = vtanh.pop %v2548
    %v2551 = vtanh.pop %v2549
    %v2552 = vsub.f32 1.0, %v2525
    %v2553 = vsub.f32 1.0, %v2540
    %v2554 = vmul.f32 %v2552, %v2550
    %v2555 = vmul.f32 %v2553, %v2551
    %v2558 = vrot.slane %v2230, 7
    %v2559 = vrot.slane %v2231, 7
    %v2562 = vmul.f32 %v2525, %v2558
    %v2563 = vmul.f32 %v2540, %v2559
    %v2564 = vadd.f32 %v2554, %v2562
    %v2565 = vadd.f32 %v2555, %v2563
    %v2567 = vrot.slane %v2422, 4
    %v2568 = vrot.slane %v2422, 5
    %v2571 = vadd.f32 %v848, %v2567
    %v2572 = vadd.f32 %v850, %v2568
    %v2573 = vxor.u32 %v2571, 2147483648
    %v2574 = vxor.u32 %v2572, 2147483648
    %v2575 = vmul.f32 %v2573, 1.442695
    %v2576 = vpow.pop %v2575
    %v2577 = vmul.f32 %v2574, 1.442695
    %v2578 = vpow.pop %v2577
    %v2579 = vadd.f32 %v2576, 1.0
    %v2580 = vadd.f32 %v2578, 1.0
    %v2581 = vrcp.pop %v2579
    %v2582 = vmul.f32 %v2579, %v2581
    %v2583 = vsub.f32 1.0, %v2582
    %v2584 = vmul.f32 %v2581, %v2583
    %v2585 = vadd.f32 %v2581, %v2584
    %vm2586 = vweird.f32 %v2579
    %vm2587 = vweird.f32 %v2581
    %vm2588 = vmor %vm2586, %vm2587
    %v2589 = vsel %vm2588, %v2581, %v2585
    %v2590 = vand.u32 2147483647, %v2579
    %vm2591 = vcmp.eq.f32.partialorder %v2590, 8.507059e+37
    %v2592 = vand.u32 %v2579, 2147483648
    %v2593 = vor.u32 1.1754944e-38, %v2592
    %v2594 = vsel %vm2591, %v2593, %v2589
    %v2595 = vmul.f32 1.0, %v2594
    %v2596 = vrcp.pop %v2580
    %v2597 = vmul.f32 %v2580, %v2596
    %v2598 = vsub.f32 1.0, %v2597
    %v2599 = vmul.f32 %v2596, %v2598
    %v2600 = vadd.f32 %v2596, %v2599
    %vm2601 = vweird.f32 %v2580
    %vm2602 = vweird.f32 %v2596
    %vm2603 = vmor %vm2601, %vm2602
    %v2604 = vsel %vm2603, %v2596, %v2600
    %v2605 = vand.u32 2147483647, %v2580
    %vm2606 = vcmp.eq.f32.partialorder %v2605, 8.507059e+37
    %v2607 = vand.u32 %v2580, 2147483648
    %v2608 = vor.u32 1.1754944e-38, %v2607
    %v2609 = vsel %vm2606, %v2608, %v2604
    %v2610 = vmul.f32 1.0, %v2609
    %v2612 = vrot.slane %v2435, 4
    %v2613 = vrot.slane %v2435, 5
    %v2616 = vadd.f32 %v1050, %v2612
    %v2617 = vadd.f32 %v1052, %v2613
    %v2618 = vxor.u32 %v2616, 2147483648
    %v2619 = vxor.u32 %v2617, 2147483648
    %v2620 = vmul.f32 %v2618, 1.442695
    %v2621 = vpow.pop %v2620
    %v2622 = vmul.f32 %v2619, 1.442695
    %v2623 = vpow.pop %v2622
    %v2624 = vadd.f32 %v2621, 1.0
    %v2625 = vadd.f32 %v2623, 1.0
    %v2626 = vrcp.pop %v2624
    %v2627 = vmul.f32 %v2624, %v2626
    %v2628 = vsub.f32 1.0, %v2627
    %v2629 = vmul.f32 %v2626, %v2628
    %v2630 = vadd.f32 %v2626, %v2629
    %vm2631 = vweird.f32 %v2624
    %vm2632 = vweird.f32 %v2626
    %vm2633 = vmor %vm2631, %vm2632
    %v2634 = vsel %vm2633, %v2626, %v2630
    %v2635 = vand.u32 2147483647, %v2624
    %vm2636 = vcmp.eq.f32.partialorder %v2635, 8.507059e+37
    %v2637 = vand.u32 %v2624, 2147483648
    %v2638 = vor.u32 1.1754944e-38, %v2637
    %v2639 = vsel %vm2636, %v2638, %v2634
    %v2640 = vmul.f32 1.0, %v2639
    %v2641 = vrcp.pop %v2625
    %v2642 = vmul.f32 %v2625, %v2641
    %v2643 = vsub.f32 1.0, %v2642
    %v2644 = vmul.f32 %v2641, %v2643
    %v2645 = vadd.f32 %v2641, %v2644
    %vm2646 = vweird.f32 %v2625
    %vm2647 = vweird.f32 %v2641
    %vm2648 = vmor %vm2646, %vm2647
    %v2649 = vsel %vm2648, %v2641, %v2645
    %v2650 = vand.u32 2147483647, %v2625
    %vm2651 = vcmp.eq.f32.partialorder %v2650, 8.507059e+37
    %v2652 = vand.u32 %v2625, 2147483648
    %v2653 = vor.u32 1.1754944e-38, %v2652
    %v2654 = vsel %vm2651, %v2653, %v2649
    %v2655 = vmul.f32 1.0, %v2654
    %v2657 = vrot.slane %v2448, 4
    %v2658 = vrot.slane %v2448, 5
    %v2661 = vmul.f32 %v2595, %v2657
    %v2662 = vmul.f32 %v2610, %v2658
    %v2663 = vadd.f32 %v1252, %v2661
    %v2664 = vadd.f32 %v1254, %v2662
    %v2665 = vtanh.pop %v2663
    %v2666 = vtanh.pop %v2664
    %v2667 = vsub.f32 1.0, %v2640
    %v2668 = vsub.f32 1.0, %v2655
    %v2669 = vmul.f32 %v2667, %v2665
    %v2670 = vmul.f32 %v2668, %v2666
    %v2673 = vrot.slane %v2345, 1
    %v2674 = vrot.slane %v2346, 1
    %v2677 = vmul.f32 %v2640, %v2673
    %v2678 = vmul.f32 %v2655, %v2674
    %v2679 = vadd.f32 %v2669, %v2677
    %v2680 = vadd.f32 %v2670, %v2678
    %v2681 = vpack.c.bf16 %v2564, %v2564
    %v2682 = vpack.c.bf16 %v2565, %v2565
    %v2685 = vunpack.c.l.b16 %v2681
    %v2686 = vunpack.c.l.b16 %v2682
    %v2687 = vrot.slane %v2685, 3
    %v2688 = vrot.slane %v2686, 2
    %v2689 = vsel %vm1690, %v2688, %v2687
    %v2690 = vpack.c.b16 %v2689, %v2689
    %v2692 = vsel %vm1311, %v2690, 0
    %2694 = vmatpush.bf16.msra.mxu0 0
    %2695 = vmatpush.bf16.msra.mxu0 0
    %2696 = vmatpush.bf16.msra.mxu0 0
    %2697 = vmatpush.bf16.msra.mxu0 0
    %2698 = vmatpush.bf16.msra.mxu0 0
    %2699 = vmatpush.bf16.msra.mxu0 0
    %2700 = vmatpush.bf16.msra.mxu0 %v1308
    %2701 = vmatpush.bf16.msra.mxu0 %v1307
    %2702 = vmatmul.bf16.gmra.mxu0 %v2692
    %v2703 = vpop.f32.mrf.mxu0
    %v2704 = vadd.f32 %v1297, %v2703
    %v2705 = vpop.f32.mrf.mxu0
    %2706 = vdwg.mxu0
    %2707 = vmatpush.bf16.msra.mxu0 0
    %2708 = vmatpush.bf16.msra.mxu0 0
    %2709 = vmatpush.bf16.msra.mxu0 0
    %2710 = vmatpush.bf16.msra.mxu0 0
    %2711 = vmatpush.bf16.msra.mxu0 0
    %2712 = vmatpush.bf16.msra.mxu0 0
    %2713 = vmatpush.bf16.msra.mxu0 %v1340
    %2714 = vmatpush.bf16.msra.mxu0 %v1339
    %2715 = vmatmul.bf16.gmra.mxu0 %v2692
    %v2716 = vpop.f32.mrf.mxu0
    %v2717 = vadd.f32 %v1329, %v2716
    %v2718 = vpop.f32.mrf.mxu0
    %2719 = vdwg.mxu0
    %2720 = vmatpush.bf16.msra.mxu0 0
    %2721 = vmatpush.bf16.msra.mxu0 0
    %2722 = vmatpush.bf16.msra.mxu0 0
    %2723 = vmatpush.bf16.msra.mxu0 0
    %2724 = vmatpush.bf16.msra.mxu0 0
    %2725 = vmatpush.bf16.msra.mxu0 0
    %2726 = vmatpush.bf16.msra.mxu0 %v1368
    %2727 = vmatpush.bf16.msra.mxu0 %v1367
    %2728 = vmatmul.bf16.gmra.mxu0 %v2692
    %v2729 = vpop.f32.mrf.mxu0
    %v2730 = vadd.f32 %v1357, %v2729
    %v2731 = vpop.f32.mrf.mxu0
    %2732 = vdwg.mxu0
    %v2733 = vpack.c.bf16 %v2679, %v2679
    %v2734 = vpack.c.bf16 %v2680, %v2680
    %v2737 = vunpack.c.l.b16 %v2733
    %v2738 = vunpack.c.l.b16 %v2734
    %v2739 = vrot.slane %v2737, 4
    %v2740 = vrot.slane %v2738, 3
    %v2741 = vsel %vm1690, %v2740, %v2739
    %v2742 = vpack.c.b16 %v2741, %v2741
    %v2744 = vsel %vm1311, %v2742, 0
    %2746 = vmatpush.bf16.msra.mxu0 0
    %2747 = vmatpush.bf16.msra.mxu0 0
    %2748 = vmatpush.bf16.msra.mxu0 0
    %2749 = vmatpush.bf16.msra.mxu0 0
    %2750 = vmatpush.bf16.msra.mxu0 0
    %2751 = vmatpush.bf16.msra.mxu0 0
    %2752 = vmatpush.bf16.msra.mxu0 %v1396
    %2753 = vmatpush.bf16.msra.mxu0 %v1395
    %2754 = vmatmul.bf16.gmra.mxu0 %v2744
    %v2755 = vpop.f32.mrf.mxu0
    %v2756 = vadd.f32 %v1385, %v2755
    %v2757 = vpop.f32.mrf.mxu0
    %2758 = vdwg.mxu0
    %2759 = vmatpush.bf16.msra.mxu0 0
    %2760 = vmatpush.bf16.msra.mxu0 0
    %2761 = vmatpush.bf16.msra.mxu0 0
    %2762 = vmatpush.bf16.msra.mxu0 0
    %2763 = vmatpush.bf16.msra.mxu0 0
    %2764 = vmatpush.bf16.msra.mxu0 0
    %2765 = vmatpush.bf16.msra.mxu0 %v1424
    %2766 = vmatpush.bf16.msra.mxu0 %v1423
    %2767 = vmatmul.bf16.gmra.mxu0 %v2744
    %v2768 = vpop.f32.mrf.mxu0
    %v2769 = vadd.f32 %v1413, %v2768
    %v2770 = vpop.f32.mrf.mxu0
    %2771 = vdwg.mxu0
    %2772 = vmatpush.bf16.msra.mxu0 0
    %2773 = vmatpush.bf16.msra.mxu0 0
    %2774 = vmatpush.bf16.msra.mxu0 0
    %2775 = vmatpush.bf16.msra.mxu0 0
    %2776 = vmatpush.bf16.msra.mxu0 0
    %2777 = vmatpush.bf16.msra.mxu0 0
    %2778 = vmatpush.bf16.msra.mxu0 %v1452
    %2779 = vmatpush.bf16.msra.mxu0 %v1451
    %2780 = vmatmul.bf16.gmra.mxu0 %v2744
    %v2781 = vpop.f32.mrf.mxu0
    %v2782 = vadd.f32 %v1441, %v2781
    %v2783 = vpop.f32.mrf.mxu0
    %2784 = vdwg.mxu0
    %v2786 = vrot.slane %v2704, 4
    %v2787 = vrot.slane %v2704, 5
    %v2790 = vadd.f32 %v242, %v2786
    %v2791 = vadd.f32 %v244, %v2787
    %v2792 = vxor.u32 %v2790, 2147483648
    %v2793 = vxor.u32 %v2791, 2147483648
    %v2794 = vmul.f32 %v2792, 1.442695
    %v2795 = vpow.pop %v2794
    %v2796 = vmul.f32 %v2793, 1.442695
    %v2797 = vpow.pop %v2796
    %v2798 = vadd.f32 %v2795, 1.0
    %v2799 = vadd.f32 %v2797, 1.0
    %v2800 = vrcp.pop %v2798
    %v2801 = vmul.f32 %v2798, %v2800
    %v2802 = vsub.f32 1.0, %v2801
    %v2803 = vmul.f32 %v2800, %v2802
    %v2804 = vadd.f32 %v2800, %v2803
    %vm2805 = vweird.f32 %v2798
    %vm2806 = vweird.f32 %v2800
    %vm2807 = vmor %vm2805, %vm2806
    %v2808 = vsel %vm2807, %v2800, %v2804
    %v2809 = vand.u32 2147483647, %v2798
    %vm2810 = vcmp.eq.f32.partialorder %v2809, 8.507059e+37
    %v2811 = vand.u32 %v2798, 2147483648
    %v2812 = vor.u32 1.1754944e-38, %v2811
    %v2813 = vsel %vm2810, %v2812, %v2808
    %v2814 = vmul.f32 1.0, %v2813
    %v2815 = vrcp.pop %v2799
    %v2816 = vmul.f32 %v2799, %v2815
    %v2817 = vsub.f32 1.0, %v2816
    %v2818 = vmul.f32 %v2815, %v2817
    %v2819 = vadd.f32 %v2815, %v2818
    %vm2820 = vweird.f32 %v2799
    %vm2821 = vweird.f32 %v2815
    %vm2822 = vmor %vm2820, %vm2821
    %v2823 = vsel %vm2822, %v2815, %v2819
    %v2824 = vand.u32 2147483647, %v2799
    %vm2825 = vcmp.eq.f32.partialorder %v2824, 8.507059e+37
    %v2826 = vand.u32 %v2799, 2147483648
    %v2827 = vor.u32 1.1754944e-38, %v2826
    %v2828 = vsel %vm2825, %v2827, %v2823
    %v2829 = vmul.f32 1.0, %v2828
    %v2831 = vrot.slane %v2717, 4
    %v2832 = vrot.slane %v2717, 5
    %v2835 = vadd.f32 %v444, %v2831
    %v2836 = vadd.f32 %v446, %v2832
    %v2837 = vxor.u32 %v2835, 2147483648
    %v2838 = vxor.u32 %v2836, 2147483648
    %v2839 = vmul.f32 %v2837, 1.442695
    %v2840 = vpow.pop %v2839
    %v2841 = vmul.f32 %v2838, 1.442695
    %v2842 = vpow.pop %v2841
    %v2843 = vadd.f32 %v2840, 1.0
    %v2844 = vadd.f32 %v2842, 1.0
    %v2845 = vrcp.pop %v2843
    %v2846 = vmul.f32 %v2843, %v2845
    %v2847 = vsub.f32 1.0, %v2846
    %v2848 = vmul.f32 %v2845, %v2847
    %v2849 = vadd.f32 %v2845, %v2848
    %vm2850 = vweird.f32 %v2843
    %vm2851 = vweird.f32 %v2845
    %vm2852 = vmor %vm2850, %vm2851
    %v2853 = vsel %vm2852, %v2845, %v2849
    %v2854 = vand.u32 2147483647, %v2843
    %vm2855 = vcmp.eq.f32.partialorder %v2854, 8.507059e+37
    %v2856 = vand.u32 %v2843, 2147483648
    %v2857 = vor.u32 1.1754944e-38, %v2856
    %v2858 = vsel %vm2855, %v2857, %v2853
    %v2859 = vmul.f32 1.0, %v2858
    %v2860 = vrcp.pop %v2844
    %v2861 = vmul.f32 %v2844, %v2860
    %v2862 = vsub.f32 1.0, %v2861
    %v2863 = vmul.f32 %v2860, %v2862
    %v2864 = vadd.f32 %v2860, %v2863
    %vm2865 = vweird.f32 %v2844
    %vm2866 = vweird.f32 %v2860
    %vm2867 = vmor %vm2865, %vm2866
    %v2868 = vsel %vm2867, %v2860, %v2864
    %v2869 = vand.u32 2147483647, %v2844
    %vm2870 = vcmp.eq.f32.partialorder %v2869, 8.507059e+37
    %v2871 = vand.u32 %v2844, 2147483648
    %v2872 = vor.u32 1.1754944e-38, %v2871
    %v2873 = vsel %vm2870, %v2872, %v2868
    %v2874 = vmul.f32 1.0, %v2873
    %v2876 = vrot.slane %v2730, 4
    %v2877 = vrot.slane %v2730, 5
    %v2880 = vmul.f32 %v2814, %v2876
    %v2881 = vmul.f32 %v2829, %v2877
    %v2882 = vadd.f32 %v646, %v2880
    %v2883 = vadd.f32 %v648, %v2881
    %v2884 = vtanh.pop %v2882
    %v2885 = vtanh.pop %v2883
    %v2886 = vsub.f32 1.0, %v2859
    %v2887 = vsub.f32 1.0, %v2874
    %v2888 = vmul.f32 %v2886, %v2884
    %v2889 = vmul.f32 %v2887, %v2885
    %v2892 = vrot.slane %v2564, 7
    %v2893 = vrot.slane %v2565, 7
    %v2896 = vmul.f32 %v2859, %v2892
    %v2897 = vmul.f32 %v2874, %v2893
    %v2898 = vadd.f32 %v2888, %v2896
    %v2899 = vadd.f32 %v2889, %v2897
    %v2901 = vrot.slane %v2756, 5
    %v2902 = vrot.slane %v2756, 6
    %v2905 = vadd.f32 %v848, %v2901
    %v2906 = vadd.f32 %v850, %v2902
    %v2907 = vxor.u32 %v2905, 2147483648
    %v2908 = vxor.u32 %v2906, 2147483648
    %v2909 = vmul.f32 %v2907, 1.442695
    %v2910 = vpow.pop %v2909
    %v2911 = vmul.f32 %v2908, 1.442695
    %v2912 = vpow.pop %v2911
    %v2913 = vadd.f32 %v2910, 1.0
    %v2914 = vadd.f32 %v2912, 1.0
    %v2915 = vrcp.pop %v2913
    %v2916 = vmul.f32 %v2913, %v2915
    %v2917 = vsub.f32 1.0, %v2916
    %v2918 = vmul.f32 %v2915, %v2917
    %v2919 = vadd.f32 %v2915, %v2918
    %vm2920 = vweird.f32 %v2913
    %vm2921 = vweird.f32 %v2915
    %vm2922 = vmor %vm2920, %vm2921
    %v2923 = vsel %vm2922, %v2915, %v2919
    %v2924 = vand.u32 2147483647, %v2913
    %vm2925 = vcmp.eq.f32.partialorder %v2924, 8.507059e+37
    %v2926 = vand.u32 %v2913, 2147483648
    %v2927 = vor.u32 1.1754944e-38, %v2926
    %v2928 = vsel %vm2925, %v2927, %v2923
    %v2929 = vmul.f32 1.0, %v2928
    %v2930 = vrcp.pop %v2914
    %v2931 = vmul.f32 %v2914, %v2930
    %v2932 = vsub.f32 1.0, %v2931
    %v2933 = vmul.f32 %v2930, %v2932
    %v2934 = vadd.f32 %v2930, %v2933
    %vm2935 = vweird.f32 %v2914
    %vm2936 = vweird.f32 %v2930
    %vm2937 = vmor %vm2935, %vm2936
    %v2938 = vsel %vm2937, %v2930, %v2934
    %v2939 = vand.u32 2147483647, %v2914
    %vm2940 = vcmp.eq.f32.partialorder %v2939, 8.507059e+37
    %v2941 = vand.u32 %v2914, 2147483648
    %v2942 = vor.u32 1.1754944e-38, %v2941
    %v2943 = vsel %vm2940, %v2942, %v2938
    %v2944 = vmul.f32 1.0, %v2943
    %v2946 = vrot.slane %v2769, 5
    %v2947 = vrot.slane %v2769, 6
    %v2950 = vadd.f32 %v1050, %v2946
    %v2951 = vadd.f32 %v1052, %v2947
    %v2952 = vxor.u32 %v2950, 2147483648
    %v2953 = vxor.u32 %v2951, 2147483648
    %v2954 = vmul.f32 %v2952, 1.442695
    %v2955 = vpow.pop %v2954
    %v2956 = vmul.f32 %v2953, 1.442695
    %v2957 = vpow.pop %v2956
    %v2958 = vadd.f32 %v2955, 1.0
    %v2959 = vadd.f32 %v2957, 1.0
    %v2960 = vrcp.pop %v2958
    %v2961 = vmul.f32 %v2958, %v2960
    %v2962 = vsub.f32 1.0, %v2961
    %v2963 = vmul.f32 %v2960, %v2962
    %v2964 = vadd.f32 %v2960, %v2963
    %vm2965 = vweird.f32 %v2958
    %vm2966 = vweird.f32 %v2960
    %vm2967 = vmor %vm2965, %vm2966
    %v2968 = vsel %vm2967, %v2960, %v2964
    %v2969 = vand.u32 2147483647, %v2958
    %vm2970 = vcmp.eq.f32.partialorder %v2969, 8.507059e+37
    %v2971 = vand.u32 %v2958, 2147483648
    %v2972 = vor.u32 1.1754944e-38, %v2971
    %v2973 = vsel %vm2970, %v2972, %v2968
    %v2974 = vmul.f32 1.0, %v2973
    %v2975 = vrcp.pop %v2959
    %v2976 = vmul.f32 %v2959, %v2975
    %v2977 = vsub.f32 1.0, %v2976
    %v2978 = vmul.f32 %v2975, %v2977
    %v2979 = vadd.f32 %v2975, %v2978
    %vm2980 = vweird.f32 %v2959
    %vm2981 = vweird.f32 %v2975
    %vm2982 = vmor %vm2980, %vm2981
    %v2983 = vsel %vm2982, %v2975, %v2979
    %v2984 = vand.u32 2147483647, %v2959
    %vm2985 = vcmp.eq.f32.partialorder %v2984, 8.507059e+37
    %v2986 = vand.u32 %v2959, 2147483648
    %v2987 = vor.u32 1.1754944e-38, %v2986
    %v2988 = vsel %vm2985, %v2987, %v2983
    %v2989 = vmul.f32 1.0, %v2988
    %v2991 = vrot.slane %v2782, 5
    %v2992 = vrot.slane %v2782, 6
    %v2995 = vmul.f32 %v2929, %v2991
    %v2996 = vmul.f32 %v2944, %v2992
    %v2997 = vadd.f32 %v1252, %v2995
    %v2998 = vadd.f32 %v1254, %v2996
    %v2999 = vtanh.pop %v2997
    %v3000 = vtanh.pop %v2998
    %v3001 = vsub.f32 1.0, %v2974
    %v3002 = vsub.f32 1.0, %v2989
    %v3003 = vmul.f32 %v3001, %v2999
    %v3004 = vmul.f32 %v3002, %v3000
    %v3007 = vrot.slane %v2679, 1
    %v3008 = vrot.slane %v2680, 1
    %v3011 = vmul.f32 %v2974, %v3007
    %v3012 = vmul.f32 %v2989, %v3008
    %v3013 = vadd.f32 %v3003, %v3011
    %v3014 = vadd.f32 %v3004, %v3012
    %v3015 = vpack.c.bf16 %v2898, %v2898
    %v3016 = vpack.c.bf16 %v2899, %v2899
    %v3019 = vunpack.c.l.b16 %v3015
    %v3020 = vunpack.c.l.b16 %v3016
    %v3021 = vrot.slane %v3019, 4
    %v3022 = vrot.slane %v3020, 3
    %v3023 = vsel %vm1690, %v3022, %v3021
    %v3024 = vpack.c.b16 %v3023, %v3023
    %v3026 = vsel %vm1311, %v3024, 0
    %3028 = vmatpush.bf16.msra.mxu0 0
    %3029 = vmatpush.bf16.msra.mxu0 0
    %3030 = vmatpush.bf16.msra.mxu0 0
    %3031 = vmatpush.bf16.msra.mxu0 0
    %3032 = vmatpush.bf16.msra.mxu0 0
    %3033 = vmatpush.bf16.msra.mxu0 0
    %3034 = vmatpush.bf16.msra.mxu0 %v1308
    %3035 = vmatpush.bf16.msra.mxu0 %v1307
    %3036 = vmatmul.bf16.gmra.mxu0 %v3026
    %v3037 = vpop.f32.mrf.mxu0
    %v3038 = vadd.f32 %v1297, %v3037
    %v3039 = vpop.f32.mrf.mxu0
    %3040 = vdwg.mxu0
    %3041 = vmatpush.bf16.msra.mxu0 0
    %3042 = vmatpush.bf16.msra.mxu0 0
    %3043 = vmatpush.bf16.msra.mxu0 0
    %3044 = vmatpush.bf16.msra.mxu0 0
    %3045 = vmatpush.bf16.msra.mxu0 0
    %3046 = vmatpush.bf16.msra.mxu0 0
    %3047 = vmatpush.bf16.msra.mxu0 %v1340
    %3048 = vmatpush.bf16.msra.mxu0 %v1339
    %3049 = vmatmul.bf16.gmra.mxu0 %v3026
    %v3050 = vpop.f32.mrf.mxu0
    %v3051 = vadd.f32 %v1329, %v3050
    %v3052 = vpop.f32.mrf.mxu0
    %3053 = vdwg.mxu0
    %3054 = vmatpush.bf16.msra.mxu0 0
    %3055 = vmatpush.bf16.msra.mxu0 0
    %3056 = vmatpush.bf16.msra.mxu0 0
    %3057 = vmatpush.bf16.msra.mxu0 0
    %3058 = vmatpush.bf16.msra.mxu0 0
    %3059 = vmatpush.bf16.msra.mxu0 0
    %3060 = vmatpush.bf16.msra.mxu0 %v1368
    %3061 = vmatpush.bf16.msra.mxu0 %v1367
    %3062 = vmatmul.bf16.gmra.mxu0 %v3026
    %v3063 = vpop.f32.mrf.mxu0
    %v3064 = vadd.f32 %v1357, %v3063
    %v3065 = vpop.f32.mrf.mxu0
    %3066 = vdwg.mxu0
    %v3067 = vpack.c.bf16 %v3013, %v3013
    %v3068 = vpack.c.bf16 %v3014, %v3014
    %v3071 = vunpack.c.l.b16 %v3067
    %v3072 = vunpack.c.l.b16 %v3068
    %v3073 = vrot.slane %v3071, 3
    %v3074 = vrot.slane %v3072, 2
    %v3075 = vsel %vm1690, %v3074, %v3073
    %v3076 = vpack.c.b16 %v3075, %v3075
    %v3078 = vsel %vm1311, %v3076, 0
    %3080 = vmatpush.bf16.msra.mxu0 0
    %3081 = vmatpush.bf16.msra.mxu0 0
    %3082 = vmatpush.bf16.msra.mxu0 0
    %3083 = vmatpush.bf16.msra.mxu0 0
    %3084 = vmatpush.bf16.msra.mxu0 0
    %3085 = vmatpush.bf16.msra.mxu0 0
    %3086 = vmatpush.bf16.msra.mxu0 %v1396
    %3087 = vmatpush.bf16.msra.mxu0 %v1395
    %3088 = vmatmul.bf16.gmra.mxu0 %v3078
    %v3089 = vpop.f32.mrf.mxu0
    %v3090 = vadd.f32 %v1385, %v3089
    %v3091 = vpop.f32.mrf.mxu0
    %3092 = vdwg.mxu0
    %3093 = vmatpush.bf16.msra.mxu0 0
    %3094 = vmatpush.bf16.msra.mxu0 0
    %3095 = vmatpush.bf16.msra.mxu0 0
    %3096 = vmatpush.bf16.msra.mxu0 0
    %3097 = vmatpush.bf16.msra.mxu0 0
    %3098 = vmatpush.bf16.msra.mxu0 0
    %3099 = vmatpush.bf16.msra.mxu0 %v1424
    %3100 = vmatpush.bf16.msra.mxu0 %v1423
    %3101 = vmatmul.bf16.gmra.mxu0 %v3078
    %v3102 = vpop.f32.mrf.mxu0
    %v3103 = vadd.f32 %v1413, %v3102
    %v3104 = vpop.f32.mrf.mxu0
    %3105 = vdwg.mxu0
    %3106 = vmatpush.bf16.msra.mxu0 0
    %3107 = vmatpush.bf16.msra.mxu0 0
    %3108 = vmatpush.bf16.msra.mxu0 0
    %3109 = vmatpush.bf16.msra.mxu0 0
    %3110 = vmatpush.bf16.msra.mxu0 0
    %3111 = vmatpush.bf16.msra.mxu0 0
    %3112 = vmatpush.bf16.msra.mxu0 %v1452
    %3113 = vmatpush.bf16.msra.mxu0 %v1451
    %3114 = vmatmul.bf16.gmra.mxu0 %v3078
    %v3115 = vpop.f32.mrf.mxu0
    %v3116 = vadd.f32 %v1441, %v3115
    %v3117 = vpop.f32.mrf.mxu0
    %3118 = vdwg.mxu0
    %v3120 = vrot.slane %v3038, 3
    %v3121 = vrot.slane %v3038, 4
    %v3124 = vadd.f32 %v242, %v3120
    %v3125 = vadd.f32 %v244, %v3121
    %v3126 = vxor.u32 %v3124, 2147483648
    %v3127 = vxor.u32 %v3125, 2147483648
    %v3128 = vmul.f32 %v3126, 1.442695
    %v3129 = vpow.pop %v3128
    %v3130 = vmul.f32 %v3127, 1.442695
    %v3131 = vpow.pop %v3130
    %v3132 = vadd.f32 %v3129, 1.0
    %v3133 = vadd.f32 %v3131, 1.0
    %v3134 = vrcp.pop %v3132
    %v3135 = vmul.f32 %v3132, %v3134
    %v3136 = vsub.f32 1.0, %v3135
    %v3137 = vmul.f32 %v3134, %v3136
    %v3138 = vadd.f32 %v3134, %v3137
    %vm3139 = vweird.f32 %v3132
    %vm3140 = vweird.f32 %v3134
    %vm3141 = vmor %vm3139, %vm3140
    %v3142 = vsel %vm3141, %v3134, %v3138
    %v3143 = vand.u32 2147483647, %v3132
    %vm3144 = vcmp.eq.f32.partialorder %v3143, 8.507059e+37
    %v3145 = vand.u32 %v3132, 2147483648
    %v3146 = vor.u32 1.1754944e-38, %v3145
    %v3147 = vsel %vm3144, %v3146, %v3142
    %v3148 = vmul.f32 1.0, %v3147
    %v3149 = vrcp.pop %v3133
    %v3150 = vmul.f32 %v3133, %v3149
    %v3151 = vsub.f32 1.0, %v3150
    %v3152 = vmul.f32 %v3149, %v3151
    %v3153 = vadd.f32 %v3149, %v3152
    %vm3154 = vweird.f32 %v3133
    %vm3155 = vweird.f32 %v3149
    %vm3156 = vmor %vm3154, %vm3155
    %v3157 = vsel %vm3156, %v3149, %v3153
    %v3158 = vand.u32 2147483647, %v3133
    %vm3159 = vcmp.eq.f32.partialorder %v3158, 8.507059e+37
    %v3160 = vand.u32 %v3133, 2147483648
    %v3161 = vor.u32 1.1754944e-38, %v3160
    %v3162 = vsel %vm3159, %v3161, %v3157
    %v3163 = vmul.f32 1.0, %v3162
    %v3165 = vrot.slane %v3051, 3
    %v3166 = vrot.slane %v3051, 4
    %v3169 = vadd.f32 %v444, %v3165
    %v3170 = vadd.f32 %v446, %v3166
    %v3171 = vxor.u32 %v3169, 2147483648
    %v3172 = vxor.u32 %v3170, 2147483648
    %v3173 = vmul.f32 %v3171, 1.442695
    %v3174 = vpow.pop %v3173
    %v3175 = vmul.f32 %v3172, 1.442695
    %v3176 = vpow.pop %v3175
    %v3177 = vadd.f32 %v3174, 1.0
    %v3178 = vadd.f32 %v3176, 1.0
    %v3179 = vrcp.pop %v3177
    %v3180 = vmul.f32 %v3177, %v3179
    %v3181 = vsub.f32 1.0, %v3180
    %v3182 = vmul.f32 %v3179, %v3181
    %v3183 = vadd.f32 %v3179, %v3182
    %vm3184 = vweird.f32 %v3177
    %vm3185 = vweird.f32 %v3179
    %vm3186 = vmor %vm3184, %vm3185
    %v3187 = vsel %vm3186, %v3179, %v3183
    %v3188 = vand.u32 2147483647, %v3177
    %vm3189 = vcmp.eq.f32.partialorder %v3188, 8.507059e+37
    %v3190 = vand.u32 %v3177, 2147483648
    %v3191 = vor.u32 1.1754944e-38, %v3190
    %v3192 = vsel %vm3189, %v3191, %v3187
    %v3193 = vmul.f32 1.0, %v3192
    %v3194 = vrcp.pop %v3178
    %v3195 = vmul.f32 %v3178, %v3194
    %v3196 = vsub.f32 1.0, %v3195
    %v3197 = vmul.f32 %v3194, %v3196
    %v3198 = vadd.f32 %v3194, %v3197
    %vm3199 = vweird.f32 %v3178
    %vm3200 = vweird.f32 %v3194
    %vm3201 = vmor %vm3199, %vm3200
    %v3202 = vsel %vm3201, %v3194, %v3198
    %v3203 = vand.u32 2147483647, %v3178
    %vm3204 = vcmp.eq.f32.partialorder %v3203, 8.507059e+37
    %v3205 = vand.u32 %v3178, 2147483648
    %v3206 = vor.u32 1.1754944e-38, %v3205
    %v3207 = vsel %vm3204, %v3206, %v3202
    %v3208 = vmul.f32 1.0, %v3207
    %v3210 = vrot.slane %v3064, 3
    %v3211 = vrot.slane %v3064, 4
    %v3214 = vmul.f32 %v3148, %v3210
    %v3215 = vmul.f32 %v3163, %v3211
    %v3216 = vadd.f32 %v646, %v3214
    %v3217 = vadd.f32 %v648, %v3215
    %v3218 = vtanh.pop %v3216
    %v3219 = vtanh.pop %v3217
    %v3220 = vsub.f32 1.0, %v3193
    %v3221 = vsub.f32 1.0, %v3208
    %v3222 = vmul.f32 %v3220, %v3218
    %v3223 = vmul.f32 %v3221, %v3219
    %v3226 = vrot.slane %v2898, 7
    %v3227 = vrot.slane %v2899, 7
    %v3230 = vmul.f32 %v3193, %v3226
    %v3231 = vmul.f32 %v3208, %v3227
    %v3232 = vadd.f32 %v3222, %v3230
    %v3233 = vadd.f32 %v3223, %v3231
    %v3235 = vrot.slane %v3090, 6
    %v3236 = vrot.slane %v3090, 7
    %v3239 = vadd.f32 %v848, %v3235
    %v3240 = vadd.f32 %v850, %v3236
    %v3241 = vxor.u32 %v3239, 2147483648
    %v3242 = vxor.u32 %v3240, 2147483648
    %v3243 = vmul.f32 %v3241, 1.442695
    %v3244 = vpow.pop %v3243
    %v3245 = vmul.f32 %v3242, 1.442695
    %v3246 = vpow.pop %v3245
    %v3247 = vadd.f32 %v3244, 1.0
    %v3248 = vadd.f32 %v3246, 1.0
    %v3249 = vrcp.pop %v3247
    %v3250 = vmul.f32 %v3247, %v3249
    %v3251 = vsub.f32 1.0, %v3250
    %v3252 = vmul.f32 %v3249, %v3251
    %v3253 = vadd.f32 %v3249, %v3252
    %vm3254 = vweird.f32 %v3247
    %vm3255 = vweird.f32 %v3249
    %vm3256 = vmor %vm3254, %vm3255
    %v3257 = vsel %vm3256, %v3249, %v3253
    %v3258 = vand.u32 2147483647, %v3247
    %vm3259 = vcmp.eq.f32.partialorder %v3258, 8.507059e+37
    %v3260 = vand.u32 %v3247, 2147483648
    %v3261 = vor.u32 1.1754944e-38, %v3260
    %v3262 = vsel %vm3259, %v3261, %v3257
    %v3263 = vmul.f32 1.0, %v3262
    %v3264 = vrcp.pop %v3248
    %v3265 = vmul.f32 %v3248, %v3264
    %v3266 = vsub.f32 1.0, %v3265
    %v3267 = vmul.f32 %v3264, %v3266
    %v3268 = vadd.f32 %v3264, %v3267
    %vm3269 = vweird.f32 %v3248
    %vm3270 = vweird.f32 %v3264
    %vm3271 = vmor %vm3269, %vm3270
    %v3272 = vsel %vm3271, %v3264, %v3268
    %v3273 = vand.u32 2147483647, %v3248
    %vm3274 = vcmp.eq.f32.partialorder %v3273, 8.507059e+37
    %v3275 = vand.u32 %v3248, 2147483648
    %v3276 = vor.u32 1.1754944e-38, %v3275
    %v3277 = vsel %vm3274, %v3276, %v3272
    %v3278 = vmul.f32 1.0, %v3277
    %v3280 = vrot.slane %v3103, 6
    %v3281 = vrot.slane %v3103, 7
    %v3284 = vadd.f32 %v1050, %v3280
    %v3285 = vadd.f32 %v1052, %v3281
    %v3286 = vxor.u32 %v3284, 2147483648
    %v3287 = vxor.u32 %v3285, 2147483648
    %v3288 = vmul.f32 %v3286, 1.442695
    %v3289 = vpow.pop %v3288
    %v3290 = vmul.f32 %v3287, 1.442695
    %v3291 = vpow.pop %v3290
    %v3292 = vadd.f32 %v3289, 1.0
    %v3293 = vadd.f32 %v3291, 1.0
    %v3294 = vrcp.pop %v3292
    %v3295 = vmul.f32 %v3292, %v3294
    %v3296 = vsub.f32 1.0, %v3295
    %v3297 = vmul.f32 %v3294, %v3296
    %v3298 = vadd.f32 %v3294, %v3297
    %vm3299 = vweird.f32 %v3292
    %vm3300 = vweird.f32 %v3294
    %vm3301 = vmor %vm3299, %vm3300
    %v3302 = vsel %vm3301, %v3294, %v3298
    %v3303 = vand.u32 2147483647, %v3292
    %vm3304 = vcmp.eq.f32.partialorder %v3303, 8.507059e+37
    %v3305 = vand.u32 %v3292, 2147483648
    %v3306 = vor.u32 1.1754944e-38, %v3305
    %v3307 = vsel %vm3304, %v3306, %v3302
    %v3308 = vmul.f32 1.0, %v3307
    %v3309 = vrcp.pop %v3293
    %v3310 = vmul.f32 %v3293, %v3309
    %v3311 = vsub.f32 1.0, %v3310
    %v3312 = vmul.f32 %v3309, %v3311
    %v3313 = vadd.f32 %v3309, %v3312
    %vm3314 = vweird.f32 %v3293
    %vm3315 = vweird.f32 %v3309
    %vm3316 = vmor %vm3314, %vm3315
    %v3317 = vsel %vm3316, %v3309, %v3313
    %v3318 = vand.u32 2147483647, %v3293
    %vm3319 = vcmp.eq.f32.partialorder %v3318, 8.507059e+37
    %v3320 = vand.u32 %v3293, 2147483648
    %v3321 = vor.u32 1.1754944e-38, %v3320
    %v3322 = vsel %vm3319, %v3321, %v3317
    %v3323 = vmul.f32 1.0, %v3322
    %v3325 = vrot.slane %v3116, 6
    %v3326 = vrot.slane %v3116, 7
    %v3329 = vmul.f32 %v3263, %v3325
    %v3330 = vmul.f32 %v3278, %v3326
    %v3331 = vadd.f32 %v1252, %v3329
    %v3332 = vadd.f32 %v1254, %v3330
    %v3333 = vtanh.pop %v3331
    %v3334 = vtanh.pop %v3332
    %v3335 = vsub.f32 1.0, %v3308
    %v3336 = vsub.f32 1.0, %v3323
    %v3337 = vmul.f32 %v3335, %v3333
    %v3338 = vmul.f32 %v3336, %v3334
    %v3341 = vrot.slane %v3013, 1
    %v3342 = vrot.slane %v3014, 1
    %v3345 = vmul.f32 %v3308, %v3341
    %v3346 = vmul.f32 %v3323, %v3342
    %v3347 = vadd.f32 %v3337, %v3345
    %v3348 = vadd.f32 %v3338, %v3346
    %v3349 = vpack.c.bf16 %v3232, %v3232
    %v3350 = vpack.c.bf16 %v3233, %v3233
    %v3353 = vunpack.c.l.b16 %v3349
    %v3354 = vunpack.c.l.b16 %v3350
    %v3355 = vrot.slane %v3353, 5
    %v3356 = vrot.slane %v3354, 4
    %v3357 = vsel %vm1690, %v3356, %v3355
    %v3358 = vpack.c.b16 %v3357, %v3357
    %v3360 = vsel %vm1311, %v3358, 0
    %3362 = vmatpush.bf16.msra.mxu0 0
    %3363 = vmatpush.bf16.msra.mxu0 0
    %3364 = vmatpush.bf16.msra.mxu0 0
    %3365 = vmatpush.bf16.msra.mxu0 0
    %3366 = vmatpush.bf16.msra.mxu0 0
    %3367 = vmatpush.bf16.msra.mxu0 0
    %3368 = vmatpush.bf16.msra.mxu0 %v1308
    %3369 = vmatpush.bf16.msra.mxu0 %v1307
    %3370 = vmatmul.bf16.gmra.mxu0 %v3360
    %v3371 = vpop.f32.mrf.mxu0
    %v3372 = vadd.f32 %v1297, %v3371
    %v3373 = vpop.f32.mrf.mxu0
    %3374 = vdwg.mxu0
    %3375 = vmatpush.bf16.msra.mxu0 0
    %3376 = vmatpush.bf16.msra.mxu0 0
    %3377 = vmatpush.bf16.msra.mxu0 0
    %3378 = vmatpush.bf16.msra.mxu0 0
    %3379 = vmatpush.bf16.msra.mxu0 0
    %3380 = vmatpush.bf16.msra.mxu0 0
    %3381 = vmatpush.bf16.msra.mxu0 %v1340
    %3382 = vmatpush.bf16.msra.mxu0 %v1339
    %3383 = vmatmul.bf16.gmra.mxu0 %v3360
    %v3384 = vpop.f32.mrf.mxu0
    %v3385 = vadd.f32 %v1329, %v3384
    %v3386 = vpop.f32.mrf.mxu0
    %3387 = vdwg.mxu0
    %3388 = vmatpush.bf16.msra.mxu0 0
    %3389 = vmatpush.bf16.msra.mxu0 0
    %3390 = vmatpush.bf16.msra.mxu0 0
    %3391 = vmatpush.bf16.msra.mxu0 0
    %3392 = vmatpush.bf16.msra.mxu0 0
    %3393 = vmatpush.bf16.msra.mxu0 0
    %3394 = vmatpush.bf16.msra.mxu0 %v1368
    %3395 = vmatpush.bf16.msra.mxu0 %v1367
    %3396 = vmatmul.bf16.gmra.mxu0 %v3360
    %v3397 = vpop.f32.mrf.mxu0
    %v3398 = vadd.f32 %v1357, %v3397
    %v3399 = vpop.f32.mrf.mxu0
    %3400 = vdwg.mxu0
    %v3401 = vpack.c.bf16 %v3347, %v3347
    %v3402 = vpack.c.bf16 %v3348, %v3348
    %v3405 = vunpack.c.l.b16 %v3401
    %v3406 = vunpack.c.l.b16 %v3402
    %v3407 = vrot.slane %v3405, 2
    %v3408 = vrot.slane %v3406, 1
    %v3409 = vsel %vm1690, %v3408, %v3407
    %v3410 = vpack.c.b16 %v3409, %v3409
    %v3412 = vsel %vm1311, %v3410, 0
    %3414 = vmatpush.bf16.msra.mxu0 0
    %3415 = vmatpush.bf16.msra.mxu0 0
    %3416 = vmatpush.bf16.msra.mxu0 0
    %3417 = vmatpush.bf16.msra.mxu0 0
    %3418 = vmatpush.bf16.msra.mxu0 0
    %3419 = vmatpush.bf16.msra.mxu0 0
    %3420 = vmatpush.bf16.msra.mxu0 %v1396
    %3421 = vmatpush.bf16.msra.mxu0 %v1395
    %3422 = vmatmul.bf16.gmra.mxu0 %v3412
    %v3423 = vpop.f32.mrf.mxu0
    %v3424 = vadd.f32 %v1385, %v3423
    %v3425 = vpop.f32.mrf.mxu0
    %3426 = vdwg.mxu0
    %3427 = vmatpush.bf16.msra.mxu0 0
    %3428 = vmatpush.bf16.msra.mxu0 0
    %3429 = vmatpush.bf16.msra.mxu0 0
    %3430 = vmatpush.bf16.msra.mxu0 0
    %3431 = vmatpush.bf16.msra.mxu0 0
    %3432 = vmatpush.bf16.msra.mxu0 0
    %3433 = vmatpush.bf16.msra.mxu0 %v1424
    %3434 = vmatpush.bf16.msra.mxu0 %v1423
    %3435 = vmatmul.bf16.gmra.mxu0 %v3412
    %v3436 = vpop.f32.mrf.mxu0
    %v3437 = vadd.f32 %v1413, %v3436
    %v3438 = vpop.f32.mrf.mxu0
    %3439 = vdwg.mxu0
    %3440 = vmatpush.bf16.msra.mxu0 0
    %3441 = vmatpush.bf16.msra.mxu0 0
    %3442 = vmatpush.bf16.msra.mxu0 0
    %3443 = vmatpush.bf16.msra.mxu0 0
    %3444 = vmatpush.bf16.msra.mxu0 0
    %3445 = vmatpush.bf16.msra.mxu0 0
    %3446 = vmatpush.bf16.msra.mxu0 %v1452
    %3447 = vmatpush.bf16.msra.mxu0 %v1451
    %3448 = vmatmul.bf16.gmra.mxu0 %v3412
    %v3449 = vpop.f32.mrf.mxu0
    %v3450 = vadd.f32 %v1441, %v3449
    %v3451 = vpop.f32.mrf.mxu0
    %3452 = vdwg.mxu0
    %v3454 = vrot.slane %v3372, 2
    %v3455 = vrot.slane %v3372, 3
    %v3458 = vadd.f32 %v242, %v3454
    %v3459 = vadd.f32 %v244, %v3455
    %v3460 = vxor.u32 %v3458, 2147483648
    %v3461 = vxor.u32 %v3459, 2147483648
    %v3462 = vmul.f32 %v3460, 1.442695
    %v3463 = vpow.pop %v3462
    %v3464 = vmul.f32 %v3461, 1.442695
    %v3465 = vpow.pop %v3464
    %v3466 = vadd.f32 %v3463, 1.0
    %v3467 = vadd.f32 %v3465, 1.0
    %v3468 = vrcp.pop %v3466
    %v3469 = vmul.f32 %v3466, %v3468
    %v3470 = vsub.f32 1.0, %v3469
    %v3471 = vmul.f32 %v3468, %v3470
    %v3472 = vadd.f32 %v3468, %v3471
    %vm3473 = vweird.f32 %v3466
    %vm3474 = vweird.f32 %v3468
    %vm3475 = vmor %vm3473, %vm3474
    %v3476 = vsel %vm3475, %v3468, %v3472
    %v3477 = vand.u32 2147483647, %v3466
    %vm3478 = vcmp.eq.f32.partialorder %v3477, 8.507059e+37
    %v3479 = vand.u32 %v3466, 2147483648
    %v3480 = vor.u32 1.1754944e-38, %v3479
    %v3481 = vsel %vm3478, %v3480, %v3476
    %v3482 = vmul.f32 1.0, %v3481
    %v3483 = vrcp.pop %v3467
    %v3484 = vmul.f32 %v3467, %v3483
    %v3485 = vsub.f32 1.0, %v3484
    %v3486 = vmul.f32 %v3483, %v3485
    %v3487 = vadd.f32 %v3483, %v3486
    %vm3488 = vweird.f32 %v3467
    %vm3489 = vweird.f32 %v3483
    %vm3490 = vmor %vm3488, %vm3489
    %v3491 = vsel %vm3490, %v3483, %v3487
    %v3492 = vand.u32 2147483647, %v3467
    %vm3493 = vcmp.eq.f32.partialorder %v3492, 8.507059e+37
    %v3494 = vand.u32 %v3467, 2147483648
    %v3495 = vor.u32 1.1754944e-38, %v3494
    %v3496 = vsel %vm3493, %v3495, %v3491
    %v3497 = vmul.f32 1.0, %v3496
    %v3499 = vrot.slane %v3385, 2
    %v3500 = vrot.slane %v3385, 3
    %v3503 = vadd.f32 %v444, %v3499
    %v3504 = vadd.f32 %v446, %v3500
    %v3505 = vxor.u32 %v3503, 2147483648
    %v3506 = vxor.u32 %v3504, 2147483648
    %v3507 = vmul.f32 %v3505, 1.442695
    %v3508 = vpow.pop %v3507
    %v3509 = vmul.f32 %v3506, 1.442695
    %v3510 = vpow.pop %v3509
    %v3511 = vadd.f32 %v3508, 1.0
    %v3512 = vadd.f32 %v3510, 1.0
    %v3513 = vrcp.pop %v3511
    %v3514 = vmul.f32 %v3511, %v3513
    %v3515 = vsub.f32 1.0, %v3514
    %v3516 = vmul.f32 %v3513, %v3515
    %v3517 = vadd.f32 %v3513, %v3516
    %vm3518 = vweird.f32 %v3511
    %vm3519 = vweird.f32 %v3513
    %vm3520 = vmor %vm3518, %vm3519
    %v3521 = vsel %vm3520, %v3513, %v3517
    %v3522 = vand.u32 2147483647, %v3511
    %vm3523 = vcmp.eq.f32.partialorder %v3522, 8.507059e+37
    %v3524 = vand.u32 %v3511, 2147483648
    %v3525 = vor.u32 1.1754944e-38, %v3524
    %v3526 = vsel %vm3523, %v3525, %v3521
    %v3527 = vmul.f32 1.0, %v3526
    %v3528 = vrcp.pop %v3512
    %v3529 = vmul.f32 %v3512, %v3528
    %v3530 = vsub.f32 1.0, %v3529
    %v3531 = vmul.f32 %v3528, %v3530
    %v3532 = vadd.f32 %v3528, %v3531
    %vm3533 = vweird.f32 %v3512
    %vm3534 = vweird.f32 %v3528
    %vm3535 = vmor %vm3533, %vm3534
    %v3536 = vsel %vm3535, %v3528, %v3532
    %v3537 = vand.u32 2147483647, %v3512
    %vm3538 = vcmp.eq.f32.partialorder %v3537, 8.507059e+37
    %v3539 = vand.u32 %v3512, 2147483648
    %v3540 = vor.u32 1.1754944e-38, %v3539
    %v3541 = vsel %vm3538, %v3540, %v3536
    %v3542 = vmul.f32 1.0, %v3541
    %v3544 = vrot.slane %v3398, 2
    %v3545 = vrot.slane %v3398, 3
    %v3548 = vmul.f32 %v3482, %v3544
    %v3549 = vmul.f32 %v3497, %v3545
    %v3550 = vadd.f32 %v646, %v3548
    %v3551 = vadd.f32 %v648, %v3549
    %v3552 = vtanh.pop %v3550
    %v3553 = vtanh.pop %v3551
    %v3554 = vsub.f32 1.0, %v3527
    %v3555 = vsub.f32 1.0, %v3542
    %v3556 = vmul.f32 %v3554, %v3552
    %v3557 = vmul.f32 %v3555, %v3553
    %v3560 = vrot.slane %v3232, 7
    %v3561 = vrot.slane %v3233, 7
    %v3564 = vmul.f32 %v3527, %v3560
    %v3565 = vmul.f32 %v3542, %v3561
    %v3566 = vadd.f32 %v3556, %v3564
    %v3567 = vadd.f32 %v3557, %v3565
    %v3569 = vrot.slane %v3424, 7
    %v3572 = vadd.f32 %v848, %v3569
    %v3573 = vadd.f32 %v850, %v3424
    %v3574 = vxor.u32 %v3572, 2147483648
    %v3575 = vxor.u32 %v3573, 2147483648
    %v3576 = vmul.f32 %v3574, 1.442695
    %v3577 = vpow.pop %v3576
    %v3578 = vmul.f32 %v3575, 1.442695
    %v3579 = vpow.pop %v3578
    %v3580 = vadd.f32 %v3577, 1.0
    %v3581 = vadd.f32 %v3579, 1.0
    %v3582 = vrcp.pop %v3580
    %v3583 = vmul.f32 %v3580, %v3582
    %v3584 = vsub.f32 1.0, %v3583
    %v3585 = vmul.f32 %v3582, %v3584
    %v3586 = vadd.f32 %v3582, %v3585
    %vm3587 = vweird.f32 %v3580
    %vm3588 = vweird.f32 %v3582
    %vm3589 = vmor %vm3587, %vm3588
    %v3590 = vsel %vm3589, %v3582, %v3586
    %v3591 = vand.u32 2147483647, %v3580
    %vm3592 = vcmp.eq.f32.partialorder %v3591, 8.507059e+37
    %v3593 = vand.u32 %v3580, 2147483648
    %v3594 = vor.u32 1.1754944e-38, %v3593
    %v3595 = vsel %vm3592, %v3594, %v3590
    %v3596 = vmul.f32 1.0, %v3595
    %v3597 = vrcp.pop %v3581
    %v3598 = vmul.f32 %v3581, %v3597
    %v3599 = vsub.f32 1.0, %v3598
    %v3600 = vmul.f32 %v3597, %v3599
    %v3601 = vadd.f32 %v3597, %v3600
    %vm3602 = vweird.f32 %v3581
    %vm3603 = vweird.f32 %v3597
    %vm3604 = vmor %vm3602, %vm3603
    %v3605 = vsel %vm3604, %v3597, %v3601
    %v3606 = vand.u32 2147483647, %v3581
    %vm3607 = vcmp.eq.f32.partialorder %v3606, 8.507059e+37
    %v3608 = vand.u32 %v3581, 2147483648
    %v3609 = vor.u32 1.1754944e-38, %v3608
    %v3610 = vsel %vm3607, %v3609, %v3605
    %v3611 = vmul.f32 1.0, %v3610
    %v3613 = vrot.slane %v3437, 7
    %v3616 = vadd.f32 %v1050, %v3613
    %v3617 = vadd.f32 %v1052, %v3437
    %v3618 = vxor.u32 %v3616, 2147483648
    %v3619 = vxor.u32 %v3617, 2147483648
    %v3620 = vmul.f32 %v3618, 1.442695
    %v3621 = vpow.pop %v3620
    %v3622 = vmul.f32 %v3619, 1.442695
    %v3623 = vpow.pop %v3622
    %v3624 = vadd.f32 %v3621, 1.0
    %v3625 = vadd.f32 %v3623, 1.0
    %v3626 = vrcp.pop %v3624
    %v3627 = vmul.f32 %v3624, %v3626
    %v3628 = vsub.f32 1.0, %v3627
    %v3629 = vmul.f32 %v3626, %v3628
    %v3630 = vadd.f32 %v3626, %v3629
    %vm3631 = vweird.f32 %v3624
    %vm3632 = vweird.f32 %v3626
    %vm3633 = vmor %vm3631, %vm3632
    %v3634 = vsel %vm3633, %v3626, %v3630
    %v3635 = vand.u32 2147483647, %v3624
    %vm3636 = vcmp.eq.f32.partialorder %v3635, 8.507059e+37
    %v3637 = vand.u32 %v3624, 2147483648
    %v3638 = vor.u32 1.1754944e-38, %v3637
    %v3639 = vsel %vm3636, %v3638, %v3634
    %v3640 = vmul.f32 1.0, %v3639
    %v3641 = vrcp.pop %v3625
    %v3642 = vmul.f32 %v3625, %v3641
    %v3643 = vsub.f32 1.0, %v3642
    %v3644 = vmul.f32 %v3641, %v3643
    %v3645 = vadd.f32 %v3641, %v3644
    %vm3646 = vweird.f32 %v3625
    %vm3647 = vweird.f32 %v3641
    %vm3648 = vmor %vm3646, %vm3647
    %v3649 = vsel %vm3648, %v3641, %v3645
    %v3650 = vand.u32 2147483647, %v3625
    %vm3651 = vcmp.eq.f32.partialorder %v3650, 8.507059e+37
    %v3652 = vand.u32 %v3625, 2147483648
    %v3653 = vor.u32 1.1754944e-38, %v3652
    %v3654 = vsel %vm3651, %v3653, %v3649
    %v3655 = vmul.f32 1.0, %v3654
    %v3657 = vrot.slane %v3450, 7
    %v3660 = vmul.f32 %v3596, %v3657
    %v3661 = vmul.f32 %v3611, %v3450
    %v3662 = vadd.f32 %v1252, %v3660
    %v3663 = vadd.f32 %v1254, %v3661
    %v3664 = vtanh.pop %v3662
    %v3665 = vtanh.pop %v3663
    %v3666 = vsub.f32 1.0, %v3640
    %v3667 = vsub.f32 1.0, %v3655
    %v3668 = vmul.f32 %v3666, %v3664
    %v3669 = vmul.f32 %v3667, %v3665
    %v3672 = vrot.slane %v3347, 1
    %v3673 = vrot.slane %v3348, 1
    %v3676 = vmul.f32 %v3640, %v3672
    %v3677 = vmul.f32 %v3655, %v3673
    %v3678 = vadd.f32 %v3668, %v3676
    %v3679 = vadd.f32 %v3669, %v3677
    %v3680 = vpack.c.bf16 %v3566, %v3566
    %v3681 = vpack.c.bf16 %v3567, %v3567
    %v3684 = vunpack.c.l.b16 %v3680
    %v3685 = vunpack.c.l.b16 %v3681
    %v3686 = vrot.slane %v3684, 6
    %v3687 = vrot.slane %v3685, 5
    %v3688 = vsel %vm1690, %v3687, %v3686
    %v3689 = vpack.c.b16 %v3688, %v3688
    %v3691 = vsel %vm1311, %v3689, 0
    %3693 = vmatpush.bf16.msra.mxu0 0
    %3694 = vmatpush.bf16.msra.mxu0 0
    %3695 = vmatpush.bf16.msra.mxu0 0
    %3696 = vmatpush.bf16.msra.mxu0 0
    %3697 = vmatpush.bf16.msra.mxu0 0
    %3698 = vmatpush.bf16.msra.mxu0 0
    %3699 = vmatpush.bf16.msra.mxu0 %v1308
    %3700 = vmatpush.bf16.msra.mxu0 %v1307
    %3701 = vmatmul.bf16.gmra.mxu0 %v3691
    %v3702 = vpop.f32.mrf.mxu0
    %v3703 = vadd.f32 %v1297, %v3702
    %v3704 = vpop.f32.mrf.mxu0
    %3705 = vdwg.mxu0
    %3706 = vmatpush.bf16.msra.mxu0 0
    %3707 = vmatpush.bf16.msra.mxu0 0
    %3708 = vmatpush.bf16.msra.mxu0 0
    %3709 = vmatpush.bf16.msra.mxu0 0
    %3710 = vmatpush.bf16.msra.mxu0 0
    %3711 = vmatpush.bf16.msra.mxu0 0
    %3712 = vmatpush.bf16.msra.mxu0 %v1340
    %3713 = vmatpush.bf16.msra.mxu0 %v1339
    %3714 = vmatmul.bf16.gmra.mxu0 %v3691
    %v3715 = vpop.f32.mrf.mxu0
    %v3716 = vadd.f32 %v1329, %v3715
    %v3717 = vpop.f32.mrf.mxu0
    %3718 = vdwg.mxu0
    %3719 = vmatpush.bf16.msra.mxu0 0
    %3720 = vmatpush.bf16.msra.mxu0 0
    %3721 = vmatpush.bf16.msra.mxu0 0
    %3722 = vmatpush.bf16.msra.mxu0 0
    %3723 = vmatpush.bf16.msra.mxu0 0
    %3724 = vmatpush.bf16.msra.mxu0 0
    %3725 = vmatpush.bf16.msra.mxu0 %v1368
    %3726 = vmatpush.bf16.msra.mxu0 %v1367
    %3727 = vmatmul.bf16.gmra.mxu0 %v3691
    %v3728 = vpop.f32.mrf.mxu0
    %v3729 = vadd.f32 %v1357, %v3728
    %v3730 = vpop.f32.mrf.mxu0
    %3731 = vdwg.mxu0
    %v3732 = vpack.c.bf16 %v3678, %v3678
    %v3733 = vpack.c.bf16 %v3679, %v3679
    %v3736 = vunpack.c.l.b16 %v3732
    %v3737 = vunpack.c.l.b16 %v3733
    %v3738 = vrot.slane %v3736, 1
    %v3739 = vsel %vm1690, %v3737, %v3738
    %v3740 = vpack.c.b16 %v3739, %v3739
    %v3742 = vsel %vm1311, %v3740, 0
    %3744 = vmatpush.bf16.msra.mxu0 0
    %3745 = vmatpush.bf16.msra.mxu0 0
    %3746 = vmatpush.bf16.msra.mxu0 0
    %3747 = vmatpush.bf16.msra.mxu0 0
    %3748 = vmatpush.bf16.msra.mxu0 0
    %3749 = vmatpush.bf16.msra.mxu0 0
    %3750 = vmatpush.bf16.msra.mxu0 %v1396
    %3751 = vmatpush.bf16.msra.mxu0 %v1395
    %3752 = vmatmul.bf16.gmra.mxu0 %v3742
    %v3753 = vpop.f32.mrf.mxu0
    %v3754 = vadd.f32 %v1385, %v3753
    %v3755 = vpop.f32.mrf.mxu0
    %3756 = vdwg.mxu0
    %3757 = vmatpush.bf16.msra.mxu0 0
    %3758 = vmatpush.bf16.msra.mxu0 0
    %3759 = vmatpush.bf16.msra.mxu0 0
    %3760 = vmatpush.bf16.msra.mxu0 0
    %3761 = vmatpush.bf16.msra.mxu0 0
    %3762 = vmatpush.bf16.msra.mxu0 0
    %3763 = vmatpush.bf16.msra.mxu0 %v1424
    %3764 = vmatpush.bf16.msra.mxu0 %v1423
    %3765 = vmatmul.bf16.gmra.mxu0 %v3742
    %v3766 = vpop.f32.mrf.mxu0
    %v3767 = vadd.f32 %v1413, %v3766
    %v3768 = vpop.f32.mrf.mxu0
    %3769 = vdwg.mxu0
    %3770 = vmatpush.bf16.msra.mxu0 0
    %3771 = vmatpush.bf16.msra.mxu0 0
    %3772 = vmatpush.bf16.msra.mxu0 0
    %3773 = vmatpush.bf16.msra.mxu0 0
    %3774 = vmatpush.bf16.msra.mxu0 0
    %3775 = vmatpush.bf16.msra.mxu0 0
    %3776 = vmatpush.bf16.msra.mxu0 %v1452
    %3777 = vmatpush.bf16.msra.mxu0 %v1451
    %3778 = vmatmul.bf16.gmra.mxu0 %v3742
    %v3779 = vpop.f32.mrf.mxu0
    %v3780 = vadd.f32 %v1441, %v3779
    %v3781 = vpop.f32.mrf.mxu0
    %3782 = vdwg.mxu0
    %v3784 = vrot.slane %v3703, 1
    %v3785 = vrot.slane %v3703, 2
    %v3788 = vadd.f32 %v242, %v3784
    %v3789 = vadd.f32 %v244, %v3785
    %v3790 = vxor.u32 %v3788, 2147483648
    %v3791 = vxor.u32 %v3789, 2147483648
    %v3792 = vmul.f32 %v3790, 1.442695
    %v3793 = vpow.pop %v3792
    %v3794 = vmul.f32 %v3791, 1.442695
    %v3795 = vpow.pop %v3794
    %v3796 = vadd.f32 %v3793, 1.0
    %v3797 = vadd.f32 %v3795, 1.0
    %v3798 = vrcp.pop %v3796
    %v3799 = vmul.f32 %v3796, %v3798
    %v3800 = vsub.f32 1.0, %v3799
    %v3801 = vmul.f32 %v3798, %v3800
    %v3802 = vadd.f32 %v3798, %v3801
    %vm3803 = vweird.f32 %v3796
    %vm3804 = vweird.f32 %v3798
    %vm3805 = vmor %vm3803, %vm3804
    %v3806 = vsel %vm3805, %v3798, %v3802
    %v3807 = vand.u32 2147483647, %v3796
    %vm3808 = vcmp.eq.f32.partialorder %v3807, 8.507059e+37
    %v3809 = vand.u32 %v3796, 2147483648
    %v3810 = vor.u32 1.1754944e-38, %v3809
    %v3811 = vsel %vm3808, %v3810, %v3806
    %v3812 = vmul.f32 1.0, %v3811
    %v3813 = vrcp.pop %v3797
    %v3814 = vmul.f32 %v3797, %v3813
    %v3815 = vsub.f32 1.0, %v3814
    %v3816 = vmul.f32 %v3813, %v3815
    %v3817 = vadd.f32 %v3813, %v3816
    %vm3818 = vweird.f32 %v3797
    %vm3819 = vweird.f32 %v3813
    %vm3820 = vmor %vm3818, %vm3819
    %v3821 = vsel %vm3820, %v3813, %v3817
    %v3822 = vand.u32 2147483647, %v3797
    %vm3823 = vcmp.eq.f32.partialorder %v3822, 8.507059e+37
    %v3824 = vand.u32 %v3797, 2147483648
    %v3825 = vor.u32 1.1754944e-38, %v3824
    %v3826 = vsel %vm3823, %v3825, %v3821
    %v3827 = vmul.f32 1.0, %v3826
    %v3829 = vrot.slane %v3716, 1
    %v3830 = vrot.slane %v3716, 2
    %v3833 = vadd.f32 %v444, %v3829
    %v3834 = vadd.f32 %v446, %v3830
    %v3835 = vxor.u32 %v3833, 2147483648
    %v3836 = vxor.u32 %v3834, 2147483648
    %v3837 = vmul.f32 %v3835, 1.442695
    %v3838 = vpow.pop %v3837
    %v3839 = vmul.f32 %v3836, 1.442695
    %v3840 = vpow.pop %v3839
    %v3841 = vadd.f32 %v3838, 1.0
    %v3842 = vadd.f32 %v3840, 1.0
    %v3843 = vrcp.pop %v3841
    %v3844 = vmul.f32 %v3841, %v3843
    %v3845 = vsub.f32 1.0, %v3844
    %v3846 = vmul.f32 %v3843, %v3845
    %v3847 = vadd.f32 %v3843, %v3846
    %vm3848 = vweird.f32 %v3841
    %vm3849 = vweird.f32 %v3843
    %vm3850 = vmor %vm3848, %vm3849
    %v3851 = vsel %vm3850, %v3843, %v3847
    %v3852 = vand.u32 2147483647, %v3841
    %vm3853 = vcmp.eq.f32.partialorder %v3852, 8.507059e+37
    %v3854 = vand.u32 %v3841, 2147483648
    %v3855 = vor.u32 1.1754944e-38, %v3854
    %v3856 = vsel %vm3853, %v3855, %v3851
    %v3857 = vmul.f32 1.0, %v3856
    %v3858 = vrcp.pop %v3842
    %v3859 = vmul.f32 %v3842, %v3858
    %v3860 = vsub.f32 1.0, %v3859
    %v3861 = vmul.f32 %v3858, %v3860
    %v3862 = vadd.f32 %v3858, %v3861
    %vm3863 = vweird.f32 %v3842
    %vm3864 = vweird.f32 %v3858
    %vm3865 = vmor %vm3863, %vm3864
    %v3866 = vsel %vm3865, %v3858, %v3862
    %v3867 = vand.u32 2147483647, %v3842
    %vm3868 = vcmp.eq.f32.partialorder %v3867, 8.507059e+37
    %v3869 = vand.u32 %v3842, 2147483648
    %v3870 = vor.u32 1.1754944e-38, %v3869
    %v3871 = vsel %vm3868, %v3870, %v3866
    %v3872 = vmul.f32 1.0, %v3871
    %v3874 = vrot.slane %v3729, 1
    %v3875 = vrot.slane %v3729, 2
    %v3878 = vmul.f32 %v3812, %v3874
    %v3879 = vmul.f32 %v3827, %v3875
    %v3880 = vadd.f32 %v646, %v3878
    %v3881 = vadd.f32 %v648, %v3879
    %v3882 = vtanh.pop %v3880
    %v3883 = vtanh.pop %v3881
    %v3884 = vsub.f32 1.0, %v3857
    %v3885 = vsub.f32 1.0, %v3872
    %v3886 = vmul.f32 %v3884, %v3882
    %v3887 = vmul.f32 %v3885, %v3883
    %v3890 = vrot.slane %v3566, 7
    %v3891 = vrot.slane %v3567, 7
    %v3894 = vmul.f32 %v3857, %v3890
    %v3895 = vmul.f32 %v3872, %v3891
    %v3896 = vadd.f32 %v3886, %v3894
    %v3897 = vadd.f32 %v3887, %v3895
    %v3899 = vrot.slane %v3754, 1
    %v3902 = vadd.f32 %v848, %v3754
    %v3903 = vadd.f32 %v850, %v3899
    %v3904 = vxor.u32 %v3902, 2147483648
    %v3905 = vxor.u32 %v3903, 2147483648
    %v3906 = vmul.f32 %v3904, 1.442695
    %v3907 = vpow.pop %v3906
    %v3908 = vmul.f32 %v3905, 1.442695
    %v3909 = vpow.pop %v3908
    %v3910 = vadd.f32 %v3907, 1.0
    %v3911 = vadd.f32 %v3909, 1.0
    %v3912 = vrcp.pop %v3910
    %v3913 = vmul.f32 %v3910, %v3912
    %v3914 = vsub.f32 1.0, %v3913
    %v3915 = vmul.f32 %v3912, %v3914
    %v3916 = vadd.f32 %v3912, %v3915
    %vm3917 = vweird.f32 %v3910
    %vm3918 = vweird.f32 %v3912
    %vm3919 = vmor %vm3917, %vm3918
    %v3920 = vsel %vm3919, %v3912, %v3916
    %v3921 = vand.u32 2147483647, %v3910
    %vm3922 = vcmp.eq.f32.partialorder %v3921, 8.507059e+37
    %v3923 = vand.u32 %v3910, 2147483648
    %v3924 = vor.u32 1.1754944e-38, %v3923
    %v3925 = vsel %vm3922, %v3924, %v3920
    %v3926 = vmul.f32 1.0, %v3925
    %v3927 = vrcp.pop %v3911
    %v3928 = vmul.f32 %v3911, %v3927
    %v3929 = vsub.f32 1.0, %v3928
    %v3930 = vmul.f32 %v3927, %v3929
    %v3931 = vadd.f32 %v3927, %v3930
    %vm3932 = vweird.f32 %v3911
    %vm3933 = vweird.f32 %v3927
    %vm3934 = vmor %vm3932, %vm3933
    %v3935 = vsel %vm3934, %v3927, %v3931
    %v3936 = vand.u32 2147483647, %v3911
    %vm3937 = vcmp.eq.f32.partialorder %v3936, 8.507059e+37
    %v3938 = vand.u32 %v3911, 2147483648
    %v3939 = vor.u32 1.1754944e-38, %v3938
    %v3940 = vsel %vm3937, %v3939, %v3935
    %v3941 = vmul.f32 1.0, %v3940
    %v3943 = vrot.slane %v3767, 1
    %v3946 = vadd.f32 %v1050, %v3767
    %v3947 = vadd.f32 %v1052, %v3943
    %v3948 = vxor.u32 %v3946, 2147483648
    %v3949 = vxor.u32 %v3947, 2147483648
    %v3950 = vmul.f32 %v3948, 1.442695
    %v3951 = vpow.pop %v3950
    %v3952 = vmul.f32 %v3949, 1.442695
    %v3953 = vpow.pop %v3952
    %v3954 = vadd.f32 %v3951, 1.0
    %v3955 = vadd.f32 %v3953, 1.0
    %v3956 = vrcp.pop %v3954
    %v3957 = vmul.f32 %v3954, %v3956
    %v3958 = vsub.f32 1.0, %v3957
    %v3959 = vmul.f32 %v3956, %v3958
    %v3960 = vadd.f32 %v3956, %v3959
    %vm3961 = vweird.f32 %v3954
    %vm3962 = vweird.f32 %v3956
    %vm3963 = vmor %vm3961, %vm3962
    %v3964 = vsel %vm3963, %v3956, %v3960
    %v3965 = vand.u32 2147483647, %v3954
    %vm3966 = vcmp.eq.f32.partialorder %v3965, 8.507059e+37
    %v3967 = vand.u32 %v3954, 2147483648
    %v3968 = vor.u32 1.1754944e-38, %v3967
    %v3969 = vsel %vm3966, %v3968, %v3964
    %v3970 = vmul.f32 1.0, %v3969
    %v3971 = vrcp.pop %v3955
    %v3972 = vmul.f32 %v3955, %v3971
    %v3973 = vsub.f32 1.0, %v3972
    %v3974 = vmul.f32 %v3971, %v3973
    %v3975 = vadd.f32 %v3971, %v3974
    %vm3976 = vweird.f32 %v3955
    %vm3977 = vweird.f32 %v3971
    %vm3978 = vmor %vm3976, %vm3977
    %v3979 = vsel %vm3978, %v3971, %v3975
    %v3980 = vand.u32 2147483647, %v3955
    %vm3981 = vcmp.eq.f32.partialorder %v3980, 8.507059e+37
    %v3982 = vand.u32 %v3955, 2147483648
    %v3983 = vor.u32 1.1754944e-38, %v3982
    %v3984 = vsel %vm3981, %v3983, %v3979
    %v3985 = vmul.f32 1.0, %v3984
    %v3987 = vrot.slane %v3780, 1
    %v3990 = vmul.f32 %v3926, %v3780
    %v3991 = vmul.f32 %v3941, %v3987
    %v3992 = vadd.f32 %v1252, %v3990
    %v3993 = vadd.f32 %v1254, %v3991
    %v3994 = vtanh.pop %v3992
    %v3995 = vtanh.pop %v3993
    %v3996 = vsub.f32 1.0, %v3970
    %v3997 = vsub.f32 1.0, %v3985
    %v3998 = vmul.f32 %v3996, %v3994
    %v3999 = vmul.f32 %v3997, %v3995
    %v4002 = vrot.slane %v3678, 1
    %v4003 = vrot.slane %v3679, 1
    %v4006 = vmul.f32 %v3970, %v4002
    %v4007 = vmul.f32 %v3985, %v4003
    %v4008 = vadd.f32 %v3998, %v4006
    %v4009 = vadd.f32 %v3999, %v4007
    %v4012 = vrot.slane %v3897, 7
    %vm4015 = vcmask 261127
    %4016 = vst.msk [vmem:[#allocation2 - $0x7] sm:$0x80] %vm4015, %v3896
    %vm4017 = vcmask 253952
    %4018 = vst.msk [vmem:[#allocation2 + $0x1] sm:$0x1] %vm4017, %v4012
    %v4021 = vrot.slane %v4009, 7
    %v4022 = vsel %vm1690, %v4021, %v4008
    %s4024 = scalar_lea.vmem [#allocation2], 2
    %vm4025 = vcmask 254976
    %4026 = vst.msk [vmem:[%s4024] sm:$0x3] %vm4025, %v4022
    // Predicated region
    $region22: #{tpu_custom_call.1} parent=1 // pred_check
      _
    $region23: #{tpu_custom_call.1} parent=1 // pred_check_branch
      %4028 = sbr.rel (0) target = $region25
    $region24: #{tpu_custom_call.1} parent=1 // pred_region
      %4030 = vsyncadd [#allocation3], 0
      %s4031 = sshll.u32 [#allocation2], 4
      %s4032 = int_to_ptr.vmem [resolvable:$true] %s4031
      %s4033 = sshll.u32 %s5, 4
      %s4034 = int_to_ptr.hbm [resolvable:$true] %s4033
      %4039 = dma.vmem_to_hbm [thread:$0]  %s4032, 64, %s4034, [#allocation3], 32, 32, 2
    $region25: #{tpu_custom_call.1} parent=1 // pred_fallthru
      _
    // Predicated region
    $region26: #{tpu_custom_call.1} parent=1 // pred_check
      _
    $region27: #{tpu_custom_call.1} parent=1 // pred_check_branch
      %4041 = sbr.rel (0) target = $region29
    $region28: #{tpu_custom_call.1} parent=1 // pred_region
      %4043 = dma.done [#allocation3], 64
    $region29: #{tpu_custom_call.1} parent=1 // pred_fallthru
      _
    %4044 = vsyncpa [#allocation3], 1

</llo_original>
